<compile_context>
chip_gen: v7x
topology: tpu7x:2x2x1
jax: 0.10.0
libtpu: 0.0.40
codegen_flags: <defaults>
</compile_context>

<pallas_src>
import functools

import jax
import jax.numpy as jnp
from jax.experimental import pallas as pl
from jax.experimental.pallas import tpu as pltpu


def _leaky(x, slope):
    return jnp.where(x > 0, x, slope * x)


# ----------------------------------------------------------------------------
# Fused kernel: conv1 -> conv2 -> conv3 -> pairwise MLP scorer
# ----------------------------------------------------------------------------
def fused_gnn_kernel(x_ref, mbias_ref,
                     gw1_ref, ga1_ref, gb1_ref,
                     gw2_ref, ga2_ref, gb2_ref,
                     gw3_ref, ga3_ref, gb3_ref,
                     w1a_ref, w1b_ref, fb1_ref,
                     w2_ref, b2_ref,
                     out_ref, *, heads, out_dim, hidden):
    n = out_ref.shape[0]
    mbias = mbias_ref[...]                       # (N, N) additive mask: 0 / -1e30

    def gat_layer(x, w_ref, a_ref, b_ref):
        # x: (N, Fin)  ->  (N, H*D)
        h = jnp.dot(x, w_ref[...], preferred_element_type=jnp.float32)       # (N, HD)
        # All per-head alpha_src / alpha_dst in one MXU matmul against the
        # block-diagonal attention matrix (HD, 2H): cols [0:H] = src, [H:2H] = dst.
        alph = jnp.dot(h, a_ref[...], preferred_element_type=jnp.float32)    # (N, 2H)
        alph_t = jnp.transpose(alph)                                          # (2H, N)
        parts = []
        for k in range(heads):                                                # static unroll
            s = k * out_dim
            h_k = h[:, s:s + out_dim]                                         # (N, D)
            # e[i, j] = leaky_relu(alpha_dst[i] + alpha_src[j], 0.2) + mask
            e = _leaky(alph[:, heads + k:heads + k + 1] + alph_t[k:k + 1, :], 0.2)
            e = e + mbias                                                     # (N, N)
            # masked softmax over sources j (per destination row i); non-edges
            # underflow to exactly 0 after the row-max shift, no second mask.
            e = e - jnp.max(e, axis=1, keepdims=True)
            p = jnp.exp(e)
            att = p * pl.reciprocal(jnp.sum(p, axis=1, keepdims=True), approx=False)
            parts.append(jnp.dot(att, h_k, preferred_element_type=jnp.float32))
        # single full-width (N, H*D) result (lane-dense), bias + outer leaky_relu
        out = jnp.concatenate(parts, axis=1) + b_ref[...]
        return _leaky(out, 0.01)

    h1 = gat_layer(x_ref[...], gw1_ref, ga1_ref, gb1_ref)
    h2 = gat_layer(h1, gw2_ref, ga2_ref, gb2_ref)
    h3 = gat_layer(h2, gw3_ref, ga3_ref, gb3_ref)

    # Pairwise scorer: fc2(relu(fc1(cat(h3[i], h3[j]))))
    #   fc1(cat(h[i], h[j])) = h[i] @ W1a + h[j] @ W1b + b1
    # No (N, N, hidden) intermediate: accumulate over the hidden dim.
    A = jnp.dot(h3, w1a_ref[...], preferred_element_type=jnp.float32) + fb1_ref[...]
    B = jnp.dot(h3, w1b_ref[...], preferred_element_type=jnp.float32)        # (N, hid)
    B_t = jnp.transpose(B)                                                    # (hid, N)
    acc = jnp.zeros((n, n), jnp.float32)
    for k in range(hidden):                                                   # static unroll
        acc = acc + jnp.maximum(A[:, k:k + 1] + B_t[k:k + 1, :], 0.0) * w2_ref[k]
    # TODO(synk): nn.Dropout(0.3) is identity at inference; training-mode
    #             stochastic masking is intentionally not implemented.
    out_ref[...] = acc + b2_ref[0]


# ----------------------------------------------------------------------------
# Wrapper: weight prep (block-diagonal attention matrix, fc1 split, additive
# adjacency mask) + single pallas_call.
# ----------------------------------------------------------------------------
def gnn_routing_forward(x, adj, params):
    heads = params["heads"]
    d = params["hidden_dim"]
    hd = heads * d
    hidden = params["fc1_w"].shape[1]
    n = x.shape[0]

    # Additive softmax mask (adj[dst, src] > 0 -> 0, else -1e30). Computed once
    # and reused by all 3 layers & all heads inside the fused kernel.
    # Precondition (as in PyG add_self_loops=True): every row has >= 1 edge.
    mbias = jnp.where(adj > 0, 0.0, -1e30).astype(jnp.float32)

    def att_matrix(a_src, a_dst):
        # (1, H*D) att_src / att_dst -> block-diagonal (H*D, 2H):
        #   alphas = h @ m  gives  alphas[:, k] = alpha_src_k, alphas[:, H+k] = alpha_dst_k
        m = jnp.zeros((hd, 2 * heads), jnp.float32)
        for k in range(heads):
            s = k * d
            m = m.at[s:s + d, k].set(a_src[0, s:s + d])
            m = m.at[s:s + d, heads + k].set(a_dst[0, s:s + d])
        return m

    gw1, as1, ad1, gb1 = params["conv1"]
    gw2, as2, ad2, gb2 = params["conv2"]
    gw3, as3, ad3, gb3 = params["conv3"]
    a1, a2, a3 = att_matrix(as1, ad1), att_matrix(as2, ad2), att_matrix(as3, ad3)

    w1 = params["fc1_w"]                      # (2*HD, hidden)
    w1a, w1b = w1[:hd], w1[hd:]
    fb1 = params["fc1_b"]                     # (1, hidden)
    w2 = params["fc2_w"].reshape(hidden)      # (hidden,)  -> SMEM scalars
    b2 = params["fc2_b"].reshape(1)           # (1,)       -> SMEM scalar

    kernel = functools.partial(fused_gnn_kernel, heads=heads, out_dim=d, hidden=hidden)

    vmem = pl.BlockSpec(memory_space=pltpu.MemorySpace.VMEM)
    smem = pl.BlockSpec(memory_space=pltpu.MemorySpace.SMEM)

    return pl.pallas_call(
        kernel,
        out_shape=jax.ShapeDtypeStruct((n, n), jnp.float32),
        in_specs=[vmem] * 14 + [smem, smem],
        out_specs=vmem,
        compiler_params=pltpu.CompilerParams(vmem_limit_bytes=32 * 1024 * 1024),
    )(x, mbias,
      gw1, a1, gb1,
      gw2, a2, gb2,
      gw3, a3, gb3,
      w1a, w1b, fb1,
      w2, b2)


# ----------------------------------------------------------------------------
# Parameter init (deterministic)
# ----------------------------------------------------------------------------
def init_params(key, input_dim, hidden_dim, heads):
    hd = hidden_dim * heads
    ks = jax.random.split(key, 16)

    def gat_params(k, fin):
        kw, ks_, kd, kb = jax.random.split(k, 4)
        w = 0.1 * jax.random.normal(kw, (fin, hd), jnp.float32)
        a_src = 0.1 * jax.random.normal(ks_, (1, hd), jnp.float32)
        a_dst = 0.1 * jax.random.normal(kd, (1, hd), jnp.float32)
        bias = 0.1 * jax.random.normal(kb, (1, hd), jnp.float32)
        return (w, a_src, a_dst, bias)

    return {
        "heads": heads,
        "hidden_dim": hidden_dim,
        "conv1": gat_params(ks[0], input_dim),
        "conv2": gat_params(ks[1], hd),
        "conv3": gat_params(ks[2], hd),
        "fc1_w": 0.1 * jax.random.normal(ks[3], (2 * hd, hidden_dim), jnp.float32),
        "fc1_b": 0.1 * jax.random.normal(ks[4], (1, hidden_dim), jnp.float32),
        "fc2_w": 0.1 * jax.random.normal(ks[5], (hidden_dim, 1), jnp.float32),
        "fc2_b": 0.1 * jax.random.normal(ks[6], (1, 1), jnp.float32),
    }


if __name__ == "__main__":
    N = 16           # num_nodes
    INPUT_DIM = 8
    HIDDEN_DIM = 16
    HEADS = 4

    key = jax.random.PRNGKey(0)
    kx, kp = jax.random.split(key)

    # node features
    x = jax.random.normal(kx, (N, INPUT_DIM), jnp.float32)

    # ring graph (bidirectional) + self loops -> dense adjacency adj[dst, src]
    idx = jnp.arange(N)
    nxt = (idx + 1) % N
    adj = jnp.zeros((N, N), jnp.float32)
    adj = adj.at[nxt, idx].set(1.0)
    adj = adj.at[idx, nxt].set(1.0)
    adj = adj.at[idx, idx].set(1.0)

    params = init_params(kp, INPUT_DIM, HIDDEN_DIM, HEADS)

    out = gnn_routing_forward(x, adj, params)
    out = jax.block_until_ready(out)
    assert out.shape == (N, N) and out.dtype == jnp.float32
    assert bool(jnp.all(jnp.isfinite(out)))
    print("KERNEL_OK")
</pallas_src>

<mosaic_0001>
module attributes {stable_mosaic.version = 11 : i64} {
  func.func @fused_gnn_kernel(%arg0: memref<16x8xf32, #tpu.memory_space<vmem>>, %arg1: memref<16x16xf32, #tpu.memory_space<vmem>>, %arg2: memref<8x64xf32, #tpu.memory_space<vmem>>, %arg3: memref<64x8xf32, #tpu.memory_space<vmem>>, %arg4: memref<1x64xf32, #tpu.memory_space<vmem>>, %arg5: memref<64x64xf32, #tpu.memory_space<vmem>>, %arg6: memref<64x8xf32, #tpu.memory_space<vmem>>, %arg7: memref<1x64xf32, #tpu.memory_space<vmem>>, %arg8: memref<64x64xf32, #tpu.memory_space<vmem>>, %arg9: memref<64x8xf32, #tpu.memory_space<vmem>>, %arg10: memref<1x64xf32, #tpu.memory_space<vmem>>, %arg11: memref<64x16xf32, #tpu.memory_space<vmem>>, %arg12: memref<64x16xf32, #tpu.memory_space<vmem>>, %arg13: memref<1x16xf32, #tpu.memory_space<vmem>>, %arg14: memref<16xf32, #tpu.memory_space<smem>>, %arg15: memref<1xf32, #tpu.memory_space<smem>>, %arg16: memref<16x16xf32, #tpu.memory_space<vmem>>) attributes {dimension_semantics = [], scalar_prefetch = 0 : i64, scratch_operands = 0 : i64, tpu.core_type = #tpu.core_type<tc>} {
    %c0 = arith.constant 0 : index
    %c0_0 = arith.constant 0 : index
    %0 = vector.load %arg1[%c0, %c0_0] : memref<16x16xf32, #tpu.memory_space<vmem>>, vector<16x16xf32>
    %c0_1 = arith.constant 0 : index
    %c0_2 = arith.constant 0 : index
    %1 = vector.load %arg0[%c0_1, %c0_2] : memref<16x8xf32, #tpu.memory_space<vmem>>, vector<16x8xf32>
    %c0_3 = arith.constant 0 : index
    %c0_4 = arith.constant 0 : index
    %2 = vector.load %arg2[%c0_3, %c0_4] : memref<8x64xf32, #tpu.memory_space<vmem>>, vector<8x64xf32>
    %cst = arith.constant dense<0.000000e+00> : vector<16x64xf32>
    %3 = tpu.matmul %1, %2, %cst {dimension_numbers = #tpu.dot_dimension_numbers<[1], [0], [0], [1], [0, 0, 1, 1], [], []>} : vector<16x8xf32>, vector<8x64xf32>, vector<16x64xf32> -> vector<16x64xf32>
    %c0_5 = arith.constant 0 : index
    %c0_6 = arith.constant 0 : index
    %4 = vector.load %arg3[%c0_5, %c0_6] : memref<64x8xf32, #tpu.memory_space<vmem>>, vector<64x8xf32>
    %cst_7 = arith.constant dense<0.000000e+00> : vector<16x8xf32>
    %5 = tpu.matmul %3, %4, %cst_7 {dimension_numbers = #tpu.dot_dimension_numbers<[1], [0], [0], [1], [0, 0, 1, 1], [], []>} : vector<16x64xf32>, vector<64x8xf32>, vector<16x8xf32> -> vector<16x8xf32>
    %6 = tpu.transpose %5, [1, 0] : vector<16x8xf32> -> vector<8x16xf32>
    %7 = vector.extract_strided_slice %3 {offsets = [0, 0], sizes = [16, 16], strides = [1, 1]} : vector<16x64xf32> to vector<16x16xf32>
    %8 = vector.extract_strided_slice %5 {offsets = [0, 4], sizes = [16, 1], strides = [1, 1]} : vector<16x8xf32> to vector<16x1xf32>
    %9 = vector.extract_strided_slice %6 {offsets = [0, 0], sizes = [1, 16], strides = [1, 1]} : vector<8x16xf32> to vector<1x16xf32>
    %10 = vector.broadcast %8 : vector<16x1xf32> to vector<16x16xf32>
    %11 = vector.broadcast %9 : vector<1x16xf32> to vector<16x16xf32>
    %12 = arith.addf %10, %11 : vector<16x16xf32>
    %cst_8 = arith.constant 0.000000e+00 : f32
    %13 = vector.broadcast %cst_8 : f32 to vector<16x16xf32>
    %14 = arith.cmpf ogt, %12, %13 : vector<16x16xf32>
    %cst_9 = arith.constant 2.000000e-01 : f32
    %15 = vector.broadcast %cst_9 : f32 to vector<16x16xf32>
    %16 = arith.mulf %15, %12 : vector<16x16xf32>
    %17 = arith.select %14, %12, %16 : vector<16x16xi1>, vector<16x16xf32>
    %18 = arith.addf %17, %0 : vector<16x16xf32>
    %cst_10 = arith.constant dense<0xFF800000> : vector<16xf32>
    %19 = vector.multi_reduction <maximumf>, %18, %cst_10 [1] : vector<16x16xf32> to vector<16xf32>
    %20 = vector.shape_cast %19 : vector<16xf32> to vector<16x1xf32>
    %21 = vector.broadcast %20 : vector<16x1xf32> to vector<16x16xf32>
    %22 = arith.subf %18, %21 : vector<16x16xf32>
    %23 = math.exp %22 : vector<16x16xf32>
    %cst_11 = arith.constant dense<0.000000e+00> : vector<16xf32>
    %24 = vector.multi_reduction <add>, %23, %cst_11 [1] : vector<16x16xf32> to vector<16xf32>
    %25 = vector.shape_cast %24 : vector<16xf32> to vector<16x1xf32>
    %26 = tpu.reciprocal %25 : vector<16x1xf32> -> vector<16x1xf32>
    %27 = vector.broadcast %26 : vector<16x1xf32> to vector<16x16xf32>
    %28 = arith.mulf %23, %27 : vector<16x16xf32>
    %cst_12 = arith.constant dense<0.000000e+00> : vector<16x16xf32>
    %29 = tpu.matmul %28, %7, %cst_12 {dimension_numbers = #tpu.dot_dimension_numbers<[1], [0], [0], [1], [0, 0, 1, 1], [], []>} : vector<16x16xf32>, vector<16x16xf32>, vector<16x16xf32> -> vector<16x16xf32>
    %30 = vector.extract_strided_slice %3 {offsets = [0, 16], sizes = [16, 16], strides = [1, 1]} : vector<16x64xf32> to vector<16x16xf32>
    %31 = vector.extract_strided_slice %5 {offsets = [0, 5], sizes = [16, 1], strides = [1, 1]} : vector<16x8xf32> to vector<16x1xf32>
    %32 = vector.extract_strided_slice %6 {offsets = [1, 0], sizes = [1, 16], strides = [1, 1]} : vector<8x16xf32> to vector<1x16xf32>
    %33 = vector.broadcast %31 : vector<16x1xf32> to vector<16x16xf32>
    %34 = vector.broadcast %32 : vector<1x16xf32> to vector<16x16xf32>
    %35 = arith.addf %33, %34 : vector<16x16xf32>
    %cst_13 = arith.constant 0.000000e+00 : f32
    %36 = vector.broadcast %cst_13 : f32 to vector<16x16xf32>
    %37 = arith.cmpf ogt, %35, %36 : vector<16x16xf32>
    %cst_14 = arith.constant 2.000000e-01 : f32
    %38 = vector.broadcast %cst_14 : f32 to vector<16x16xf32>
    %39 = arith.mulf %38, %35 : vector<16x16xf32>
    %40 = arith.select %37, %35, %39 : vector<16x16xi1>, vector<16x16xf32>
    %41 = arith.addf %40, %0 : vector<16x16xf32>
    %cst_15 = arith.constant dense<0xFF800000> : vector<16xf32>
    %42 = vector.multi_reduction <maximumf>, %41, %cst_15 [1] : vector<16x16xf32> to vector<16xf32>
    %43 = vector.shape_cast %42 : vector<16xf32> to vector<16x1xf32>
    %44 = vector.broadcast %43 : vector<16x1xf32> to vector<16x16xf32>
    %45 = arith.subf %41, %44 : vector<16x16xf32>
    %46 = math.exp %45 : vector<16x16xf32>
    %cst_16 = arith.constant dense<0.000000e+00> : vector<16xf32>
    %47 = vector.multi_reduction <add>, %46, %cst_16 [1] : vector<16x16xf32> to vector<16xf32>
    %48 = vector.shape_cast %47 : vector<16xf32> to vector<16x1xf32>
    %49 = tpu.reciprocal %48 : vector<16x1xf32> -> vector<16x1xf32>
    %50 = vector.broadcast %49 : vector<16x1xf32> to vector<16x16xf32>
    %51 = arith.mulf %46, %50 : vector<16x16xf32>
    %cst_17 = arith.constant dense<0.000000e+00> : vector<16x16xf32>
    %52 = tpu.matmul %51, %30, %cst_17 {dimension_numbers = #tpu.dot_dimension_numbers<[1], [0], [0], [1], [0, 0, 1, 1], [], []>} : vector<16x16xf32>, vector<16x16xf32>, vector<16x16xf32> -> vector<16x16xf32>
    %53 = vector.extract_strided_slice %3 {offsets = [0, 32], sizes = [16, 16], strides = [1, 1]} : vector<16x64xf32> to vector<16x16xf32>
    %54 = vector.extract_strided_slice %5 {offsets = [0, 6], sizes = [16, 1], strides = [1, 1]} : vector<16x8xf32> to vector<16x1xf32>
    %55 = vector.extract_strided_slice %6 {offsets = [2, 0], sizes = [1, 16], strides = [1, 1]} : vector<8x16xf32> to vector<1x16xf32>
    %56 = vector.broadcast %54 : vector<16x1xf32> to vector<16x16xf32>
    %57 = vector.broadcast %55 : vector<1x16xf32> to vector<16x16xf32>
    %58 = arith.addf %56, %57 : vector<16x16xf32>
    %cst_18 = arith.constant 0.000000e+00 : f32
    %59 = vector.broadcast %cst_18 : f32 to vector<16x16xf32>
    %60 = arith.cmpf ogt, %58, %59 : vector<16x16xf32>
    %cst_19 = arith.constant 2.000000e-01 : f32
    %61 = vector.broadcast %cst_19 : f32 to vector<16x16xf32>
    %62 = arith.mulf %61, %58 : vector<16x16xf32>
    %63 = arith.select %60, %58, %62 : vector<16x16xi1>, vector<16x16xf32>
    %64 = arith.addf %63, %0 : vector<16x16xf32>
    %cst_20 = arith.constant dense<0xFF800000> : vector<16xf32>
    %65 = vector.multi_reduction <maximumf>, %64, %cst_20 [1] : vector<16x16xf32> to vector<16xf32>
    %66 = vector.shape_cast %65 : vector<16xf32> to vector<16x1xf32>
    %67 = vector.broadcast %66 : vector<16x1xf32> to vector<16x16xf32>
    %68 = arith.subf %64, %67 : vector<16x16xf32>
    %69 = math.exp %68 : vector<16x16xf32>
    %cst_21 = arith.constant dense<0.000000e+00> : vector<16xf32>
    %70 = vector.multi_reduction <add>, %69, %cst_21 [1] : vector<16x16xf32> to vector<16xf32>
    %71 = vector.shape_cast %70 : vector<16xf32> to vector<16x1xf32>
    %72 = tpu.reciprocal %71 : vector<16x1xf32> -> vector<16x1xf32>
    %73 = vector.broadcast %72 : vector<16x1xf32> to vector<16x16xf32>
    %74 = arith.mulf %69, %73 : vector<16x16xf32>
    %cst_22 = arith.constant dense<0.000000e+00> : vector<16x16xf32>
    %75 = tpu.matmul %74, %53, %cst_22 {dimension_numbers = #tpu.dot_dimension_numbers<[1], [0], [0], [1], [0, 0, 1, 1], [], []>} : vector<16x16xf32>, vector<16x16xf32>, vector<16x16xf32> -> vector<16x16xf32>
    %76 = vector.extract_strided_slice %3 {offsets = [0, 48], sizes = [16, 16], strides = [1, 1]} : vector<16x64xf32> to vector<16x16xf32>
    %77 = vector.extract_strided_slice %5 {offsets = [0, 7], sizes = [16, 1], strides = [1, 1]} : vector<16x8xf32> to vector<16x1xf32>
    %78 = vector.extract_strided_slice %6 {offsets = [3, 0], sizes = [1, 16], strides = [1, 1]} : vector<8x16xf32> to vector<1x16xf32>
    %79 = vector.broadcast %77 : vector<16x1xf32> to vector<16x16xf32>
    %80 = vector.broadcast %78 : vector<1x16xf32> to vector<16x16xf32>
    %81 = arith.addf %79, %80 : vector<16x16xf32>
    %cst_23 = arith.constant 0.000000e+00 : f32
    %82 = vector.broadcast %cst_23 : f32 to vector<16x16xf32>
    %83 = arith.cmpf ogt, %81, %82 : vector<16x16xf32>
    %cst_24 = arith.constant 2.000000e-01 : f32
    %84 = vector.broadcast %cst_24 : f32 to vector<16x16xf32>
    %85 = arith.mulf %84, %81 : vector<16x16xf32>
    %86 = arith.select %83, %81, %85 : vector<16x16xi1>, vector<16x16xf32>
    %87 = arith.addf %86, %0 : vector<16x16xf32>
    %cst_25 = arith.constant dense<0xFF800000> : vector<16xf32>
    %88 = vector.multi_reduction <maximumf>, %87, %cst_25 [1] : vector<16x16xf32> to vector<16xf32>
    %89 = vector.shape_cast %88 : vector<16xf32> to vector<16x1xf32>
    %90 = vector.broadcast %89 : vector<16x1xf32> to vector<16x16xf32>
    %91 = arith.subf %87, %90 : vector<16x16xf32>
    %92 = math.exp %91 : vector<16x16xf32>
    %cst_26 = arith.constant dense<0.000000e+00> : vector<16xf32>
    %93 = vector.multi_reduction <add>, %92, %cst_26 [1] : vector<16x16xf32> to vector<16xf32>
    %94 = vector.shape_cast %93 : vector<16xf32> to vector<16x1xf32>
    %95 = tpu.reciprocal %94 : vector<16x1xf32> -> vector<16x1xf32>
    %96 = vector.broadcast %95 : vector<16x1xf32> to vector<16x16xf32>
    %97 = arith.mulf %92, %96 : vector<16x16xf32>
    %cst_27 = arith.constant dense<0.000000e+00> : vector<16x16xf32>
    %98 = tpu.matmul %97, %76, %cst_27 {dimension_numbers = #tpu.dot_dimension_numbers<[1], [0], [0], [1], [0, 0, 1, 1], [], []>} : vector<16x16xf32>, vector<16x16xf32>, vector<16x16xf32> -> vector<16x16xf32>
    %99 = tpu.concatenate %29, %52, %75, %98 in 1 : vector<16x16xf32>, vector<16x16xf32>, vector<16x16xf32>, vector<16x16xf32> -> vector<16x64xf32>
    %c0_28 = arith.constant 0 : index
    %c0_29 = arith.constant 0 : index
    %100 = vector.load %arg4[%c0_28, %c0_29] : memref<1x64xf32, #tpu.memory_space<vmem>>, vector<1x64xf32>
    %101 = vector.broadcast %100 : vector<1x64xf32> to vector<16x64xf32>
    %102 = arith.addf %99, %101 : vector<16x64xf32>
    %cst_30 = arith.constant 0.000000e+00 : f32
    %103 = vector.broadcast %cst_30 : f32 to vector<16x64xf32>
    %104 = arith.cmpf ogt, %102, %103 : vector<16x64xf32>
    %cst_31 = arith.constant 0.00999999977 : f32
    %105 = vector.broadcast %cst_31 : f32 to vector<16x64xf32>
    %106 = arith.mulf %105, %102 : vector<16x64xf32>
    %107 = arith.select %104, %102, %106 : vector<16x64xi1>, vector<16x64xf32>
    %c0_32 = arith.constant 0 : index
    %c0_33 = arith.constant 0 : index
    %108 = vector.load %arg5[%c0_32, %c0_33] : memref<64x64xf32, #tpu.memory_space<vmem>>, vector<64x64xf32>
    %cst_34 = arith.constant dense<0.000000e+00> : vector<16x64xf32>
    %109 = tpu.matmul %107, %108, %cst_34 {dimension_numbers = #tpu.dot_dimension_numbers<[1], [0], [0], [1], [0, 0, 1, 1], [], []>} : vector<16x64xf32>, vector<64x64xf32>, vector<16x64xf32> -> vector<16x64xf32>
    %c0_35 = arith.constant 0 : index
    %c0_36 = arith.constant 0 : index
    %110 = vector.load %arg6[%c0_35, %c0_36] : memref<64x8xf32, #tpu.memory_space<vmem>>, vector<64x8xf32>
    %cst_37 = arith.constant dense<0.000000e+00> : vector<16x8xf32>
    %111 = tpu.matmul %109, %110, %cst_37 {dimension_numbers = #tpu.dot_dimension_numbers<[1], [0], [0], [1], [0, 0, 1, 1], [], []>} : vector<16x64xf32>, vector<64x8xf32>, vector<16x8xf32> -> vector<16x8xf32>
    %112 = tpu.transpose %111, [1, 0] : vector<16x8xf32> -> vector<8x16xf32>
    %113 = vector.extract_strided_slice %109 {offsets = [0, 0], sizes = [16, 16], strides = [1, 1]} : vector<16x64xf32> to vector<16x16xf32>
    %114 = vector.extract_strided_slice %111 {offsets = [0, 4], sizes = [16, 1], strides = [1, 1]} : vector<16x8xf32> to vector<16x1xf32>
    %115 = vector.extract_strided_slice %112 {offsets = [0, 0], sizes = [1, 16], strides = [1, 1]} : vector<8x16xf32> to vector<1x16xf32>
    %116 = vector.broadcast %114 : vector<16x1xf32> to vector<16x16xf32>
    %117 = vector.broadcast %115 : vector<1x16xf32> to vector<16x16xf32>
    %118 = arith.addf %116, %117 : vector<16x16xf32>
    %cst_38 = arith.constant 0.000000e+00 : f32
    %119 = vector.broadcast %cst_38 : f32 to vector<16x16xf32>
    %120 = arith.cmpf ogt, %118, %119 : vector<16x16xf32>
    %cst_39 = arith.constant 2.000000e-01 : f32
    %121 = vector.broadcast %cst_39 : f32 to vector<16x16xf32>
    %122 = arith.mulf %121, %118 : vector<16x16xf32>
    %123 = arith.select %120, %118, %122 : vector<16x16xi1>, vector<16x16xf32>
    %124 = arith.addf %123, %0 : vector<16x16xf32>
    %cst_40 = arith.constant dense<0xFF800000> : vector<16xf32>
    %125 = vector.multi_reduction <maximumf>, %124, %cst_40 [1] : vector<16x16xf32> to vector<16xf32>
    %126 = vector.shape_cast %125 : vector<16xf32> to vector<16x1xf32>
    %127 = vector.broadcast %126 : vector<16x1xf32> to vector<16x16xf32>
    %128 = arith.subf %124, %127 : vector<16x16xf32>
    %129 = math.exp %128 : vector<16x16xf32>
    %cst_41 = arith.constant dense<0.000000e+00> : vector<16xf32>
    %130 = vector.multi_reduction <add>, %129, %cst_41 [1] : vector<16x16xf32> to vector<16xf32>
    %131 = vector.shape_cast %130 : vector<16xf32> to vector<16x1xf32>
    %132 = tpu.reciprocal %131 : vector<16x1xf32> -> vector<16x1xf32>
    %133 = vector.broadcast %132 : vector<16x1xf32> to vector<16x16xf32>
    %134 = arith.mulf %129, %133 : vector<16x16xf32>
    %cst_42 = arith.constant dense<0.000000e+00> : vector<16x16xf32>
    %135 = tpu.matmul %134, %113, %cst_42 {dimension_numbers = #tpu.dot_dimension_numbers<[1], [0], [0], [1], [0, 0, 1, 1], [], []>} : vector<16x16xf32>, vector<16x16xf32>, vector<16x16xf32> -> vector<16x16xf32>
    %136 = vector.extract_strided_slice %109 {offsets = [0, 16], sizes = [16, 16], strides = [1, 1]} : vector<16x64xf32> to vector<16x16xf32>
    %137 = vector.extract_strided_slice %111 {offsets = [0, 5], sizes = [16, 1], strides = [1, 1]} : vector<16x8xf32> to vector<16x1xf32>
    %138 = vector.extract_strided_slice %112 {offsets = [1, 0], sizes = [1, 16], strides = [1, 1]} : vector<8x16xf32> to vector<1x16xf32>
    %139 = vector.broadcast %137 : vector<16x1xf32> to vector<16x16xf32>
    %140 = vector.broadcast %138 : vector<1x16xf32> to vector<16x16xf32>
    %141 = arith.addf %139, %140 : vector<16x16xf32>
    %cst_43 = arith.constant 0.000000e+00 : f32
    %142 = vector.broadcast %cst_43 : f32 to vector<16x16xf32>
    %143 = arith.cmpf ogt, %141, %142 : vector<16x16xf32>
    %cst_44 = arith.constant 2.000000e-01 : f32
    %144 = vector.broadcast %cst_44 : f32 to vector<16x16xf32>
    %145 = arith.mulf %144, %141 : vector<16x16xf32>
    %146 = arith.select %143, %141, %145 : vector<16x16xi1>, vector<16x16xf32>
    %147 = arith.addf %146, %0 : vector<16x16xf32>
    %cst_45 = arith.constant dense<0xFF800000> : vector<16xf32>
    %148 = vector.multi_reduction <maximumf>, %147, %cst_45 [1] : vector<16x16xf32> to vector<16xf32>
    %149 = vector.shape_cast %148 : vector<16xf32> to vector<16x1xf32>
    %150 = vector.broadcast %149 : vector<16x1xf32> to vector<16x16xf32>
    %151 = arith.subf %147, %150 : vector<16x16xf32>
    %152 = math.exp %151 : vector<16x16xf32>
    %cst_46 = arith.constant dense<0.000000e+00> : vector<16xf32>
    %153 = vector.multi_reduction <add>, %152, %cst_46 [1] : vector<16x16xf32> to vector<16xf32>
    %154 = vector.shape_cast %153 : vector<16xf32> to vector<16x1xf32>
    %155 = tpu.reciprocal %154 : vector<16x1xf32> -> vector<16x1xf32>
    %156 = vector.broadcast %155 : vector<16x1xf32> to vector<16x16xf32>
    %157 = arith.mulf %152, %156 : vector<16x16xf32>
    %cst_47 = arith.constant dense<0.000000e+00> : vector<16x16xf32>
    %158 = tpu.matmul %157, %136, %cst_47 {dimension_numbers = #tpu.dot_dimension_numbers<[1], [0], [0], [1], [0, 0, 1, 1], [], []>} : vector<16x16xf32>, vector<16x16xf32>, vector<16x16xf32> -> vector<16x16xf32>
    %159 = vector.extract_strided_slice %109 {offsets = [0, 32], sizes = [16, 16], strides = [1, 1]} : vector<16x64xf32> to vector<16x16xf32>
    %160 = vector.extract_strided_slice %111 {offsets = [0, 6], sizes = [16, 1], strides = [1, 1]} : vector<16x8xf32> to vector<16x1xf32>
    %161 = vector.extract_strided_slice %112 {offsets = [2, 0], sizes = [1, 16], strides = [1, 1]} : vector<8x16xf32> to vector<1x16xf32>
    %162 = vector.broadcast %160 : vector<16x1xf32> to vector<16x16xf32>
    %163 = vector.broadcast %161 : vector<1x16xf32> to vector<16x16xf32>
    %164 = arith.addf %162, %163 : vector<16x16xf32>
    %cst_48 = arith.constant 0.000000e+00 : f32
    %165 = vector.broadcast %cst_48 : f32 to vector<16x16xf32>
    %166 = arith.cmpf ogt, %164, %165 : vector<16x16xf32>
    %cst_49 = arith.constant 2.000000e-01 : f32
    %167 = vector.broadcast %cst_49 : f32 to vector<16x16xf32>
    %168 = arith.mulf %167, %164 : vector<16x16xf32>
    %169 = arith.select %166, %164, %168 : vector<16x16xi1>, vector<16x16xf32>
    %170 = arith.addf %169, %0 : vector<16x16xf32>
    %cst_50 = arith.constant dense<0xFF800000> : vector<16xf32>
    %171 = vector.multi_reduction <maximumf>, %170, %cst_50 [1] : vector<16x16xf32> to vector<16xf32>
    %172 = vector.shape_cast %171 : vector<16xf32> to vector<16x1xf32>
    %173 = vector.broadcast %172 : vector<16x1xf32> to vector<16x16xf32>
    %174 = arith.subf %170, %173 : vector<16x16xf32>
    %175 = math.exp %174 : vector<16x16xf32>
    %cst_51 = arith.constant dense<0.000000e+00> : vector<16xf32>
    %176 = vector.multi_reduction <add>, %175, %cst_51 [1] : vector<16x16xf32> to vector<16xf32>
    %177 = vector.shape_cast %176 : vector<16xf32> to vector<16x1xf32>
    %178 = tpu.reciprocal %177 : vector<16x1xf32> -> vector<16x1xf32>
    %179 = vector.broadcast %178 : vector<16x1xf32> to vector<16x16xf32>
    %180 = arith.mulf %175, %179 : vector<16x16xf32>
    %cst_52 = arith.constant dense<0.000000e+00> : vector<16x16xf32>
    %181 = tpu.matmul %180, %159, %cst_52 {dimension_numbers = #tpu.dot_dimension_numbers<[1], [0], [0], [1], [0, 0, 1, 1], [], []>} : vector<16x16xf32>, vector<16x16xf32>, vector<16x16xf32> -> vector<16x16xf32>
    %182 = vector.extract_strided_slice %109 {offsets = [0, 48], sizes = [16, 16], strides = [1, 1]} : vector<16x64xf32> to vector<16x16xf32>
    %183 = vector.extract_strided_slice %111 {offsets = [0, 7], sizes = [16, 1], strides = [1, 1]} : vector<16x8xf32> to vector<16x1xf32>
    %184 = vector.extract_strided_slice %112 {offsets = [3, 0], sizes = [1, 16], strides = [1, 1]} : vector<8x16xf32> to vector<1x16xf32>
    %185 = vector.broadcast %183 : vector<16x1xf32> to vector<16x16xf32>
    %186 = vector.broadcast %184 : vector<1x16xf32> to vector<16x16xf32>
    %187 = arith.addf %185, %186 : vector<16x16xf32>
    %cst_53 = arith.constant 0.000000e+00 : f32
    %188 = vector.broadcast %cst_53 : f32 to vector<16x16xf32>
    %189 = arith.cmpf ogt, %187, %188 : vector<16x16xf32>
    %cst_54 = arith.constant 2.000000e-01 : f32
    %190 = vector.broadcast %cst_54 : f32 to vector<16x16xf32>
    %191 = arith.mulf %190, %187 : vector<16x16xf32>
    %192 = arith.select %189, %187, %191 : vector<16x16xi1>, vector<16x16xf32>
    %193 = arith.addf %192, %0 : vector<16x16xf32>
    %cst_55 = arith.constant dense<0xFF800000> : vector<16xf32>
    %194 = vector.multi_reduction <maximumf>, %193, %cst_55 [1] : vector<16x16xf32> to vector<16xf32>
    %195 = vector.shape_cast %194 : vector<16xf32> to vector<16x1xf32>
    %196 = vector.broadcast %195 : vector<16x1xf32> to vector<16x16xf32>
    %197 = arith.subf %193, %196 : vector<16x16xf32>
    %198 = math.exp %197 : vector<16x16xf32>
    %cst_56 = arith.constant dense<0.000000e+00> : vector<16xf32>
    %199 = vector.multi_reduction <add>, %198, %cst_56 [1] : vector<16x16xf32> to vector<16xf32>
    %200 = vector.shape_cast %199 : vector<16xf32> to vector<16x1xf32>
    %201 = tpu.reciprocal %200 : vector<16x1xf32> -> vector<16x1xf32>
    %202 = vector.broadcast %201 : vector<16x1xf32> to vector<16x16xf32>
    %203 = arith.mulf %198, %202 : vector<16x16xf32>
    %cst_57 = arith.constant dense<0.000000e+00> : vector<16x16xf32>
    %204 = tpu.matmul %203, %182, %cst_57 {dimension_numbers = #tpu.dot_dimension_numbers<[1], [0], [0], [1], [0, 0, 1, 1], [], []>} : vector<16x16xf32>, vector<16x16xf32>, vector<16x16xf32> -> vector<16x16xf32>
    %205 = tpu.concatenate %135, %158, %181, %204 in 1 : vector<16x16xf32>, vector<16x16xf32>, vector<16x16xf32>, vector<16x16xf32> -> vector<16x64xf32>
    %c0_58 = arith.constant 0 : index
    %c0_59 = arith.constant 0 : index
    %206 = vector.load %arg7[%c0_58, %c0_59] : memref<1x64xf32, #tpu.memory_space<vmem>>, vector<1x64xf32>
    %207 = vector.broadcast %206 : vector<1x64xf32> to vector<16x64xf32>
    %208 = arith.addf %205, %207 : vector<16x64xf32>
    %cst_60 = arith.constant 0.000000e+00 : f32
    %209 = vector.broadcast %cst_60 : f32 to vector<16x64xf32>
    %210 = arith.cmpf ogt, %208, %209 : vector<16x64xf32>
    %cst_61 = arith.constant 0.00999999977 : f32
    %211 = vector.broadcast %cst_61 : f32 to vector<16x64xf32>
    %212 = arith.mulf %211, %208 : vector<16x64xf32>
    %213 = arith.select %210, %208, %212 : vector<16x64xi1>, vector<16x64xf32>
    %c0_62 = arith.constant 0 : index
    %c0_63 = arith.constant 0 : index
    %214 = vector.load %arg8[%c0_62, %c0_63] : memref<64x64xf32, #tpu.memory_space<vmem>>, vector<64x64xf32>
    %cst_64 = arith.constant dense<0.000000e+00> : vector<16x64xf32>
    %215 = tpu.matmul %213, %214, %cst_64 {dimension_numbers = #tpu.dot_dimension_numbers<[1], [0], [0], [1], [0, 0, 1, 1], [], []>} : vector<16x64xf32>, vector<64x64xf32>, vector<16x64xf32> -> vector<16x64xf32>
    %c0_65 = arith.constant 0 : index
    %c0_66 = arith.constant 0 : index
    %216 = vector.load %arg9[%c0_65, %c0_66] : memref<64x8xf32, #tpu.memory_space<vmem>>, vector<64x8xf32>
    %cst_67 = arith.constant dense<0.000000e+00> : vector<16x8xf32>
    %217 = tpu.matmul %215, %216, %cst_67 {dimension_numbers = #tpu.dot_dimension_numbers<[1], [0], [0], [1], [0, 0, 1, 1], [], []>} : vector<16x64xf32>, vector<64x8xf32>, vector<16x8xf32> -> vector<16x8xf32>
    %218 = tpu.transpose %217, [1, 0] : vector<16x8xf32> -> vector<8x16xf32>
    %219 = vector.extract_strided_slice %215 {offsets = [0, 0], sizes = [16, 16], strides = [1, 1]} : vector<16x64xf32> to vector<16x16xf32>
    %220 = vector.extract_strided_slice %217 {offsets = [0, 4], sizes = [16, 1], strides = [1, 1]} : vector<16x8xf32> to vector<16x1xf32>
    %221 = vector.extract_strided_slice %218 {offsets = [0, 0], sizes = [1, 16], strides = [1, 1]} : vector<8x16xf32> to vector<1x16xf32>
    %222 = vector.broadcast %220 : vector<16x1xf32> to vector<16x16xf32>
    %223 = vector.broadcast %221 : vector<1x16xf32> to vector<16x16xf32>
    %224 = arith.addf %222, %223 : vector<16x16xf32>
    %cst_68 = arith.constant 0.000000e+00 : f32
    %225 = vector.broadcast %cst_68 : f32 to vector<16x16xf32>
    %226 = arith.cmpf ogt, %224, %225 : vector<16x16xf32>
    %cst_69 = arith.constant 2.000000e-01 : f32
    %227 = vector.broadcast %cst_69 : f32 to vector<16x16xf32>
    %228 = arith.mulf %227, %224 : vector<16x16xf32>
    %229 = arith.select %226, %224, %228 : vector<16x16xi1>, vector<16x16xf32>
    %230 = arith.addf %229, %0 : vector<16x16xf32>
    %cst_70 = arith.constant dense<0xFF800000> : vector<16xf32>
    %231 = vector.multi_reduction <maximumf>, %230, %cst_70 [1] : vector<16x16xf32> to vector<16xf32>
    %232 = vector.shape_cast %231 : vector<16xf32> to vector<16x1xf32>
    %233 = vector.broadcast %232 : vector<16x1xf32> to vector<16x16xf32>
    %234 = arith.subf %230, %233 : vector<16x16xf32>
    %235 = math.exp %234 : vector<16x16xf32>
    %cst_71 = arith.constant dense<0.000000e+00> : vector<16xf32>
    %236 = vector.multi_reduction <add>, %235, %cst_71 [1] : vector<16x16xf32> to vector<16xf32>
    %237 = vector.shape_cast %236 : vector<16xf32> to vector<16x1xf32>
    %238 = tpu.reciprocal %237 : vector<16x1xf32> -> vector<16x1xf32>
    %239 = vector.broadcast %238 : vector<16x1xf32> to vector<16x16xf32>
    %240 = arith.mulf %235, %239 : vector<16x16xf32>
    %cst_72 = arith.constant dense<0.000000e+00> : vector<16x16xf32>
    %241 = tpu.matmul %240, %219, %cst_72 {dimension_numbers = #tpu.dot_dimension_numbers<[1], [0], [0], [1], [0, 0, 1, 1], [], []>} : vector<16x16xf32>, vector<16x16xf32>, vector<16x16xf32> -> vector<16x16xf32>
    %242 = vector.extract_strided_slice %215 {offsets = [0, 16], sizes = [16, 16], strides = [1, 1]} : vector<16x64xf32> to vector<16x16xf32>
    %243 = vector.extract_strided_slice %217 {offsets = [0, 5], sizes = [16, 1], strides = [1, 1]} : vector<16x8xf32> to vector<16x1xf32>
    %244 = vector.extract_strided_slice %218 {offsets = [1, 0], sizes = [1, 16], strides = [1, 1]} : vector<8x16xf32> to vector<1x16xf32>
    %245 = vector.broadcast %243 : vector<16x1xf32> to vector<16x16xf32>
    %246 = vector.broadcast %244 : vector<1x16xf32> to vector<16x16xf32>
    %247 = arith.addf %245, %246 : vector<16x16xf32>
    %cst_73 = arith.constant 0.000000e+00 : f32
    %248 = vector.broadcast %cst_73 : f32 to vector<16x16xf32>
    %249 = arith.cmpf ogt, %247, %248 : vector<16x16xf32>
    %cst_74 = arith.constant 2.000000e-01 : f32
    %250 = vector.broadcast %cst_74 : f32 to vector<16x16xf32>
    %251 = arith.mulf %250, %247 : vector<16x16xf32>
    %252 = arith.select %249, %247, %251 : vector<16x16xi1>, vector<16x16xf32>
    %253 = arith.addf %252, %0 : vector<16x16xf32>
    %cst_75 = arith.constant dense<0xFF800000> : vector<16xf32>
    %254 = vector.multi_reduction <maximumf>, %253, %cst_75 [1] : vector<16x16xf32> to vector<16xf32>
    %255 = vector.shape_cast %254 : vector<16xf32> to vector<16x1xf32>
    %256 = vector.broadcast %255 : vector<16x1xf32> to vector<16x16xf32>
    %257 = arith.subf %253, %256 : vector<16x16xf32>
    %258 = math.exp %257 : vector<16x16xf32>
    %cst_76 = arith.constant dense<0.000000e+00> : vector<16xf32>
    %259 = vector.multi_reduction <add>, %258, %cst_76 [1] : vector<16x16xf32> to vector<16xf32>
    %260 = vector.shape_cast %259 : vector<16xf32> to vector<16x1xf32>
    %261 = tpu.reciprocal %260 : vector<16x1xf32> -> vector<16x1xf32>
    %262 = vector.broadcast %261 : vector<16x1xf32> to vector<16x16xf32>
    %263 = arith.mulf %258, %262 : vector<16x16xf32>
    %cst_77 = arith.constant dense<0.000000e+00> : vector<16x16xf32>
    %264 = tpu.matmul %263, %242, %cst_77 {dimension_numbers = #tpu.dot_dimension_numbers<[1], [0], [0], [1], [0, 0, 1, 1], [], []>} : vector<16x16xf32>, vector<16x16xf32>, vector<16x16xf32> -> vector<16x16xf32>
    %265 = vector.extract_strided_slice %215 {offsets = [0, 32], sizes = [16, 16], strides = [1, 1]} : vector<16x64xf32> to vector<16x16xf32>
    %266 = vector.extract_strided_slice %217 {offsets = [0, 6], sizes = [16, 1], strides = [1, 1]} : vector<16x8xf32> to vector<16x1xf32>
    %267 = vector.extract_strided_slice %218 {offsets = [2, 0], sizes = [1, 16], strides = [1, 1]} : vector<8x16xf32> to vector<1x16xf32>
    %268 = vector.broadcast %266 : vector<16x1xf32> to vector<16x16xf32>
    %269 = vector.broadcast %267 : vector<1x16xf32> to vector<16x16xf32>
    %270 = arith.addf %268, %269 : vector<16x16xf32>
    %cst_78 = arith.constant 0.000000e+00 : f32
    %271 = vector.broadcast %cst_78 : f32 to vector<16x16xf32>
    %272 = arith.cmpf ogt, %270, %271 : vector<16x16xf32>
    %cst_79 = arith.constant 2.000000e-01 : f32
    %273 = vector.broadcast %cst_79 : f32 to vector<16x16xf32>
    %274 = arith.mulf %273, %270 : vector<16x16xf32>
    %275 = arith.select %272, %270, %274 : vector<16x16xi1>, vector<16x16xf32>
    %276 = arith.addf %275, %0 : vector<16x16xf32>
    %cst_80 = arith.constant dense<0xFF800000> : vector<16xf32>
    %277 = vector.multi_reduction <maximumf>, %276, %cst_80 [1] : vector<16x16xf32> to vector<16xf32>
    %278 = vector.shape_cast %277 : vector<16xf32> to vector<16x1xf32>
    %279 = vector.broadcast %278 : vector<16x1xf32> to vector<16x16xf32>
    %280 = arith.subf %276, %279 : vector<16x16xf32>
    %281 = math.exp %280 : vector<16x16xf32>
    %cst_81 = arith.constant dense<0.000000e+00> : vector<16xf32>
    %282 = vector.multi_reduction <add>, %281, %cst_81 [1] : vector<16x16xf32> to vector<16xf32>
    %283 = vector.shape_cast %282 : vector<16xf32> to vector<16x1xf32>
    %284 = tpu.reciprocal %283 : vector<16x1xf32> -> vector<16x1xf32>
    %285 = vector.broadcast %284 : vector<16x1xf32> to vector<16x16xf32>
    %286 = arith.mulf %281, %285 : vector<16x16xf32>
    %cst_82 = arith.constant dense<0.000000e+00> : vector<16x16xf32>
    %287 = tpu.matmul %286, %265, %cst_82 {dimension_numbers = #tpu.dot_dimension_numbers<[1], [0], [0], [1], [0, 0, 1, 1], [], []>} : vector<16x16xf32>, vector<16x16xf32>, vector<16x16xf32> -> vector<16x16xf32>
    %288 = vector.extract_strided_slice %215 {offsets = [0, 48], sizes = [16, 16], strides = [1, 1]} : vector<16x64xf32> to vector<16x16xf32>
    %289 = vector.extract_strided_slice %217 {offsets = [0, 7], sizes = [16, 1], strides = [1, 1]} : vector<16x8xf32> to vector<16x1xf32>
    %290 = vector.extract_strided_slice %218 {offsets = [3, 0], sizes = [1, 16], strides = [1, 1]} : vector<8x16xf32> to vector<1x16xf32>
    %291 = vector.broadcast %289 : vector<16x1xf32> to vector<16x16xf32>
    %292 = vector.broadcast %290 : vector<1x16xf32> to vector<16x16xf32>
    %293 = arith.addf %291, %292 : vector<16x16xf32>
    %cst_83 = arith.constant 0.000000e+00 : f32
    %294 = vector.broadcast %cst_83 : f32 to vector<16x16xf32>
    %295 = arith.cmpf ogt, %293, %294 : vector<16x16xf32>
    %cst_84 = arith.constant 2.000000e-01 : f32
    %296 = vector.broadcast %cst_84 : f32 to vector<16x16xf32>
    %297 = arith.mulf %296, %293 : vector<16x16xf32>
    %298 = arith.select %295, %293, %297 : vector<16x16xi1>, vector<16x16xf32>
    %299 = arith.addf %298, %0 : vector<16x16xf32>
    %cst_85 = arith.constant dense<0xFF800000> : vector<16xf32>
    %300 = vector.multi_reduction <maximumf>, %299, %cst_85 [1] : vector<16x16xf32> to vector<16xf32>
    %301 = vector.shape_cast %300 : vector<16xf32> to vector<16x1xf32>
    %302 = vector.broadcast %301 : vector<16x1xf32> to vector<16x16xf32>
    %303 = arith.subf %299, %302 : vector<16x16xf32>
    %304 = math.exp %303 : vector<16x16xf32>
    %cst_86 = arith.constant dense<0.000000e+00> : vector<16xf32>
    %305 = vector.multi_reduction <add>, %304, %cst_86 [1] : vector<16x16xf32> to vector<16xf32>
    %306 = vector.shape_cast %305 : vector<16xf32> to vector<16x1xf32>
    %307 = tpu.reciprocal %306 : vector<16x1xf32> -> vector<16x1xf32>
    %308 = vector.broadcast %307 : vector<16x1xf32> to vector<16x16xf32>
    %309 = arith.mulf %304, %308 : vector<16x16xf32>
    %cst_87 = arith.constant dense<0.000000e+00> : vector<16x16xf32>
    %310 = tpu.matmul %309, %288, %cst_87 {dimension_numbers = #tpu.dot_dimension_numbers<[1], [0], [0], [1], [0, 0, 1, 1], [], []>} : vector<16x16xf32>, vector<16x16xf32>, vector<16x16xf32> -> vector<16x16xf32>
    %311 = tpu.concatenate %241, %264, %287, %310 in 1 : vector<16x16xf32>, vector<16x16xf32>, vector<16x16xf32>, vector<16x16xf32> -> vector<16x64xf32>
    %c0_88 = arith.constant 0 : index
    %c0_89 = arith.constant 0 : index
    %312 = vector.load %arg10[%c0_88, %c0_89] : memref<1x64xf32, #tpu.memory_space<vmem>>, vector<1x64xf32>
    %313 = vector.broadcast %312 : vector<1x64xf32> to vector<16x64xf32>
    %314 = arith.addf %311, %313 : vector<16x64xf32>
    %cst_90 = arith.constant 0.000000e+00 : f32
    %315 = vector.broadcast %cst_90 : f32 to vector<16x64xf32>
    %316 = arith.cmpf ogt, %314, %315 : vector<16x64xf32>
    %cst_91 = arith.constant 0.00999999977 : f32
    %317 = vector.broadcast %cst_91 : f32 to vector<16x64xf32>
    %318 = arith.mulf %317, %314 : vector<16x64xf32>
    %319 = arith.select %316, %314, %318 : vector<16x64xi1>, vector<16x64xf32>
    %c0_92 = arith.constant 0 : index
    %c0_93 = arith.constant 0 : index
    %320 = vector.load %arg11[%c0_92, %c0_93] : memref<64x16xf32, #tpu.memory_space<vmem>>, vector<64x16xf32>
    %cst_94 = arith.constant dense<0.000000e+00> : vector<16x16xf32>
    %321 = tpu.matmul %319, %320, %cst_94 {dimension_numbers = #tpu.dot_dimension_numbers<[1], [0], [0], [1], [0, 0, 1, 1], [], []>} : vector<16x64xf32>, vector<64x16xf32>, vector<16x16xf32> -> vector<16x16xf32>
    %c0_95 = arith.constant 0 : index
    %c0_96 = arith.constant 0 : index
    %322 = vector.load %arg13[%c0_95, %c0_96] : memref<1x16xf32, #tpu.memory_space<vmem>>, vector<1x16xf32>
    %323 = vector.broadcast %322 : vector<1x16xf32> to vector<16x16xf32>
    %324 = arith.addf %321, %323 : vector<16x16xf32>
    %c0_97 = arith.constant 0 : index
    %c0_98 = arith.constant 0 : index
    %325 = vector.load %arg12[%c0_97, %c0_98] : memref<64x16xf32, #tpu.memory_space<vmem>>, vector<64x16xf32>
    %cst_99 = arith.constant dense<0.000000e+00> : vector<16x16xf32>
    %326 = tpu.matmul %319, %325, %cst_99 {dimension_numbers = #tpu.dot_dimension_numbers<[1], [0], [0], [1], [0, 0, 1, 1], [], []>} : vector<16x64xf32>, vector<64x16xf32>, vector<16x16xf32> -> vector<16x16xf32>
    %327 = tpu.transpose %326, [1, 0] : vector<16x16xf32> -> vector<16x16xf32>
    %cst_100 = arith.constant 0.000000e+00 : f32
    %328 = vector.broadcast %cst_100 : f32 to vector<16x16xf32>
    %329 = vector.extract_strided_slice %324 {offsets = [0, 0], sizes = [16, 1], strides = [1, 1]} : vector<16x16xf32> to vector<16x1xf32>
    %330 = vector.extract_strided_slice %327 {offsets = [0, 0], sizes = [1, 16], strides = [1, 1]} : vector<16x16xf32> to vector<1x16xf32>
    %331 = vector.broadcast %329 : vector<16x1xf32> to vector<16x16xf32>
    %332 = vector.broadcast %330 : vector<1x16xf32> to vector<16x16xf32>
    %333 = arith.addf %331, %332 : vector<16x16xf32>
    %cst_101 = arith.constant 0.000000e+00 : f32
    %334 = vector.broadcast %cst_101 : f32 to vector<16x16xf32>
    %335 = arith.maximumf %333, %334 : vector<16x16xf32>
    %c0_102 = arith.constant 0 : index
    %336 = memref.load %arg14[%c0_102] : memref<16xf32, #tpu.memory_space<smem>>
    %337 = vector.broadcast %336 : f32 to vector<16x16xf32>
    %338 = arith.mulf %335, %337 : vector<16x16xf32>
    %339 = arith.addf %328, %338 : vector<16x16xf32>
    %340 = vector.extract_strided_slice %324 {offsets = [0, 1], sizes = [16, 1], strides = [1, 1]} : vector<16x16xf32> to vector<16x1xf32>
    %341 = vector.extract_strided_slice %327 {offsets = [1, 0], sizes = [1, 16], strides = [1, 1]} : vector<16x16xf32> to vector<1x16xf32>
    %342 = vector.broadcast %340 : vector<16x1xf32> to vector<16x16xf32>
    %343 = vector.broadcast %341 : vector<1x16xf32> to vector<16x16xf32>
    %344 = arith.addf %342, %343 : vector<16x16xf32>
    %cst_103 = arith.constant 0.000000e+00 : f32
    %345 = vector.broadcast %cst_103 : f32 to vector<16x16xf32>
    %346 = arith.maximumf %344, %345 : vector<16x16xf32>
    %c1 = arith.constant 1 : index
    %347 = memref.load %arg14[%c1] : memref<16xf32, #tpu.memory_space<smem>>
    %348 = vector.broadcast %347 : f32 to vector<16x16xf32>
    %349 = arith.mulf %346, %348 : vector<16x16xf32>
    %350 = arith.addf %339, %349 : vector<16x16xf32>
    %351 = vector.extract_strided_slice %324 {offsets = [0, 2], sizes = [16, 1], strides = [1, 1]} : vector<16x16xf32> to vector<16x1xf32>
    %352 = vector.extract_strided_slice %327 {offsets = [2, 0], sizes = [1, 16], strides = [1, 1]} : vector<16x16xf32> to vector<1x16xf32>
    %353 = vector.broadcast %351 : vector<16x1xf32> to vector<16x16xf32>
    %354 = vector.broadcast %352 : vector<1x16xf32> to vector<16x16xf32>
    %355 = arith.addf %353, %354 : vector<16x16xf32>
    %cst_104 = arith.constant 0.000000e+00 : f32
    %356 = vector.broadcast %cst_104 : f32 to vector<16x16xf32>
    %357 = arith.maximumf %355, %356 : vector<16x16xf32>
    %c2 = arith.constant 2 : index
    %358 = memref.load %arg14[%c2] : memref<16xf32, #tpu.memory_space<smem>>
    %359 = vector.broadcast %358 : f32 to vector<16x16xf32>
    %360 = arith.mulf %357, %359 : vector<16x16xf32>
    %361 = arith.addf %350, %360 : vector<16x16xf32>
    %362 = vector.extract_strided_slice %324 {offsets = [0, 3], sizes = [16, 1], strides = [1, 1]} : vector<16x16xf32> to vector<16x1xf32>
    %363 = vector.extract_strided_slice %327 {offsets = [3, 0], sizes = [1, 16], strides = [1, 1]} : vector<16x16xf32> to vector<1x16xf32>
    %364 = vector.broadcast %362 : vector<16x1xf32> to vector<16x16xf32>
    %365 = vector.broadcast %363 : vector<1x16xf32> to vector<16x16xf32>
    %366 = arith.addf %364, %365 : vector<16x16xf32>
    %cst_105 = arith.constant 0.000000e+00 : f32
    %367 = vector.broadcast %cst_105 : f32 to vector<16x16xf32>
    %368 = arith.maximumf %366, %367 : vector<16x16xf32>
    %c3 = arith.constant 3 : index
    %369 = memref.load %arg14[%c3] : memref<16xf32, #tpu.memory_space<smem>>
    %370 = vector.broadcast %369 : f32 to vector<16x16xf32>
    %371 = arith.mulf %368, %370 : vector<16x16xf32>
    %372 = arith.addf %361, %371 : vector<16x16xf32>
    %373 = vector.extract_strided_slice %324 {offsets = [0, 4], sizes = [16, 1], strides = [1, 1]} : vector<16x16xf32> to vector<16x1xf32>
    %374 = vector.extract_strided_slice %327 {offsets = [4, 0], sizes = [1, 16], strides = [1, 1]} : vector<16x16xf32> to vector<1x16xf32>
    %375 = vector.broadcast %373 : vector<16x1xf32> to vector<16x16xf32>
    %376 = vector.broadcast %374 : vector<1x16xf32> to vector<16x16xf32>
    %377 = arith.addf %375, %376 : vector<16x16xf32>
    %cst_106 = arith.constant 0.000000e+00 : f32
    %378 = vector.broadcast %cst_106 : f32 to vector<16x16xf32>
    %379 = arith.maximumf %377, %378 : vector<16x16xf32>
    %c4 = arith.constant 4 : index
    %380 = memref.load %arg14[%c4] : memref<16xf32, #tpu.memory_space<smem>>
    %381 = vector.broadcast %380 : f32 to vector<16x16xf32>
    %382 = arith.mulf %379, %381 : vector<16x16xf32>
    %383 = arith.addf %372, %382 : vector<16x16xf32>
    %384 = vector.extract_strided_slice %324 {offsets = [0, 5], sizes = [16, 1], strides = [1, 1]} : vector<16x16xf32> to vector<16x1xf32>
    %385 = vector.extract_strided_slice %327 {offsets = [5, 0], sizes = [1, 16], strides = [1, 1]} : vector<16x16xf32> to vector<1x16xf32>
    %386 = vector.broadcast %384 : vector<16x1xf32> to vector<16x16xf32>
    %387 = vector.broadcast %385 : vector<1x16xf32> to vector<16x16xf32>
    %388 = arith.addf %386, %387 : vector<16x16xf32>
    %cst_107 = arith.constant 0.000000e+00 : f32
    %389 = vector.broadcast %cst_107 : f32 to vector<16x16xf32>
    %390 = arith.maximumf %388, %389 : vector<16x16xf32>
    %c5 = arith.constant 5 : index
    %391 = memref.load %arg14[%c5] : memref<16xf32, #tpu.memory_space<smem>>
    %392 = vector.broadcast %391 : f32 to vector<16x16xf32>
    %393 = arith.mulf %390, %392 : vector<16x16xf32>
    %394 = arith.addf %383, %393 : vector<16x16xf32>
    %395 = vector.extract_strided_slice %324 {offsets = [0, 6], sizes = [16, 1], strides = [1, 1]} : vector<16x16xf32> to vector<16x1xf32>
    %396 = vector.extract_strided_slice %327 {offsets = [6, 0], sizes = [1, 16], strides = [1, 1]} : vector<16x16xf32> to vector<1x16xf32>
    %397 = vector.broadcast %395 : vector<16x1xf32> to vector<16x16xf32>
    %398 = vector.broadcast %396 : vector<1x16xf32> to vector<16x16xf32>
    %399 = arith.addf %397, %398 : vector<16x16xf32>
    %cst_108 = arith.constant 0.000000e+00 : f32
    %400 = vector.broadcast %cst_108 : f32 to vector<16x16xf32>
    %401 = arith.maximumf %399, %400 : vector<16x16xf32>
    %c6 = arith.constant 6 : index
    %402 = memref.load %arg14[%c6] : memref<16xf32, #tpu.memory_space<smem>>
    %403 = vector.broadcast %402 : f32 to vector<16x16xf32>
    %404 = arith.mulf %401, %403 : vector<16x16xf32>
    %405 = arith.addf %394, %404 : vector<16x16xf32>
    %406 = vector.extract_strided_slice %324 {offsets = [0, 7], sizes = [16, 1], strides = [1, 1]} : vector<16x16xf32> to vector<16x1xf32>
    %407 = vector.extract_strided_slice %327 {offsets = [7, 0], sizes = [1, 16], strides = [1, 1]} : vector<16x16xf32> to vector<1x16xf32>
    %408 = vector.broadcast %406 : vector<16x1xf32> to vector<16x16xf32>
    %409 = vector.broadcast %407 : vector<1x16xf32> to vector<16x16xf32>
    %410 = arith.addf %408, %409 : vector<16x16xf32>
    %cst_109 = arith.constant 0.000000e+00 : f32
    %411 = vector.broadcast %cst_109 : f32 to vector<16x16xf32>
    %412 = arith.maximumf %410, %411 : vector<16x16xf32>
    %c7 = arith.constant 7 : index
    %413 = memref.load %arg14[%c7] : memref<16xf32, #tpu.memory_space<smem>>
    %414 = vector.broadcast %413 : f32 to vector<16x16xf32>
    %415 = arith.mulf %412, %414 : vector<16x16xf32>
    %416 = arith.addf %405, %415 : vector<16x16xf32>
    %417 = vector.extract_strided_slice %324 {offsets = [0, 8], sizes = [16, 1], strides = [1, 1]} : vector<16x16xf32> to vector<16x1xf32>
    %418 = vector.extract_strided_slice %327 {offsets = [8, 0], sizes = [1, 16], strides = [1, 1]} : vector<16x16xf32> to vector<1x16xf32>
    %419 = vector.broadcast %417 : vector<16x1xf32> to vector<16x16xf32>
    %420 = vector.broadcast %418 : vector<1x16xf32> to vector<16x16xf32>
    %421 = arith.addf %419, %420 : vector<16x16xf32>
    %cst_110 = arith.constant 0.000000e+00 : f32
    %422 = vector.broadcast %cst_110 : f32 to vector<16x16xf32>
    %423 = arith.maximumf %421, %422 : vector<16x16xf32>
    %c8 = arith.constant 8 : index
    %424 = memref.load %arg14[%c8] : memref<16xf32, #tpu.memory_space<smem>>
    %425 = vector.broadcast %424 : f32 to vector<16x16xf32>
    %426 = arith.mulf %423, %425 : vector<16x16xf32>
    %427 = arith.addf %416, %426 : vector<16x16xf32>
    %428 = vector.extract_strided_slice %324 {offsets = [0, 9], sizes = [16, 1], strides = [1, 1]} : vector<16x16xf32> to vector<16x1xf32>
    %429 = vector.extract_strided_slice %327 {offsets = [9, 0], sizes = [1, 16], strides = [1, 1]} : vector<16x16xf32> to vector<1x16xf32>
    %430 = vector.broadcast %428 : vector<16x1xf32> to vector<16x16xf32>
    %431 = vector.broadcast %429 : vector<1x16xf32> to vector<16x16xf32>
    %432 = arith.addf %430, %431 : vector<16x16xf32>
    %cst_111 = arith.constant 0.000000e+00 : f32
    %433 = vector.broadcast %cst_111 : f32 to vector<16x16xf32>
    %434 = arith.maximumf %432, %433 : vector<16x16xf32>
    %c9 = arith.constant 9 : index
    %435 = memref.load %arg14[%c9] : memref<16xf32, #tpu.memory_space<smem>>
    %436 = vector.broadcast %435 : f32 to vector<16x16xf32>
    %437 = arith.mulf %434, %436 : vector<16x16xf32>
    %438 = arith.addf %427, %437 : vector<16x16xf32>
    %439 = vector.extract_strided_slice %324 {offsets = [0, 10], sizes = [16, 1], strides = [1, 1]} : vector<16x16xf32> to vector<16x1xf32>
    %440 = vector.extract_strided_slice %327 {offsets = [10, 0], sizes = [1, 16], strides = [1, 1]} : vector<16x16xf32> to vector<1x16xf32>
    %441 = vector.broadcast %439 : vector<16x1xf32> to vector<16x16xf32>
    %442 = vector.broadcast %440 : vector<1x16xf32> to vector<16x16xf32>
    %443 = arith.addf %441, %442 : vector<16x16xf32>
    %cst_112 = arith.constant 0.000000e+00 : f32
    %444 = vector.broadcast %cst_112 : f32 to vector<16x16xf32>
    %445 = arith.maximumf %443, %444 : vector<16x16xf32>
    %c10 = arith.constant 10 : index
    %446 = memref.load %arg14[%c10] : memref<16xf32, #tpu.memory_space<smem>>
    %447 = vector.broadcast %446 : f32 to vector<16x16xf32>
    %448 = arith.mulf %445, %447 : vector<16x16xf32>
    %449 = arith.addf %438, %448 : vector<16x16xf32>
    %450 = vector.extract_strided_slice %324 {offsets = [0, 11], sizes = [16, 1], strides = [1, 1]} : vector<16x16xf32> to vector<16x1xf32>
    %451 = vector.extract_strided_slice %327 {offsets = [11, 0], sizes = [1, 16], strides = [1, 1]} : vector<16x16xf32> to vector<1x16xf32>
    %452 = vector.broadcast %450 : vector<16x1xf32> to vector<16x16xf32>
    %453 = vector.broadcast %451 : vector<1x16xf32> to vector<16x16xf32>
    %454 = arith.addf %452, %453 : vector<16x16xf32>
    %cst_113 = arith.constant 0.000000e+00 : f32
    %455 = vector.broadcast %cst_113 : f32 to vector<16x16xf32>
    %456 = arith.maximumf %454, %455 : vector<16x16xf32>
    %c11 = arith.constant 11 : index
    %457 = memref.load %arg14[%c11] : memref<16xf32, #tpu.memory_space<smem>>
    %458 = vector.broadcast %457 : f32 to vector<16x16xf32>
    %459 = arith.mulf %456, %458 : vector<16x16xf32>
    %460 = arith.addf %449, %459 : vector<16x16xf32>
    %461 = vector.extract_strided_slice %324 {offsets = [0, 12], sizes = [16, 1], strides = [1, 1]} : vector<16x16xf32> to vector<16x1xf32>
    %462 = vector.extract_strided_slice %327 {offsets = [12, 0], sizes = [1, 16], strides = [1, 1]} : vector<16x16xf32> to vector<1x16xf32>
    %463 = vector.broadcast %461 : vector<16x1xf32> to vector<16x16xf32>
    %464 = vector.broadcast %462 : vector<1x16xf32> to vector<16x16xf32>
    %465 = arith.addf %463, %464 : vector<16x16xf32>
    %cst_114 = arith.constant 0.000000e+00 : f32
    %466 = vector.broadcast %cst_114 : f32 to vector<16x16xf32>
    %467 = arith.maximumf %465, %466 : vector<16x16xf32>
    %c12 = arith.constant 12 : index
    %468 = memref.load %arg14[%c12] : memref<16xf32, #tpu.memory_space<smem>>
    %469 = vector.broadcast %468 : f32 to vector<16x16xf32>
    %470 = arith.mulf %467, %469 : vector<16x16xf32>
    %471 = arith.addf %460, %470 : vector<16x16xf32>
    %472 = vector.extract_strided_slice %324 {offsets = [0, 13], sizes = [16, 1], strides = [1, 1]} : vector<16x16xf32> to vector<16x1xf32>
    %473 = vector.extract_strided_slice %327 {offsets = [13, 0], sizes = [1, 16], strides = [1, 1]} : vector<16x16xf32> to vector<1x16xf32>
    %474 = vector.broadcast %472 : vector<16x1xf32> to vector<16x16xf32>
    %475 = vector.broadcast %473 : vector<1x16xf32> to vector<16x16xf32>
    %476 = arith.addf %474, %475 : vector<16x16xf32>
    %cst_115 = arith.constant 0.000000e+00 : f32
    %477 = vector.broadcast %cst_115 : f32 to vector<16x16xf32>
    %478 = arith.maximumf %476, %477 : vector<16x16xf32>
    %c13 = arith.constant 13 : index
    %479 = memref.load %arg14[%c13] : memref<16xf32, #tpu.memory_space<smem>>
    %480 = vector.broadcast %479 : f32 to vector<16x16xf32>
    %481 = arith.mulf %478, %480 : vector<16x16xf32>
    %482 = arith.addf %471, %481 : vector<16x16xf32>
    %483 = vector.extract_strided_slice %324 {offsets = [0, 14], sizes = [16, 1], strides = [1, 1]} : vector<16x16xf32> to vector<16x1xf32>
    %484 = vector.extract_strided_slice %327 {offsets = [14, 0], sizes = [1, 16], strides = [1, 1]} : vector<16x16xf32> to vector<1x16xf32>
    %485 = vector.broadcast %483 : vector<16x1xf32> to vector<16x16xf32>
    %486 = vector.broadcast %484 : vector<1x16xf32> to vector<16x16xf32>
    %487 = arith.addf %485, %486 : vector<16x16xf32>
    %cst_116 = arith.constant 0.000000e+00 : f32
    %488 = vector.broadcast %cst_116 : f32 to vector<16x16xf32>
    %489 = arith.maximumf %487, %488 : vector<16x16xf32>
    %c14 = arith.constant 14 : index
    %490 = memref.load %arg14[%c14] : memref<16xf32, #tpu.memory_space<smem>>
    %491 = vector.broadcast %490 : f32 to vector<16x16xf32>
    %492 = arith.mulf %489, %491 : vector<16x16xf32>
    %493 = arith.addf %482, %492 : vector<16x16xf32>
    %494 = vector.extract_strided_slice %324 {offsets = [0, 15], sizes = [16, 1], strides = [1, 1]} : vector<16x16xf32> to vector<16x1xf32>
    %495 = vector.extract_strided_slice %327 {offsets = [15, 0], sizes = [1, 16], strides = [1, 1]} : vector<16x16xf32> to vector<1x16xf32>
    %496 = vector.broadcast %494 : vector<16x1xf32> to vector<16x16xf32>
    %497 = vector.broadcast %495 : vector<1x16xf32> to vector<16x16xf32>
    %498 = arith.addf %496, %497 : vector<16x16xf32>
    %cst_117 = arith.constant 0.000000e+00 : f32
    %499 = vector.broadcast %cst_117 : f32 to vector<16x16xf32>
    %500 = arith.maximumf %498, %499 : vector<16x16xf32>
    %c15 = arith.constant 15 : index
    %501 = memref.load %arg14[%c15] : memref<16xf32, #tpu.memory_space<smem>>
    %502 = vector.broadcast %501 : f32 to vector<16x16xf32>
    %503 = arith.mulf %500, %502 : vector<16x16xf32>
    %504 = arith.addf %493, %503 : vector<16x16xf32>
    %c0_118 = arith.constant 0 : index
    %505 = memref.load %arg15[%c0_118] : memref<1xf32, #tpu.memory_space<smem>>
    %506 = vector.broadcast %505 : f32 to vector<16x16xf32>
    %507 = arith.addf %504, %506 : vector<16x16xf32>
    %c0_119 = arith.constant 0 : index
    %c0_120 = arith.constant 0 : index
    %508 = vector.load %arg16[%c0_119, %c0_120] : memref<16x16xf32, #tpu.memory_space<vmem>>, vector<16x16xf32>
    tpu.vector_store %arg16[%c0_119, %c0_120], %507 {strides = array<i32>} : memref<16x16xf32, #tpu.memory_space<vmem>>, vector<16x16xf32>,
    return
  }
}

</mosaic_0001>

<llo_original>
// kernel: tpu_custom_call.1
$region0: #{tpu_custom_call.1}
  #allocation0 [shape = 'u32[]', space=smem, size = 0x4, offset = 0x4, fixed_abs, tag = 'smem constant byte address 0x4 - core index']
  #allocation1 [shape = 'u32[144,128]{1,0:T(1,128)}', space=vmem, size = 0x12000, scoped, tag = 'internal scratch']
  #allocation2 [shape = 'f32[1]{0:T(128)S(6)}', space=smem, size = 0x200, scoped, tag = 'scoped memory for tpu_custom_call.1']
  %s0 = inlined_call_operand.vmem [shape: f32[16,8], index: 0, kind: input, shape index: {}]
  %s1 = inlined_call_operand.vmem [shape: f32[16,16], index: 1, kind: input, shape index: {}]
  %s2 = inlined_call_operand.vmem [shape: f32[8,64], index: 2, kind: input, shape index: {}]
  %s3 = inlined_call_operand.vmem [shape: f32[64,8], index: 3, kind: input, shape index: {}]
  %s4 = inlined_call_operand.vmem [shape: f32[1,64], index: 4, kind: input, shape index: {}]
  %s5 = inlined_call_operand.vmem [shape: f32[64,64], index: 5, kind: input, shape index: {}]
  %s6 = inlined_call_operand.vmem [shape: f32[64,8], index: 6, kind: input, shape index: {}]
  %s7 = inlined_call_operand.vmem [shape: f32[1,64], index: 7, kind: input, shape index: {}]
  %s8 = inlined_call_operand.vmem [shape: f32[64,64], index: 8, kind: input, shape index: {}]
  %s9 = inlined_call_operand.vmem [shape: f32[64,8], index: 9, kind: input, shape index: {}]
  %s10 = inlined_call_operand.vmem [shape: f32[1,64], index: 10, kind: input, shape index: {}]
  %s11 = inlined_call_operand.vmem [shape: f32[64,16], index: 11, kind: input, shape index: {}]
  %s12 = inlined_call_operand.vmem [shape: f32[64,16], index: 12, kind: input, shape index: {}]
  %s13 = inlined_call_operand.vmem [shape: f32[1,16], index: 13, kind: input, shape index: {}]
  %s14 = inlined_call_operand.vmem [shape: f32[16], index: 14, kind: input, shape index: {}]
  %s15 = inlined_call_operand.<no memory space> [shape: f32[1], index: 15, kind: input, shape index: {}]
  %s16 = inlined_call_operand.hbm [shape: f32[16,16], index: 16, kind: output, shape index: {}]
  %s17 = sld [smem:[#allocation0]]
  $region78: #{tpu_custom_call.1} parent=0
    _
  %s19 = ssub.s32 1, %s17
  %s20 = scalar_select 0, %s19, %s17
  %21 = sst [smem:[#allocation2]] %s15
  $region1: #{tpu_custom_call.1} parent=0
    #allocation3 [shape = 'u8[512]{0}', space=smem, size = 0x200, scoped, tag = 'input window, operand 14, single buffered']
    #allocation4 [shape = 's32[1]{0}', space=sflag, size = 0x4, scoped, tag = 'scoped memory for tpu_custom_call.1']
    #allocation5 [shape = 's32[1]{0}', space=sflag, size = 0x4, scoped, tag = 'scoped memory for tpu_custom_call.1']
    #allocation6 [shape = 'u8[8192]{0}', space=vmem, size = 0x2000, scoped, tag = 'output window, operand 0, single buffered']
    %22 = vsyncpa [#allocation5], 0
    %23 = vsyncpa [#allocation4], 0
    // Predicated region
    $region2: #{tpu_custom_call.1} parent=1 // pred_check
      _
    $region3: #{tpu_custom_call.1} parent=1 // pred_check_branch
      %25 = sbr.rel (0) target = $region5
    $region4: #{tpu_custom_call.1} parent=1 // pred_region
      _
    $region5: #{tpu_custom_call.1} parent=1 // pred_fallthru
      _
    // Predicated region
    $region6: #{tpu_custom_call.1} parent=1 // pred_check
      _
    $region7: #{tpu_custom_call.1} parent=1 // pred_check_branch
      %27 = sbr.rel (0) target = $region9
    $region8: #{tpu_custom_call.1} parent=1 // pred_region
      _
    $region9: #{tpu_custom_call.1} parent=1 // pred_fallthru
      _
    // Predicated region
    $region10: #{tpu_custom_call.1} parent=1 // pred_check
      _
    $region11: #{tpu_custom_call.1} parent=1 // pred_check_branch
      %29 = sbr.rel (0) target = $region13
    $region12: #{tpu_custom_call.1} parent=1 // pred_region
      _
    $region13: #{tpu_custom_call.1} parent=1 // pred_fallthru
      _
    // Predicated region
    $region14: #{tpu_custom_call.1} parent=1 // pred_check
      _
    $region15: #{tpu_custom_call.1} parent=1 // pred_check_branch
      %31 = sbr.rel (0) target = $region17
    $region16: #{tpu_custom_call.1} parent=1 // pred_region
      _
    $region17: #{tpu_custom_call.1} parent=1 // pred_fallthru
      _
    // Predicated region
    $region18: #{tpu_custom_call.1} parent=1 // pred_check
      _
    $region19: #{tpu_custom_call.1} parent=1 // pred_check_branch
      %33 = sbr.rel (0) target = $region21
    $region20: #{tpu_custom_call.1} parent=1 // pred_region
      _
    $region21: #{tpu_custom_call.1} parent=1 // pred_fallthru
      _
    // Predicated region
    $region22: #{tpu_custom_call.1} parent=1 // pred_check
      _
    $region23: #{tpu_custom_call.1} parent=1 // pred_check_branch
      %35 = sbr.rel (0) target = $region25
    $region24: #{tpu_custom_call.1} parent=1 // pred_region
      _
    $region25: #{tpu_custom_call.1} parent=1 // pred_fallthru
      _
    // Predicated region
    $region26: #{tpu_custom_call.1} parent=1 // pred_check
      _
    $region27: #{tpu_custom_call.1} parent=1 // pred_check_branch
      %37 = sbr.rel (0) target = $region29
    $region28: #{tpu_custom_call.1} parent=1 // pred_region
      _
    $region29: #{tpu_custom_call.1} parent=1 // pred_fallthru
      _
    // Predicated region
    $region30: #{tpu_custom_call.1} parent=1 // pred_check
      _
    $region31: #{tpu_custom_call.1} parent=1 // pred_check_branch
      %39 = sbr.rel (0) target = $region33
    $region32: #{tpu_custom_call.1} parent=1 // pred_region
      _
    $region33: #{tpu_custom_call.1} parent=1 // pred_fallthru
      _
    // Predicated region
    $region34: #{tpu_custom_call.1} parent=1 // pred_check
      _
    $region35: #{tpu_custom_call.1} parent=1 // pred_check_branch
      %41 = sbr.rel (0) target = $region37
    $region36: #{tpu_custom_call.1} parent=1 // pred_region
      _
    $region37: #{tpu_custom_call.1} parent=1 // pred_fallthru
      _
    // Predicated region
    $region38: #{tpu_custom_call.1} parent=1 // pred_check
      _
    $region39: #{tpu_custom_call.1} parent=1 // pred_check_branch
      %43 = sbr.rel (0) target = $region41
    $region40: #{tpu_custom_call.1} parent=1 // pred_region
      _
    $region41: #{tpu_custom_call.1} parent=1 // pred_fallthru
      _
    // Predicated region
    $region42: #{tpu_custom_call.1} parent=1 // pred_check
      _
    $region43: #{tpu_custom_call.1} parent=1 // pred_check_branch
      %45 = sbr.rel (0) target = $region45
    $region44: #{tpu_custom_call.1} parent=1 // pred_region
      _
    $region45: #{tpu_custom_call.1} parent=1 // pred_fallthru
      _
    // Predicated region
    $region46: #{tpu_custom_call.1} parent=1 // pred_check
      _
    $region47: #{tpu_custom_call.1} parent=1 // pred_check_branch
      %47 = sbr.rel (0) target = $region49
    $region48: #{tpu_custom_call.1} parent=1 // pred_region
      _
    $region49: #{tpu_custom_call.1} parent=1 // pred_fallthru
      _
    // Predicated region
    $region50: #{tpu_custom_call.1} parent=1 // pred_check
      _
    $region51: #{tpu_custom_call.1} parent=1 // pred_check_branch
      %49 = sbr.rel (0) target = $region53
    $region52: #{tpu_custom_call.1} parent=1 // pred_region
      _
    $region53: #{tpu_custom_call.1} parent=1 // pred_fallthru
      _
    // Predicated region
    $region54: #{tpu_custom_call.1} parent=1 // pred_check
      _
    $region55: #{tpu_custom_call.1} parent=1 // pred_check_branch
      %51 = sbr.rel (0) target = $region57
    $region56: #{tpu_custom_call.1} parent=1 // pred_region
      _
    $region57: #{tpu_custom_call.1} parent=1 // pred_fallthru
      _
    // Predicated region
    $region58: #{tpu_custom_call.1} parent=1 // pred_check
      _
    $region59: #{tpu_custom_call.1} parent=1 // pred_check_branch
      %53 = sbr.rel (0) target = $region61
    $region60: #{tpu_custom_call.1} parent=1 // pred_region
      %s55 = ssub.s32 16, 16
      %56 = vsyncadd [#allocation5], %s55
      %s58 = sshll.u32 %s14, 4
      %s59 = int_to_ptr.vmem [resolvable:$true] %s58
      %61 = dma.vmem_to_smem %s59, 16, [#allocation3], [#allocation5]
    $region61: #{tpu_custom_call.1} parent=1 // pred_fallthru
      _
    // Predicated region
    $region62: #{tpu_custom_call.1} parent=1 // pred_check
      _
    $region63: #{tpu_custom_call.1} parent=1 // pred_check_branch
      %63 = sbr.rel (0) target = $region65
    $region64: #{tpu_custom_call.1} parent=1 // pred_region
      _
    $region65: #{tpu_custom_call.1} parent=1 // pred_fallthru
      _
    // Predicated region
    $region66: #{tpu_custom_call.1} parent=1 // pred_check
      _
    $region67: #{tpu_custom_call.1} parent=1 // pred_check_branch
      %65 = sbr.rel (0) target = $region69
    $region68: #{tpu_custom_call.1} parent=1 // pred_region
      %66 = dma.done [#allocation5], 16
    $region69: #{tpu_custom_call.1} parent=1 // pred_fallthru
      _
    %67 = sfence
    %v68 = vld [vmem:[%s1] sm:$0xff]
    %v69 = vld [vmem:[%s1 + $0x8] sm:$0xff]
    %v70 = vld [vmem:[%s0] sm:$0xff]
    %v71 = vld [vmem:[%s0 + $0x8] sm:$0xff]
    %v72 = vld [vmem:[%s2] sm:$0xff]
    %vm73 = vcmask 64512
    %v75 = vsel %vm73, %v70, 0
    %v78 = vsel %vm73, %v71, 0
    %80 = vmatprep.subr.mxu0 0.0
    %81 = vmatpush1.msra.mxu0 %v72
    %82 = vmatprep.subr.mxu0 0.0
    %83 = vmatpush1.msra.mxu0 0.0
    %84 = vmatprep.subr.mxu0 0.0
    %85 = vmatpush1.msra.mxu0 0.0
    %86 = vmatprep.subr.mxu0 0.0
    %87 = vmatpush1.msra.mxu0 0.0
    %88 = vmatprep.subr.mxu0 0.0
    %89 = vmatpush1.msra.mxu0 0.0
    %90 = vmatprep.subr.mxu0 0.0
    %91 = vmatpush1.msra.mxu0 0.0
    %92 = vmatprep.subr.mxu0 0.0
    %93 = vmatpush1.msra.mxu0 0.0
    %94 = vmatprep.subr.mxu0 0.0
    %95 = vmatpush1.msra.mxu0 0.0
    %96 = vmatprep.subr.mxu0 0.0
    %97 = vmatpush1.msra.mxu0 0.0
    %98 = vmatprep.subr.mxu0 0.0
    %99 = vmatpush1.msra.mxu0 0.0
    %100 = vmatprep.subr.mxu0 0.0
    %101 = vmatpush1.msra.mxu0 0.0
    %102 = vmatprep.subr.mxu0 0.0
    %103 = vmatpush1.msra.mxu0 0.0
    %104 = vmatprep.subr.mxu0 0.0
    %105 = vmatpush1.msra.mxu0 0.0
    %106 = vmatprep.subr.mxu0 0.0
    %107 = vmatpush1.msra.mxu0 0.0
    %108 = vmatprep.subr.mxu0 0.0
    %109 = vmatpush1.msra.mxu0 0.0
    %110 = vmatprep.subr.mxu0 0.0
    %111 = vmatpush1.msra.mxu0 0.0
    %112 = vmatprep.subr.mxu0 0.0
    %113 = vmatpush1.msra.mxu0 0.0
    %114 = vmatprep.subr.mxu0 0.0
    %115 = vmatpush1.msra.mxu0 0.0
    %116 = vmatprep.subr.mxu0 0.0
    %117 = vmatpush1.msra.mxu0 0.0
    %118 = vmatprep.subr.mxu0 0.0
    %119 = vmatpush1.msra.mxu0 0.0
    %120 = vmatprep.subr.mxu0 0.0
    %121 = vmatpush1.msra.mxu0 0.0
    %122 = vmatprep.subr.mxu0 0.0
    %123 = vmatpush1.msra.mxu0 0.0
    %124 = vmatprep.subr.mxu0 0.0
    %125 = vmatpush1.msra.mxu0 0.0
    %126 = vmatprep.subr.mxu0 0.0
    %127 = vmatpush1.msra.mxu0 0.0
    %128 = vmatprep.subr.mxu0 0.0
    %129 = vmatpush1.msra.mxu0 0.0
    %130 = vmatprep.subr.mxu0 0.0
    %131 = vmatpush1.msra.mxu0 0.0
    %132 = vmatprep.subr.mxu0 0.0
    %133 = vmatpush1.msra.mxu0 0.0
    %134 = vmatprep.subr.mxu0 0.0
    %135 = vmatpush1.msra.mxu0 0.0
    %136 = vmatprep.subr.mxu0 0.0
    %137 = vmatpush1.msra.mxu0 0.0
    %138 = vmatprep.subr.mxu0 0.0
    %139 = vmatpush1.msra.mxu0 0.0
    %140 = vmatprep.subr.mxu0 0.0
    %141 = vmatpush1.msra.mxu0 0.0
    %142 = vmatprep.subr.mxu0 0.0
    %143 = vmatpush1.msra.mxu0 0.0
    %144 = vmatprep.mubr.f32.mxu0 0.0
    %145 = vmatmul.mubr.f32.gmra.mrb[0].mxu0 %v75
    %v146 = vpop.f32.mrb[0].mxu0
    %v147 = vadd.f32 0.0, %v146
    %v148 = vpop.f32.mrb[0].mxu0
    %149 = vmatprep.mubr.f32.mxu0 0.0
    %150 = vmatmul.mubr.f32.gmra.mrb[0].mxu0 %v78
    %v151 = vpop.f32.mrb[0].mxu0
    %v152 = vadd.f32 0.0, %v151
    %v153 = vpop.f32.mrb[0].mxu0
    %154 = vdwg.mxu0
    %v155 = vld [vmem:[%s3] sm:$0xff]
    %v156 = vld [vmem:[%s3 + $0x8] sm:$0xff]
    %v157 = vld [vmem:[%s3 + $0x10] sm:$0xff]
    %v158 = vld [vmem:[%s3 + $0x18] sm:$0xff]
    %v159 = vld [vmem:[%s3 + $0x20] sm:$0xff]
    %v160 = vld [vmem:[%s3 + $0x28] sm:$0xff]
    %v161 = vld [vmem:[%s3 + $0x30] sm:$0xff]
    %v162 = vld [vmem:[%s3 + $0x38] sm:$0xff]
    %vm163 = vcmask 523264
    %v165 = vsel %vm163, %v147, 0
    %v168 = vsel %vm163, %v152, 0
    %170 = vmatprep.subr.mxu0 0.0
    %171 = vmatpush1.msra.mxu0 %v155
    %172 = vmatprep.subr.mxu0 0.0
    %173 = vmatpush1.msra.mxu0 %v156
    %174 = vmatprep.subr.mxu0 0.0
    %175 = vmatpush1.msra.mxu0 %v157
    %176 = vmatprep.subr.mxu0 0.0
    %177 = vmatpush1.msra.mxu0 %v158
    %178 = vmatprep.subr.mxu0 0.0
    %179 = vmatpush1.msra.mxu0 %v159
    %180 = vmatprep.subr.mxu0 0.0
    %181 = vmatpush1.msra.mxu0 %v160
    %182 = vmatprep.subr.mxu0 0.0
    %183 = vmatpush1.msra.mxu0 %v161
    %184 = vmatprep.subr.mxu0 0.0
    %185 = vmatpush1.msra.mxu0 %v162
    %186 = vmatprep.subr.mxu0 0.0
    %187 = vmatpush1.msra.mxu0 0.0
    %188 = vmatprep.subr.mxu0 0.0
    %189 = vmatpush1.msra.mxu0 0.0
    %190 = vmatprep.subr.mxu0 0.0
    %191 = vmatpush1.msra.mxu0 0.0
    %192 = vmatprep.subr.mxu0 0.0
    %193 = vmatpush1.msra.mxu0 0.0
    %194 = vmatprep.subr.mxu0 0.0
    %195 = vmatpush1.msra.mxu0 0.0
    %196 = vmatprep.subr.mxu0 0.0
    %197 = vmatpush1.msra.mxu0 0.0
    %198 = vmatprep.subr.mxu0 0.0
    %199 = vmatpush1.msra.mxu0 0.0
    %200 = vmatprep.subr.mxu0 0.0
    %201 = vmatpush1.msra.mxu0 0.0
    %202 = vmatprep.subr.mxu0 0.0
    %203 = vmatpush1.msra.mxu0 0.0
    %204 = vmatprep.subr.mxu0 0.0
    %205 = vmatpush1.msra.mxu0 0.0
    %206 = vmatprep.subr.mxu0 0.0
    %207 = vmatpush1.msra.mxu0 0.0
    %208 = vmatprep.subr.mxu0 0.0
    %209 = vmatpush1.msra.mxu0 0.0
    %210 = vmatprep.subr.mxu0 0.0
    %211 = vmatpush1.msra.mxu0 0.0
    %212 = vmatprep.subr.mxu0 0.0
    %213 = vmatpush1.msra.mxu0 0.0
    %214 = vmatprep.subr.mxu0 0.0
    %215 = vmatpush1.msra.mxu0 0.0
    %216 = vmatprep.subr.mxu0 0.0
    %217 = vmatpush1.msra.mxu0 0.0
    %218 = vmatprep.subr.mxu0 0.0
    %219 = vmatpush1.msra.mxu0 0.0
    %220 = vmatprep.subr.mxu0 0.0
    %221 = vmatpush1.msra.mxu0 0.0
    %222 = vmatprep.subr.mxu0 0.0
    %223 = vmatpush1.msra.mxu0 0.0
    %224 = vmatprep.subr.mxu0 0.0
    %225 = vmatpush1.msra.mxu0 0.0
    %226 = vmatprep.subr.mxu0 0.0
    %227 = vmatpush1.msra.mxu0 0.0
    %228 = vmatprep.subr.mxu0 0.0
    %229 = vmatpush1.msra.mxu0 0.0
    %230 = vmatprep.subr.mxu0 0.0
    %231 = vmatpush1.msra.mxu0 0.0
    %232 = vmatprep.subr.mxu0 0.0
    %233 = vmatpush1.msra.mxu0 0.0
    %234 = vmatprep.mubr.f32.mxu0 0.0
    %235 = vmatmul.mubr.f32.gmra.mrb[0].mxu0 %v165
    %v236 = vpop.f32.mrb[0].mxu0
    %v237 = vadd.f32 0.0, %v236
    %v238 = vpop.f32.mrb[0].mxu0
    %239 = vmatprep.mubr.f32.mxu0 0.0
    %240 = vmatmul.mubr.f32.gmra.mrb[0].mxu0 %v168
    %v241 = vpop.f32.mrb[0].mxu0
    %v242 = vadd.f32 0.0, %v241
    %v243 = vpop.f32.mrb[0].mxu0
    %244 = vdwg.mxu0
    %245 = vxpose.xlu0.b32.start [1/16] %v237, 128
    %246 = vxpose.xlu0.b32.cont [2/16] %v242, 128
    %247 = vxpose.xlu0.b32.cont [3/16] 0.0, 128
    %248 = vxpose.xlu0.b32.cont [4/16] 0.0, 128
    %249 = vxpose.xlu0.b32.cont [5/16] 0.0, 128
    %250 = vxpose.xlu0.b32.cont [6/16] 0.0, 128
    %251 = vxpose.xlu0.b32.cont [7/16] 0.0, 128
    %252 = vxpose.xlu0.b32.cont [8/16] 0.0, 128
    %253 = vxpose.xlu0.b32.cont [9/16] 0.0, 128
    %254 = vxpose.xlu0.b32.cont [10/16] 0.0, 128
    %255 = vxpose.xlu0.b32.cont [11/16] 0.0, 128
    %256 = vxpose.xlu0.b32.cont [12/16] 0.0, 128
    %257 = vxpose.xlu0.b32.cont [13/16] 0.0, 128
    %258 = vxpose.xlu0.b32.cont [14/16] 0.0, 128
    %259 = vxpose.xlu0.b32.cont [15/16] 0.0, 128
    %260 = vxpose.xlu0.b32.end [16/16] 0.0, 128
    %v261 = vpop.trf.xlu0
    %v262 = vpop.trf.xlu0
    %v263 = vpop.trf.xlu0
    %v264 = vpop.trf.xlu0
    %v265 = vpop.trf.xlu0
    %v266 = vpop.trf.xlu0
    %v267 = vpop.trf.xlu0
    %v268 = vpop.trf.xlu0
    %v269 = vpop.trf.xlu0
    %v270 = vpop.trf.xlu0
    %v271 = vpop.trf.xlu0
    %v272 = vpop.trf.xlu0
    %v273 = vpop.trf.xlu0
    %v274 = vpop.trf.xlu0
    %v275 = vpop.trf.xlu0
    %v276 = vpop.trf.xlu0
    %278 = vset.pattern.permute.xlu0 4
    %279 = vperm.xlu0 %278, %v237
    %v280 = vpop.permute.xlu0 %279
    %283 = vset.pattern.permute.xlu0 4
    %284 = vperm.xlu0 %283, %v242
    %v285 = vpop.permute.xlu0 %284
    %v287 = vlaneseq
    %v288 = vshrl.u32 %v287, 7
    %v289 = vsub.s32 0, %v288
    %v290 = vrot.slane %v261, %v289
    %v291 = vadd.f32 %v280, %v290
    %v292 = vadd.f32 %v285, %v290
    %vm293 = vcmp.gt.f32.partialorder %v291, 0.0
    %vm294 = vcmp.gt.f32.partialorder %v292, 0.0
    %v295 = vmul.f32 %v291, 0.2
    %v296 = vmul.f32 %v292, 0.2
    %v297 = vsel %vm293, %v291, %v295
    %v298 = vsel %vm294, %v292, %v296
    %v299 = vadd.f32 %v297, %v68
    %v300 = vadd.f32 %v298, %v69
    %vm301 = vcmask 130048
    %v302 = vsel %vm301, %v299, -inf
    %303 = vmax.xlane.f32.xlu0 %v302
    %v304 = vpop.xlane.xlu0 %303
    %v305 = vsel %vm301, %v300, -inf
    %306 = vmax.xlane.f32.xlu0 %v305
    %v307 = vpop.xlane.xlu0 %306
    %v308 = vsub.f32 %v299, %v304
    %v309 = vsub.f32 %v300, %v307
    %v310 = vmul.f32 %v308, 1.442695
    %v311 = vpow.pop %v310
    %v312 = vmul.f32 %v309, 1.442695
    %v313 = vpow.pop %v312
    %v314 = vsel %vm301, %v311, 0.0
    %315 = vadd.xlane.f32.xlu0 %v314
    %v316 = vpop.xlane.xlu0 %315
    %v317 = vsel %vm301, %v313, 0.0
    %318 = vadd.xlane.f32.xlu0 %v317
    %v319 = vpop.xlane.xlu0 %318
    %v320 = vrcp.pop %v316
    %v321 = vrcp.pop %v319
    %v322 = vmul.f32 %v311, %v320
    %v323 = vmul.f32 %v313, %v321
    %v325 = vsel %vm301, %v322, 0
    %v328 = vsel %vm301, %v323, 0
    %330 = vmatprep.subr.mxu0 0.0
    %331 = vmatpush1.msra.mxu0 %v147
    %332 = vmatprep.subr.mxu0 0.0
    %333 = vmatpush1.msra.mxu0 %v152
    %334 = vmatprep.subr.mxu0 0.0
    %335 = vmatpush1.msra.mxu0 0.0
    %336 = vmatprep.subr.mxu0 0.0
    %337 = vmatpush1.msra.mxu0 0.0
    %338 = vmatprep.subr.mxu0 0.0
    %339 = vmatpush1.msra.mxu0 0.0
    %340 = vmatprep.subr.mxu0 0.0
    %341 = vmatpush1.msra.mxu0 0.0
    %342 = vmatprep.subr.mxu0 0.0
    %343 = vmatpush1.msra.mxu0 0.0
    %344 = vmatprep.subr.mxu0 0.0
    %345 = vmatpush1.msra.mxu0 0.0
    %346 = vmatprep.subr.mxu0 0.0
    %347 = vmatpush1.msra.mxu0 0.0
    %348 = vmatprep.subr.mxu0 0.0
    %349 = vmatpush1.msra.mxu0 0.0
    %350 = vmatprep.subr.mxu0 0.0
    %351 = vmatpush1.msra.mxu0 0.0
    %352 = vmatprep.subr.mxu0 0.0
    %353 = vmatpush1.msra.mxu0 0.0
    %354 = vmatprep.subr.mxu0 0.0
    %355 = vmatpush1.msra.mxu0 0.0
    %356 = vmatprep.subr.mxu0 0.0
    %357 = vmatpush1.msra.mxu0 0.0
    %358 = vmatprep.subr.mxu0 0.0
    %359 = vmatpush1.msra.mxu0 0.0
    %360 = vmatprep.subr.mxu0 0.0
    %361 = vmatpush1.msra.mxu0 0.0
    %362 = vmatprep.subr.mxu0 0.0
    %363 = vmatpush1.msra.mxu0 0.0
    %364 = vmatprep.subr.mxu0 0.0
    %365 = vmatpush1.msra.mxu0 0.0
    %366 = vmatprep.subr.mxu0 0.0
    %367 = vmatpush1.msra.mxu0 0.0
    %368 = vmatprep.subr.mxu0 0.0
    %369 = vmatpush1.msra.mxu0 0.0
    %370 = vmatprep.subr.mxu0 0.0
    %371 = vmatpush1.msra.mxu0 0.0
    %372 = vmatprep.subr.mxu0 0.0
    %373 = vmatpush1.msra.mxu0 0.0
    %374 = vmatprep.subr.mxu0 0.0
    %375 = vmatpush1.msra.mxu0 0.0
    %376 = vmatprep.subr.mxu0 0.0
    %377 = vmatpush1.msra.mxu0 0.0
    %378 = vmatprep.subr.mxu0 0.0
    %379 = vmatpush1.msra.mxu0 0.0
    %380 = vmatprep.subr.mxu0 0.0
    %381 = vmatpush1.msra.mxu0 0.0
    %382 = vmatprep.subr.mxu0 0.0
    %383 = vmatpush1.msra.mxu0 0.0
    %384 = vmatprep.subr.mxu0 0.0
    %385 = vmatpush1.msra.mxu0 0.0
    %386 = vmatprep.subr.mxu0 0.0
    %387 = vmatpush1.msra.mxu0 0.0
    %388 = vmatprep.subr.mxu0 0.0
    %389 = vmatpush1.msra.mxu0 0.0
    %390 = vmatprep.subr.mxu0 0.0
    %391 = vmatpush1.msra.mxu0 0.0
    %392 = vmatprep.subr.mxu0 0.0
    %393 = vmatpush1.msra.mxu0 0.0
    %394 = vmatprep.mubr.f32.mxu0 0.0
    %395 = vmatmul.mubr.f32.gmra.mrb[0].mxu0 %v325
    %v396 = vpop.f32.mrb[0].mxu0
    %v397 = vadd.f32 0.0, %v396
    %v398 = vpop.f32.mrb[0].mxu0
    %399 = vmatprep.mubr.f32.mxu0 0.0
    %400 = vmatmul.mubr.f32.gmra.mrb[0].mxu0 %v328
    %v401 = vpop.f32.mrb[0].mxu0
    %v402 = vadd.f32 0.0, %v401
    %v403 = vpop.f32.mrb[0].mxu0
    %404 = vdwg.mxu0
    %405 = vset.pattern.permute.xlu0 5
    %406 = vperm.xlu0 %405, %v237
    %v407 = vpop.permute.xlu0 %406
    %409 = vset.pattern.permute.xlu0 5
    %410 = vperm.xlu0 %409, %v242
    %v411 = vpop.permute.xlu0 %410
    %v413 = vlaneseq
    %v414 = vshrl.u32 %v413, 7
    %v415 = vsub.s32 1, %v414
    %v416 = vrot.slane %v261, %v415
    %v417 = vadd.f32 %v407, %v416
    %v418 = vadd.f32 %v411, %v416
    %vm419 = vcmp.gt.f32.partialorder %v417, 0.0
    %vm420 = vcmp.gt.f32.partialorder %v418, 0.0
    %v421 = vmul.f32 %v417, 0.2
    %v422 = vmul.f32 %v418, 0.2
    %v423 = vsel %vm419, %v417, %v421
    %v424 = vsel %vm420, %v418, %v422
    %v425 = vadd.f32 %v423, %v68
    %v426 = vadd.f32 %v424, %v69
    %v427 = vsel %vm301, %v425, -inf
    %428 = vmax.xlane.f32.xlu0 %v427
    %v429 = vpop.xlane.xlu0 %428
    %v430 = vsel %vm301, %v426, -inf
    %431 = vmax.xlane.f32.xlu0 %v430
    %v432 = vpop.xlane.xlu0 %431
    %v433 = vsub.f32 %v425, %v429
    %v434 = vsub.f32 %v426, %v432
    %v435 = vmul.f32 %v433, 1.442695
    %v436 = vpow.pop %v435
    %v437 = vmul.f32 %v434, 1.442695
    %v438 = vpow.pop %v437
    %v439 = vsel %vm301, %v436, 0.0
    %440 = vadd.xlane.f32.xlu0 %v439
    %v441 = vpop.xlane.xlu0 %440
    %v442 = vsel %vm301, %v438, 0.0
    %443 = vadd.xlane.f32.xlu0 %v442
    %v444 = vpop.xlane.xlu0 %443
    %v445 = vrcp.pop %v441
    %v446 = vrcp.pop %v444
    %v447 = vmul.f32 %v436, %v445
    %v448 = vmul.f32 %v438, %v446
    %449 = vrot.lane.b32.xlu0 %v147, 112
    %v450 = vpop.permute.xlu0 %449
    %451 = vrot.lane.b32.xlu0 %v152, 112
    %v452 = vpop.permute.xlu0 %451
    %v456 = vsel %vm301, %v447, 0
    %v459 = vsel %vm301, %v448, 0
    %461 = vmatprep.subr.mxu0 0.0
    %462 = vmatpush1.msra.mxu0 %v450
    %463 = vmatprep.subr.mxu0 0.0
    %464 = vmatpush1.msra.mxu0 %v452
    %465 = vmatprep.subr.mxu0 0.0
    %466 = vmatpush1.msra.mxu0 0.0
    %467 = vmatprep.subr.mxu0 0.0
    %468 = vmatpush1.msra.mxu0 0.0
    %469 = vmatprep.subr.mxu0 0.0
    %470 = vmatpush1.msra.mxu0 0.0
    %471 = vmatprep.subr.mxu0 0.0
    %472 = vmatpush1.msra.mxu0 0.0
    %473 = vmatprep.subr.mxu0 0.0
    %474 = vmatpush1.msra.mxu0 0.0
    %475 = vmatprep.subr.mxu0 0.0
    %476 = vmatpush1.msra.mxu0 0.0
    %477 = vmatprep.subr.mxu0 0.0
    %478 = vmatpush1.msra.mxu0 0.0
    %479 = vmatprep.subr.mxu0 0.0
    %480 = vmatpush1.msra.mxu0 0.0
    %481 = vmatprep.subr.mxu0 0.0
    %482 = vmatpush1.msra.mxu0 0.0
    %483 = vmatprep.subr.mxu0 0.0
    %484 = vmatpush1.msra.mxu0 0.0
    %485 = vmatprep.subr.mxu0 0.0
    %486 = vmatpush1.msra.mxu0 0.0
    %487 = vmatprep.subr.mxu0 0.0
    %488 = vmatpush1.msra.mxu0 0.0
    %489 = vmatprep.subr.mxu0 0.0
    %490 = vmatpush1.msra.mxu0 0.0
    %491 = vmatprep.subr.mxu0 0.0
    %492 = vmatpush1.msra.mxu0 0.0
    %493 = vmatprep.subr.mxu0 0.0
    %494 = vmatpush1.msra.mxu0 0.0
    %495 = vmatprep.subr.mxu0 0.0
    %496 = vmatpush1.msra.mxu0 0.0
    %497 = vmatprep.subr.mxu0 0.0
    %498 = vmatpush1.msra.mxu0 0.0
    %499 = vmatprep.subr.mxu0 0.0
    %500 = vmatpush1.msra.mxu0 0.0
    %501 = vmatprep.subr.mxu0 0.0
    %502 = vmatpush1.msra.mxu0 0.0
    %503 = vmatprep.subr.mxu0 0.0
    %504 = vmatpush1.msra.mxu0 0.0
    %505 = vmatprep.subr.mxu0 0.0
    %506 = vmatpush1.msra.mxu0 0.0
    %507 = vmatprep.subr.mxu0 0.0
    %508 = vmatpush1.msra.mxu0 0.0
    %509 = vmatprep.subr.mxu0 0.0
    %510 = vmatpush1.msra.mxu0 0.0
    %511 = vmatprep.subr.mxu0 0.0
    %512 = vmatpush1.msra.mxu0 0.0
    %513 = vmatprep.subr.mxu0 0.0
    %514 = vmatpush1.msra.mxu0 0.0
    %515 = vmatprep.subr.mxu0 0.0
    %516 = vmatpush1.msra.mxu0 0.0
    %517 = vmatprep.subr.mxu0 0.0
    %518 = vmatpush1.msra.mxu0 0.0
    %519 = vmatprep.subr.mxu0 0.0
    %520 = vmatpush1.msra.mxu0 0.0
    %521 = vmatprep.subr.mxu0 0.0
    %522 = vmatpush1.msra.mxu0 0.0
    %523 = vmatprep.subr.mxu0 0.0
    %524 = vmatpush1.msra.mxu0 0.0
    %525 = vmatprep.mubr.f32.mxu0 0.0
    %526 = vmatmul.mubr.f32.gmra.mrb[0].mxu0 %v456
    %v527 = vpop.f32.mrb[0].mxu0
    %v528 = vadd.f32 0.0, %v527
    %v529 = vpop.f32.mrb[0].mxu0
    %530 = vmatprep.mubr.f32.mxu0 0.0
    %531 = vmatmul.mubr.f32.gmra.mrb[0].mxu0 %v459
    %v532 = vpop.f32.mrb[0].mxu0
    %v533 = vadd.f32 0.0, %v532
    %v534 = vpop.f32.mrb[0].mxu0
    %535 = vdwg.mxu0
    %536 = vset.pattern.permute.xlu0 6
    %537 = vperm.xlu0 %536, %v237
    %v538 = vpop.permute.xlu0 %537
    %540 = vset.pattern.permute.xlu0 6
    %541 = vperm.xlu0 %540, %v242
    %v542 = vpop.permute.xlu0 %541
    %v544 = vlaneseq
    %v545 = vshrl.u32 %v544, 7
    %v546 = vsub.s32 2, %v545
    %v547 = vrot.slane %v261, %v546
    %v548 = vadd.f32 %v538, %v547
    %v549 = vadd.f32 %v542, %v547
    %vm550 = vcmp.gt.f32.partialorder %v548, 0.0
    %vm551 = vcmp.gt.f32.partialorder %v549, 0.0
    %v552 = vmul.f32 %v548, 0.2
    %v553 = vmul.f32 %v549, 0.2
    %v554 = vsel %vm550, %v548, %v552
    %v555 = vsel %vm551, %v549, %v553
    %v556 = vadd.f32 %v554, %v68
    %v557 = vadd.f32 %v555, %v69
    %v558 = vsel %vm301, %v556, -inf
    %559 = vmax.xlane.f32.xlu0 %v558
    %v560 = vpop.xlane.xlu0 %559
    %v561 = vsel %vm301, %v557, -inf
    %562 = vmax.xlane.f32.xlu0 %v561
    %v563 = vpop.xlane.xlu0 %562
    %v564 = vsub.f32 %v556, %v560
    %v565 = vsub.f32 %v557, %v563
    %v566 = vmul.f32 %v564, 1.442695
    %v567 = vpow.pop %v566
    %v568 = vmul.f32 %v565, 1.442695
    %v569 = vpow.pop %v568
    %v570 = vsel %vm301, %v567, 0.0
    %571 = vadd.xlane.f32.xlu0 %v570
    %v572 = vpop.xlane.xlu0 %571
    %v573 = vsel %vm301, %v569, 0.0
    %574 = vadd.xlane.f32.xlu0 %v573
    %v575 = vpop.xlane.xlu0 %574
    %v576 = vrcp.pop %v572
    %v577 = vrcp.pop %v575
    %v578 = vmul.f32 %v567, %v576
    %v579 = vmul.f32 %v569, %v577
    %580 = vrot.lane.b32.xlu0 %v147, 96
    %v581 = vpop.permute.xlu0 %580
    %582 = vrot.lane.b32.xlu0 %v152, 96
    %v583 = vpop.permute.xlu0 %582
    %v587 = vsel %vm301, %v578, 0
    %v590 = vsel %vm301, %v579, 0
    %592 = vmatprep.subr.mxu0 0.0
    %593 = vmatpush1.msra.mxu0 %v581
    %594 = vmatprep.subr.mxu0 0.0
    %595 = vmatpush1.msra.mxu0 %v583
    %596 = vmatprep.subr.mxu0 0.0
    %597 = vmatpush1.msra.mxu0 0.0
    %598 = vmatprep.subr.mxu0 0.0
    %599 = vmatpush1.msra.mxu0 0.0
    %600 = vmatprep.subr.mxu0 0.0
    %601 = vmatpush1.msra.mxu0 0.0
    %602 = vmatprep.subr.mxu0 0.0
    %603 = vmatpush1.msra.mxu0 0.0
    %604 = vmatprep.subr.mxu0 0.0
    %605 = vmatpush1.msra.mxu0 0.0
    %606 = vmatprep.subr.mxu0 0.0
    %607 = vmatpush1.msra.mxu0 0.0
    %608 = vmatprep.subr.mxu0 0.0
    %609 = vmatpush1.msra.mxu0 0.0
    %610 = vmatprep.subr.mxu0 0.0
    %611 = vmatpush1.msra.mxu0 0.0
    %612 = vmatprep.subr.mxu0 0.0
    %613 = vmatpush1.msra.mxu0 0.0
    %614 = vmatprep.subr.mxu0 0.0
    %615 = vmatpush1.msra.mxu0 0.0
    %616 = vmatprep.subr.mxu0 0.0
    %617 = vmatpush1.msra.mxu0 0.0
    %618 = vmatprep.subr.mxu0 0.0
    %619 = vmatpush1.msra.mxu0 0.0
    %620 = vmatprep.subr.mxu0 0.0
    %621 = vmatpush1.msra.mxu0 0.0
    %622 = vmatprep.subr.mxu0 0.0
    %623 = vmatpush1.msra.mxu0 0.0
    %624 = vmatprep.subr.mxu0 0.0
    %625 = vmatpush1.msra.mxu0 0.0
    %626 = vmatprep.subr.mxu0 0.0
    %627 = vmatpush1.msra.mxu0 0.0
    %628 = vmatprep.subr.mxu0 0.0
    %629 = vmatpush1.msra.mxu0 0.0
    %630 = vmatprep.subr.mxu0 0.0
    %631 = vmatpush1.msra.mxu0 0.0
    %632 = vmatprep.subr.mxu0 0.0
    %633 = vmatpush1.msra.mxu0 0.0
    %634 = vmatprep.subr.mxu0 0.0
    %635 = vmatpush1.msra.mxu0 0.0
    %636 = vmatprep.subr.mxu0 0.0
    %637 = vmatpush1.msra.mxu0 0.0
    %638 = vmatprep.subr.mxu0 0.0
    %639 = vmatpush1.msra.mxu0 0.0
    %640 = vmatprep.subr.mxu0 0.0
    %641 = vmatpush1.msra.mxu0 0.0
    %642 = vmatprep.subr.mxu0 0.0
    %643 = vmatpush1.msra.mxu0 0.0
    %644 = vmatprep.subr.mxu0 0.0
    %645 = vmatpush1.msra.mxu0 0.0
    %646 = vmatprep.subr.mxu0 0.0
    %647 = vmatpush1.msra.mxu0 0.0
    %648 = vmatprep.subr.mxu0 0.0
    %649 = vmatpush1.msra.mxu0 0.0
    %650 = vmatprep.subr.mxu0 0.0
    %651 = vmatpush1.msra.mxu0 0.0
    %652 = vmatprep.subr.mxu0 0.0
    %653 = vmatpush1.msra.mxu0 0.0
    %654 = vmatprep.subr.mxu0 0.0
    %655 = vmatpush1.msra.mxu0 0.0
    %656 = vmatprep.mubr.f32.mxu0 0.0
    %657 = vmatmul.mubr.f32.gmra.mrb[0].mxu0 %v587
    %v658 = vpop.f32.mrb[0].mxu0
    %v659 = vadd.f32 0.0, %v658
    %v660 = vpop.f32.mrb[0].mxu0
    %661 = vmatprep.mubr.f32.mxu0 0.0
    %662 = vmatmul.mubr.f32.gmra.mrb[0].mxu0 %v590
    %v663 = vpop.f32.mrb[0].mxu0
    %v664 = vadd.f32 0.0, %v663
    %v665 = vpop.f32.mrb[0].mxu0
    %666 = vdwg.mxu0
    %667 = vset.pattern.permute.xlu0 7
    %668 = vperm.xlu0 %667, %v237
    %v669 = vpop.permute.xlu0 %668
    %671 = vset.pattern.permute.xlu0 7
    %672 = vperm.xlu0 %671, %v242
    %v673 = vpop.permute.xlu0 %672
    %v675 = vlaneseq
    %v676 = vshrl.u32 %v675, 7
    %v677 = vsub.s32 3, %v676
    %v678 = vrot.slane %v261, %v677
    %v679 = vadd.f32 %v669, %v678
    %v680 = vadd.f32 %v673, %v678
    %vm681 = vcmp.gt.f32.partialorder %v679, 0.0
    %vm682 = vcmp.gt.f32.partialorder %v680, 0.0
    %v683 = vmul.f32 %v679, 0.2
    %v684 = vmul.f32 %v680, 0.2
    %v685 = vsel %vm681, %v679, %v683
    %v686 = vsel %vm682, %v680, %v684
    %v687 = vadd.f32 %v685, %v68
    %v688 = vadd.f32 %v686, %v69
    %v689 = vsel %vm301, %v687, -inf
    %690 = vmax.xlane.f32.xlu0 %v689
    %v691 = vpop.xlane.xlu0 %690
    %v692 = vsel %vm301, %v688, -inf
    %693 = vmax.xlane.f32.xlu0 %v692
    %v694 = vpop.xlane.xlu0 %693
    %v695 = vsub.f32 %v687, %v691
    %v696 = vsub.f32 %v688, %v694
    %v697 = vmul.f32 %v695, 1.442695
    %v698 = vpow.pop %v697
    %v699 = vmul.f32 %v696, 1.442695
    %v700 = vpow.pop %v699
    %v701 = vsel %vm301, %v698, 0.0
    %702 = vadd.xlane.f32.xlu0 %v701
    %v703 = vpop.xlane.xlu0 %702
    %v704 = vsel %vm301, %v700, 0.0
    %705 = vadd.xlane.f32.xlu0 %v704
    %v706 = vpop.xlane.xlu0 %705
    %v707 = vrcp.pop %v703
    %v708 = vrcp.pop %v706
    %v709 = vmul.f32 %v698, %v707
    %v710 = vmul.f32 %v700, %v708
    %711 = vrot.lane.b32.xlu0 %v147, 80
    %v712 = vpop.permute.xlu0 %711
    %713 = vrot.lane.b32.xlu0 %v152, 80
    %v714 = vpop.permute.xlu0 %713
    %v718 = vsel %vm301, %v709, 0
    %v721 = vsel %vm301, %v710, 0
    %723 = vmatprep.subr.mxu0 0.0
    %724 = vmatpush1.msra.mxu0 %v712
    %725 = vmatprep.subr.mxu0 0.0
    %726 = vmatpush1.msra.mxu0 %v714
    %727 = vmatprep.subr.mxu0 0.0
    %728 = vmatpush1.msra.mxu0 0.0
    %729 = vmatprep.subr.mxu0 0.0
    %730 = vmatpush1.msra.mxu0 0.0
    %731 = vmatprep.subr.mxu0 0.0
    %732 = vmatpush1.msra.mxu0 0.0
    %733 = vmatprep.subr.mxu0 0.0
    %734 = vmatpush1.msra.mxu0 0.0
    %735 = vmatprep.subr.mxu0 0.0
    %736 = vmatpush1.msra.mxu0 0.0
    %737 = vmatprep.subr.mxu0 0.0
    %738 = vmatpush1.msra.mxu0 0.0
    %739 = vmatprep.subr.mxu0 0.0
    %740 = vmatpush1.msra.mxu0 0.0
    %741 = vmatprep.subr.mxu0 0.0
    %742 = vmatpush1.msra.mxu0 0.0
    %743 = vmatprep.subr.mxu0 0.0
    %744 = vmatpush1.msra.mxu0 0.0
    %745 = vmatprep.subr.mxu0 0.0
    %746 = vmatpush1.msra.mxu0 0.0
    %747 = vmatprep.subr.mxu0 0.0
    %748 = vmatpush1.msra.mxu0 0.0
    %749 = vmatprep.subr.mxu0 0.0
    %750 = vmatpush1.msra.mxu0 0.0
    %751 = vmatprep.subr.mxu0 0.0
    %752 = vmatpush1.msra.mxu0 0.0
    %753 = vmatprep.subr.mxu0 0.0
    %754 = vmatpush1.msra.mxu0 0.0
    %755 = vmatprep.subr.mxu0 0.0
    %756 = vmatpush1.msra.mxu0 0.0
    %757 = vmatprep.subr.mxu0 0.0
    %758 = vmatpush1.msra.mxu0 0.0
    %759 = vmatprep.subr.mxu0 0.0
    %760 = vmatpush1.msra.mxu0 0.0
    %761 = vmatprep.subr.mxu0 0.0
    %762 = vmatpush1.msra.mxu0 0.0
    %763 = vmatprep.subr.mxu0 0.0
    %764 = vmatpush1.msra.mxu0 0.0
    %765 = vmatprep.subr.mxu0 0.0
    %766 = vmatpush1.msra.mxu0 0.0
    %767 = vmatprep.subr.mxu0 0.0
    %768 = vmatpush1.msra.mxu0 0.0
    %769 = vmatprep.subr.mxu0 0.0
    %770 = vmatpush1.msra.mxu0 0.0
    %771 = vmatprep.subr.mxu0 0.0
    %772 = vmatpush1.msra.mxu0 0.0
    %773 = vmatprep.subr.mxu0 0.0
    %774 = vmatpush1.msra.mxu0 0.0
    %775 = vmatprep.subr.mxu0 0.0
    %776 = vmatpush1.msra.mxu0 0.0
    %777 = vmatprep.subr.mxu0 0.0
    %778 = vmatpush1.msra.mxu0 0.0
    %779 = vmatprep.subr.mxu0 0.0
    %780 = vmatpush1.msra.mxu0 0.0
    %781 = vmatprep.subr.mxu0 0.0
    %782 = vmatpush1.msra.mxu0 0.0
    %783 = vmatprep.subr.mxu0 0.0
    %784 = vmatpush1.msra.mxu0 0.0
    %785 = vmatprep.subr.mxu0 0.0
    %786 = vmatpush1.msra.mxu0 0.0
    %787 = vmatprep.mubr.f32.mxu0 0.0
    %788 = vmatmul.mubr.f32.gmra.mrb[0].mxu0 %v718
    %v789 = vpop.f32.mrb[0].mxu0
    %v790 = vadd.f32 0.0, %v789
    %v791 = vpop.f32.mrb[0].mxu0
    %792 = vmatprep.mubr.f32.mxu0 0.0
    %793 = vmatmul.mubr.f32.gmra.mrb[0].mxu0 %v721
    %v794 = vpop.f32.mrb[0].mxu0
    %v795 = vadd.f32 0.0, %v794
    %v796 = vpop.f32.mrb[0].mxu0
    %797 = vdwg.mxu0
    %800 = vrot.lane.b32.xlu0 %v528, 16
    %v801 = vpop.permute.xlu0 %800
    %802 = vrot.lane.b32.xlu0 %v533, 16
    %v803 = vpop.permute.xlu0 %802
    %808 = vrot.lane.b32.xlu0 %v659, 32
    %v809 = vpop.permute.xlu0 %808
    %810 = vrot.lane.b32.xlu0 %v664, 32
    %v811 = vpop.permute.xlu0 %810
    %816 = vrot.lane.b32.xlu0 %v790, 48
    %v817 = vpop.permute.xlu0 %816
    %818 = vrot.lane.b32.xlu0 %v795, 48
    %v819 = vpop.permute.xlu0 %818
    %v822 = vsel %vm301, %v397, %v801
    %v823 = vsel %vm301, %v402, %v803
    %vm824 = vcmask 261120
    %v825 = vsel %vm824, %v822, %v809
    %v826 = vsel %vm824, %v823, %v811
    %vm827 = vcmask 392192
    %v828 = vsel %vm827, %v825, %v817
    %v829 = vsel %vm827, %v826, %v819
    %v830 = vld [vmem:[%s4] sm:$0x1]
    %v832 = vlaneseq
    %v833 = vshrl.u32 %v832, 7
    %v834 = vsub.s32 0, %v833
    %v835 = vrot.slane %v830, %v834
    %v837 = vadd.f32 %v828, %v835
    %v838 = vadd.f32 %v829, %v835
    %vm839 = vcmp.gt.f32.partialorder %v837, 0.0
    %vm840 = vcmp.gt.f32.partialorder %v838, 0.0
    %v841 = vmul.f32 %v837, 0.01
    %v842 = vmul.f32 %v838, 0.01
    %v843 = vsel %vm839, %v837, %v841
    %v844 = vsel %vm840, %v838, %v842
    %v845 = vld [vmem:[%s5] sm:$0xff]
    %v846 = vld [vmem:[%s5 + $0x8] sm:$0xff]
    %v847 = vld [vmem:[%s5 + $0x10] sm:$0xff]
    %v848 = vld [vmem:[%s5 + $0x18] sm:$0xff]
    %v849 = vld [vmem:[%s5 + $0x20] sm:$0xff]
    %v850 = vld [vmem:[%s5 + $0x28] sm:$0xff]
    %v851 = vld [vmem:[%s5 + $0x30] sm:$0xff]
    %v852 = vld [vmem:[%s5 + $0x38] sm:$0xff]
    %v854 = vsel %vm163, %v843, 0
    %v857 = vsel %vm163, %v844, 0
    %859 = vmatprep.subr.mxu0 0.0
    %860 = vmatpush1.msra.mxu0 %v845
    %861 = vmatprep.subr.mxu0 0.0
    %862 = vmatpush1.msra.mxu0 %v846
    %863 = vmatprep.subr.mxu0 0.0
    %864 = vmatpush1.msra.mxu0 %v847
    %865 = vmatprep.subr.mxu0 0.0
    %866 = vmatpush1.msra.mxu0 %v848
    %867 = vmatprep.subr.mxu0 0.0
    %868 = vmatpush1.msra.mxu0 %v849
    %869 = vmatprep.subr.mxu0 0.0
    %870 = vmatpush1.msra.mxu0 %v850
    %871 = vmatprep.subr.mxu0 0.0
    %872 = vmatpush1.msra.mxu0 %v851
    %873 = vmatprep.subr.mxu0 0.0
    %874 = vmatpush1.msra.mxu0 %v852
    %875 = vmatprep.subr.mxu0 0.0
    %876 = vmatpush1.msra.mxu0 0.0
    %877 = vmatprep.subr.mxu0 0.0
    %878 = vmatpush1.msra.mxu0 0.0
    %879 = vmatprep.subr.mxu0 0.0
    %880 = vmatpush1.msra.mxu0 0.0
    %881 = vmatprep.subr.mxu0 0.0
    %882 = vmatpush1.msra.mxu0 0.0
    %883 = vmatprep.subr.mxu0 0.0
    %884 = vmatpush1.msra.mxu0 0.0
    %885 = vmatprep.subr.mxu0 0.0
    %886 = vmatpush1.msra.mxu0 0.0
    %887 = vmatprep.subr.mxu0 0.0
    %888 = vmatpush1.msra.mxu0 0.0
    %889 = vmatprep.subr.mxu0 0.0
    %890 = vmatpush1.msra.mxu0 0.0
    %891 = vmatprep.subr.mxu0 0.0
    %892 = vmatpush1.msra.mxu0 0.0
    %893 = vmatprep.subr.mxu0 0.0
    %894 = vmatpush1.msra.mxu0 0.0
    %895 = vmatprep.subr.mxu0 0.0
    %896 = vmatpush1.msra.mxu0 0.0
    %897 = vmatprep.subr.mxu0 0.0
    %898 = vmatpush1.msra.mxu0 0.0
    %899 = vmatprep.subr.mxu0 0.0
    %900 = vmatpush1.msra.mxu0 0.0
    %901 = vmatprep.subr.mxu0 0.0
    %902 = vmatpush1.msra.mxu0 0.0
    %903 = vmatprep.subr.mxu0 0.0
    %904 = vmatpush1.msra.mxu0 0.0
    %905 = vmatprep.subr.mxu0 0.0
    %906 = vmatpush1.msra.mxu0 0.0
    %907 = vmatprep.subr.mxu0 0.0
    %908 = vmatpush1.msra.mxu0 0.0
    %909 = vmatprep.subr.mxu0 0.0
    %910 = vmatpush1.msra.mxu0 0.0
    %911 = vmatprep.subr.mxu0 0.0
    %912 = vmatpush1.msra.mxu0 0.0
    %913 = vmatprep.subr.mxu0 0.0
    %914 = vmatpush1.msra.mxu0 0.0
    %915 = vmatprep.subr.mxu0 0.0
    %916 = vmatpush1.msra.mxu0 0.0
    %917 = vmatprep.subr.mxu0 0.0
    %918 = vmatpush1.msra.mxu0 0.0
    %919 = vmatprep.subr.mxu0 0.0
    %920 = vmatpush1.msra.mxu0 0.0
    %921 = vmatprep.subr.mxu0 0.0
    %922 = vmatpush1.msra.mxu0 0.0
    %923 = vmatprep.mubr.f32.mxu0 0.0
    %924 = vmatmul.mubr.f32.gmra.mrb[0].mxu0 %v854
    %v925 = vpop.f32.mrb[0].mxu0
    %v926 = vadd.f32 0.0, %v925
    %v927 = vpop.f32.mrb[0].mxu0
    %928 = vmatprep.mubr.f32.mxu0 0.0
    %929 = vmatmul.mubr.f32.gmra.mrb[0].mxu0 %v857
    %v930 = vpop.f32.mrb[0].mxu0
    %v931 = vadd.f32 0.0, %v930
    %v932 = vpop.f32.mrb[0].mxu0
    %933 = vdwg.mxu0
    %v934 = vld [vmem:[%s6] sm:$0xff]
    %v935 = vld [vmem:[%s6 + $0x8] sm:$0xff]
    %v936 = vld [vmem:[%s6 + $0x10] sm:$0xff]
    %v937 = vld [vmem:[%s6 + $0x18] sm:$0xff]
    %v938 = vld [vmem:[%s6 + $0x20] sm:$0xff]
    %v939 = vld [vmem:[%s6 + $0x28] sm:$0xff]
    %v940 = vld [vmem:[%s6 + $0x30] sm:$0xff]
    %v941 = vld [vmem:[%s6 + $0x38] sm:$0xff]
    %v943 = vsel %vm163, %v926, 0
    %v946 = vsel %vm163, %v931, 0
    %948 = vmatprep.subr.mxu0 0.0
    %949 = vmatpush1.msra.mxu0 %v934
    %950 = vmatprep.subr.mxu0 0.0
    %951 = vmatpush1.msra.mxu0 %v935
    %952 = vmatprep.subr.mxu0 0.0
    %953 = vmatpush1.msra.mxu0 %v936
    %954 = vmatprep.subr.mxu0 0.0
    %955 = vmatpush1.msra.mxu0 %v937
    %956 = vmatprep.subr.mxu0 0.0
    %957 = vmatpush1.msra.mxu0 %v938
    %958 = vmatprep.subr.mxu0 0.0
    %959 = vmatpush1.msra.mxu0 %v939
    %960 = vmatprep.subr.mxu0 0.0
    %961 = vmatpush1.msra.mxu0 %v940
    %962 = vmatprep.subr.mxu0 0.0
    %963 = vmatpush1.msra.mxu0 %v941
    %964 = vmatprep.subr.mxu0 0.0
    %965 = vmatpush1.msra.mxu0 0.0
    %966 = vmatprep.subr.mxu0 0.0
    %967 = vmatpush1.msra.mxu0 0.0
    %968 = vmatprep.subr.mxu0 0.0
    %969 = vmatpush1.msra.mxu0 0.0
    %970 = vmatprep.subr.mxu0 0.0
    %971 = vmatpush1.msra.mxu0 0.0
    %972 = vmatprep.subr.mxu0 0.0
    %973 = vmatpush1.msra.mxu0 0.0
    %974 = vmatprep.subr.mxu0 0.0
    %975 = vmatpush1.msra.mxu0 0.0
    %976 = vmatprep.subr.mxu0 0.0
    %977 = vmatpush1.msra.mxu0 0.0
    %978 = vmatprep.subr.mxu0 0.0
    %979 = vmatpush1.msra.mxu0 0.0
    %980 = vmatprep.subr.mxu0 0.0
    %981 = vmatpush1.msra.mxu0 0.0
    %982 = vmatprep.subr.mxu0 0.0
    %983 = vmatpush1.msra.mxu0 0.0
    %984 = vmatprep.subr.mxu0 0.0
    %985 = vmatpush1.msra.mxu0 0.0
    %986 = vmatprep.subr.mxu0 0.0
    %987 = vmatpush1.msra.mxu0 0.0
    %988 = vmatprep.subr.mxu0 0.0
    %989 = vmatpush1.msra.mxu0 0.0
    %990 = vmatprep.subr.mxu0 0.0
    %991 = vmatpush1.msra.mxu0 0.0
    %992 = vmatprep.subr.mxu0 0.0
    %993 = vmatpush1.msra.mxu0 0.0
    %994 = vmatprep.subr.mxu0 0.0
    %995 = vmatpush1.msra.mxu0 0.0
    %996 = vmatprep.subr.mxu0 0.0
    %997 = vmatpush1.msra.mxu0 0.0
    %998 = vmatprep.subr.mxu0 0.0
    %999 = vmatpush1.msra.mxu0 0.0
    %1000 = vmatprep.subr.mxu0 0.0
    %1001 = vmatpush1.msra.mxu0 0.0
    %1002 = vmatprep.subr.mxu0 0.0
    %1003 = vmatpush1.msra.mxu0 0.0
    %1004 = vmatprep.subr.mxu0 0.0
    %1005 = vmatpush1.msra.mxu0 0.0
    %1006 = vmatprep.subr.mxu0 0.0
    %1007 = vmatpush1.msra.mxu0 0.0
    %1008 = vmatprep.subr.mxu0 0.0
    %1009 = vmatpush1.msra.mxu0 0.0
    %1010 = vmatprep.subr.mxu0 0.0
    %1011 = vmatpush1.msra.mxu0 0.0
    %1012 = vmatprep.mubr.f32.mxu0 0.0
    %1013 = vmatmul.mubr.f32.gmra.mrb[0].mxu0 %v943
    %v1014 = vpop.f32.mrb[0].mxu0
    %v1015 = vadd.f32 0.0, %v1014
    %v1016 = vpop.f32.mrb[0].mxu0
    %1017 = vmatprep.mubr.f32.mxu0 0.0
    %1018 = vmatmul.mubr.f32.gmra.mrb[0].mxu0 %v946
    %v1019 = vpop.f32.mrb[0].mxu0
    %v1020 = vadd.f32 0.0, %v1019
    %v1021 = vpop.f32.mrb[0].mxu0
    %1022 = vdwg.mxu0
    %1023 = vxpose.xlu0.b32.start [1/16] %v1015, 128
    %1024 = vxpose.xlu0.b32.cont [2/16] %v1020, 128
    %1025 = vxpose.xlu0.b32.cont [3/16] 0.0, 128
    %1026 = vxpose.xlu0.b32.cont [4/16] 0.0, 128
    %1027 = vxpose.xlu0.b32.cont [5/16] 0.0, 128
    %1028 = vxpose.xlu0.b32.cont [6/16] 0.0, 128
    %1029 = vxpose.xlu0.b32.cont [7/16] 0.0, 128
    %1030 = vxpose.xlu0.b32.cont [8/16] 0.0, 128
    %1031 = vxpose.xlu0.b32.cont [9/16] 0.0, 128
    %1032 = vxpose.xlu0.b32.cont [10/16] 0.0, 128
    %1033 = vxpose.xlu0.b32.cont [11/16] 0.0, 128
    %1034 = vxpose.xlu0.b32.cont [12/16] 0.0, 128
    %1035 = vxpose.xlu0.b32.cont [13/16] 0.0, 128
    %1036 = vxpose.xlu0.b32.cont [14/16] 0.0, 128
    %1037 = vxpose.xlu0.b32.cont [15/16] 0.0, 128
    %1038 = vxpose.xlu0.b32.end [16/16] 0.0, 128
    %v1039 = vpop.trf.xlu0
    %v1040 = vpop.trf.xlu0
    %v1041 = vpop.trf.xlu0
    %v1042 = vpop.trf.xlu0
    %v1043 = vpop.trf.xlu0
    %v1044 = vpop.trf.xlu0
    %v1045 = vpop.trf.xlu0
    %v1046 = vpop.trf.xlu0
    %v1047 = vpop.trf.xlu0
    %v1048 = vpop.trf.xlu0
    %v1049 = vpop.trf.xlu0
    %v1050 = vpop.trf.xlu0
    %v1051 = vpop.trf.xlu0
    %v1052 = vpop.trf.xlu0
    %v1053 = vpop.trf.xlu0
    %v1054 = vpop.trf.xlu0
    %1056 = vset.pattern.permute.xlu0 4
    %1057 = vperm.xlu0 %1056, %v1015
    %v1058 = vpop.permute.xlu0 %1057
    %1061 = vset.pattern.permute.xlu0 4
    %1062 = vperm.xlu0 %1061, %v1020
    %v1063 = vpop.permute.xlu0 %1062
    %v1065 = vlaneseq
    %v1066 = vshrl.u32 %v1065, 7
    %v1067 = vsub.s32 0, %v1066
    %v1068 = vrot.slane %v1039, %v1067
    %v1069 = vadd.f32 %v1058, %v1068
    %v1070 = vadd.f32 %v1063, %v1068
    %vm1071 = vcmp.gt.f32.partialorder %v1069, 0.0
    %vm1072 = vcmp.gt.f32.partialorder %v1070, 0.0
    %v1073 = vmul.f32 %v1069, 0.2
    %v1074 = vmul.f32 %v1070, 0.2
    %v1075 = vsel %vm1071, %v1069, %v1073
    %v1076 = vsel %vm1072, %v1070, %v1074
    %v1077 = vadd.f32 %v1075, %v68
    %v1078 = vadd.f32 %v1076, %v69
    %v1079 = vsel %vm301, %v1077, -inf
    %1080 = vmax.xlane.f32.xlu0 %v1079
    %v1081 = vpop.xlane.xlu0 %1080
    %v1082 = vsel %vm301, %v1078, -inf
    %1083 = vmax.xlane.f32.xlu0 %v1082
    %v1084 = vpop.xlane.xlu0 %1083
    %v1085 = vsub.f32 %v1077, %v1081
    %v1086 = vsub.f32 %v1078, %v1084
    %v1087 = vmul.f32 %v1085, 1.442695
    %v1088 = vpow.pop %v1087
    %v1089 = vmul.f32 %v1086, 1.442695
    %v1090 = vpow.pop %v1089
    %v1091 = vsel %vm301, %v1088, 0.0
    %1092 = vadd.xlane.f32.xlu0 %v1091
    %v1093 = vpop.xlane.xlu0 %1092
    %v1094 = vsel %vm301, %v1090, 0.0
    %1095 = vadd.xlane.f32.xlu0 %v1094
    %v1096 = vpop.xlane.xlu0 %1095
    %v1097 = vrcp.pop %v1093
    %v1098 = vrcp.pop %v1096
    %v1099 = vmul.f32 %v1088, %v1097
    %v1100 = vmul.f32 %v1090, %v1098
    %v1102 = vsel %vm301, %v1099, 0
    %v1105 = vsel %vm301, %v1100, 0
    %1107 = vmatprep.subr.mxu0 0.0
    %1108 = vmatpush1.msra.mxu0 %v926
    %1109 = vmatprep.subr.mxu0 0.0
    %1110 = vmatpush1.msra.mxu0 %v931
    %1111 = vmatprep.subr.mxu0 0.0
    %1112 = vmatpush1.msra.mxu0 0.0
    %1113 = vmatprep.subr.mxu0 0.0
    %1114 = vmatpush1.msra.mxu0 0.0
    %1115 = vmatprep.subr.mxu0 0.0
    %1116 = vmatpush1.msra.mxu0 0.0
    %1117 = vmatprep.subr.mxu0 0.0
    %1118 = vmatpush1.msra.mxu0 0.0
    %1119 = vmatprep.subr.mxu0 0.0
    %1120 = vmatpush1.msra.mxu0 0.0
    %1121 = vmatprep.subr.mxu0 0.0
    %1122 = vmatpush1.msra.mxu0 0.0
    %1123 = vmatprep.subr.mxu0 0.0
    %1124 = vmatpush1.msra.mxu0 0.0
    %1125 = vmatprep.subr.mxu0 0.0
    %1126 = vmatpush1.msra.mxu0 0.0
    %1127 = vmatprep.subr.mxu0 0.0
    %1128 = vmatpush1.msra.mxu0 0.0
    %1129 = vmatprep.subr.mxu0 0.0
    %1130 = vmatpush1.msra.mxu0 0.0
    %1131 = vmatprep.subr.mxu0 0.0
    %1132 = vmatpush1.msra.mxu0 0.0
    %1133 = vmatprep.subr.mxu0 0.0
    %1134 = vmatpush1.msra.mxu0 0.0
    %1135 = vmatprep.subr.mxu0 0.0
    %1136 = vmatpush1.msra.mxu0 0.0
    %1137 = vmatprep.subr.mxu0 0.0
    %1138 = vmatpush1.msra.mxu0 0.0
    %1139 = vmatprep.subr.mxu0 0.0
    %1140 = vmatpush1.msra.mxu0 0.0
    %1141 = vmatprep.subr.mxu0 0.0
    %1142 = vmatpush1.msra.mxu0 0.0
    %1143 = vmatprep.subr.mxu0 0.0
    %1144 = vmatpush1.msra.mxu0 0.0
    %1145 = vmatprep.subr.mxu0 0.0
    %1146 = vmatpush1.msra.mxu0 0.0
    %1147 = vmatprep.subr.mxu0 0.0
    %1148 = vmatpush1.msra.mxu0 0.0
    %1149 = vmatprep.subr.mxu0 0.0
    %1150 = vmatpush1.msra.mxu0 0.0
    %1151 = vmatprep.subr.mxu0 0.0
    %1152 = vmatpush1.msra.mxu0 0.0
    %1153 = vmatprep.subr.mxu0 0.0
    %1154 = vmatpush1.msra.mxu0 0.0
    %1155 = vmatprep.subr.mxu0 0.0
    %1156 = vmatpush1.msra.mxu0 0.0
    %1157 = vmatprep.subr.mxu0 0.0
    %1158 = vmatpush1.msra.mxu0 0.0
    %1159 = vmatprep.subr.mxu0 0.0
    %1160 = vmatpush1.msra.mxu0 0.0
    %1161 = vmatprep.subr.mxu0 0.0
    %1162 = vmatpush1.msra.mxu0 0.0
    %1163 = vmatprep.subr.mxu0 0.0
    %1164 = vmatpush1.msra.mxu0 0.0
    %1165 = vmatprep.subr.mxu0 0.0
    %1166 = vmatpush1.msra.mxu0 0.0
    %1167 = vmatprep.subr.mxu0 0.0
    %1168 = vmatpush1.msra.mxu0 0.0
    %1169 = vmatprep.subr.mxu0 0.0
    %1170 = vmatpush1.msra.mxu0 0.0
    %1171 = vmatprep.mubr.f32.mxu0 0.0
    %1172 = vmatmul.mubr.f32.gmra.mrb[0].mxu0 %v1102
    %v1173 = vpop.f32.mrb[0].mxu0
    %v1174 = vadd.f32 0.0, %v1173
    %v1175 = vpop.f32.mrb[0].mxu0
    %1176 = vmatprep.mubr.f32.mxu0 0.0
    %1177 = vmatmul.mubr.f32.gmra.mrb[0].mxu0 %v1105
    %v1178 = vpop.f32.mrb[0].mxu0
    %v1179 = vadd.f32 0.0, %v1178
    %v1180 = vpop.f32.mrb[0].mxu0
    %1181 = vdwg.mxu0
    %1182 = vset.pattern.permute.xlu0 5
    %1183 = vperm.xlu0 %1182, %v1015
    %v1184 = vpop.permute.xlu0 %1183
    %1186 = vset.pattern.permute.xlu0 5
    %1187 = vperm.xlu0 %1186, %v1020
    %v1188 = vpop.permute.xlu0 %1187
    %v1190 = vlaneseq
    %v1191 = vshrl.u32 %v1190, 7
    %v1192 = vsub.s32 1, %v1191
    %v1193 = vrot.slane %v1039, %v1192
    %v1194 = vadd.f32 %v1184, %v1193
    %v1195 = vadd.f32 %v1188, %v1193
    %vm1196 = vcmp.gt.f32.partialorder %v1194, 0.0
    %vm1197 = vcmp.gt.f32.partialorder %v1195, 0.0
    %v1198 = vmul.f32 %v1194, 0.2
    %v1199 = vmul.f32 %v1195, 0.2
    %v1200 = vsel %vm1196, %v1194, %v1198
    %v1201 = vsel %vm1197, %v1195, %v1199
    %v1202 = vadd.f32 %v1200, %v68
    %v1203 = vadd.f32 %v1201, %v69
    %v1204 = vsel %vm301, %v1202, -inf
    %1205 = vmax.xlane.f32.xlu0 %v1204
    %v1206 = vpop.xlane.xlu0 %1205
    %v1207 = vsel %vm301, %v1203, -inf
    %1208 = vmax.xlane.f32.xlu0 %v1207
    %v1209 = vpop.xlane.xlu0 %1208
    %v1210 = vsub.f32 %v1202, %v1206
    %v1211 = vsub.f32 %v1203, %v1209
    %v1212 = vmul.f32 %v1210, 1.442695
    %v1213 = vpow.pop %v1212
    %v1214 = vmul.f32 %v1211, 1.442695
    %v1215 = vpow.pop %v1214
    %v1216 = vsel %vm301, %v1213, 0.0
    %1217 = vadd.xlane.f32.xlu0 %v1216
    %v1218 = vpop.xlane.xlu0 %1217
    %v1219 = vsel %vm301, %v1215, 0.0
    %1220 = vadd.xlane.f32.xlu0 %v1219
    %v1221 = vpop.xlane.xlu0 %1220
    %v1222 = vrcp.pop %v1218
    %v1223 = vrcp.pop %v1221
    %v1224 = vmul.f32 %v1213, %v1222
    %v1225 = vmul.f32 %v1215, %v1223
    %1226 = vrot.lane.b32.xlu0 %v926, 112
    %v1227 = vpop.permute.xlu0 %1226
    %1228 = vrot.lane.b32.xlu0 %v931, 112
    %v1229 = vpop.permute.xlu0 %1228
    %v1233 = vsel %vm301, %v1224, 0
    %v1236 = vsel %vm301, %v1225, 0
    %1238 = vmatprep.subr.mxu0 0.0
    %1239 = vmatpush1.msra.mxu0 %v1227
    %1240 = vmatprep.subr.mxu0 0.0
    %1241 = vmatpush1.msra.mxu0 %v1229
    %1242 = vmatprep.subr.mxu0 0.0
    %1243 = vmatpush1.msra.mxu0 0.0
    %1244 = vmatprep.subr.mxu0 0.0
    %1245 = vmatpush1.msra.mxu0 0.0
    %1246 = vmatprep.subr.mxu0 0.0
    %1247 = vmatpush1.msra.mxu0 0.0
    %1248 = vmatprep.subr.mxu0 0.0
    %1249 = vmatpush1.msra.mxu0 0.0
    %1250 = vmatprep.subr.mxu0 0.0
    %1251 = vmatpush1.msra.mxu0 0.0
    %1252 = vmatprep.subr.mxu0 0.0
    %1253 = vmatpush1.msra.mxu0 0.0
    %1254 = vmatprep.subr.mxu0 0.0
    %1255 = vmatpush1.msra.mxu0 0.0
    %1256 = vmatprep.subr.mxu0 0.0
    %1257 = vmatpush1.msra.mxu0 0.0
    %1258 = vmatprep.subr.mxu0 0.0
    %1259 = vmatpush1.msra.mxu0 0.0
    %1260 = vmatprep.subr.mxu0 0.0
    %1261 = vmatpush1.msra.mxu0 0.0
    %1262 = vmatprep.subr.mxu0 0.0
    %1263 = vmatpush1.msra.mxu0 0.0
    %1264 = vmatprep.subr.mxu0 0.0
    %1265 = vmatpush1.msra.mxu0 0.0
    %1266 = vmatprep.subr.mxu0 0.0
    %1267 = vmatpush1.msra.mxu0 0.0
    %1268 = vmatprep.subr.mxu0 0.0
    %1269 = vmatpush1.msra.mxu0 0.0
    %1270 = vmatprep.subr.mxu0 0.0
    %1271 = vmatpush1.msra.mxu0 0.0
    %1272 = vmatprep.subr.mxu0 0.0
    %1273 = vmatpush1.msra.mxu0 0.0
    %1274 = vmatprep.subr.mxu0 0.0
    %1275 = vmatpush1.msra.mxu0 0.0
    %1276 = vmatprep.subr.mxu0 0.0
    %1277 = vmatpush1.msra.mxu0 0.0
    %1278 = vmatprep.subr.mxu0 0.0
    %1279 = vmatpush1.msra.mxu0 0.0
    %1280 = vmatprep.subr.mxu0 0.0
    %1281 = vmatpush1.msra.mxu0 0.0
    %1282 = vmatprep.subr.mxu0 0.0
    %1283 = vmatpush1.msra.mxu0 0.0
    %1284 = vmatprep.subr.mxu0 0.0
    %1285 = vmatpush1.msra.mxu0 0.0
    %1286 = vmatprep.subr.mxu0 0.0
    %1287 = vmatpush1.msra.mxu0 0.0
    %1288 = vmatprep.subr.mxu0 0.0
    %1289 = vmatpush1.msra.mxu0 0.0
    %1290 = vmatprep.subr.mxu0 0.0
    %1291 = vmatpush1.msra.mxu0 0.0
    %1292 = vmatprep.subr.mxu0 0.0
    %1293 = vmatpush1.msra.mxu0 0.0
    %1294 = vmatprep.subr.mxu0 0.0
    %1295 = vmatpush1.msra.mxu0 0.0
    %1296 = vmatprep.subr.mxu0 0.0
    %1297 = vmatpush1.msra.mxu0 0.0
    %1298 = vmatprep.subr.mxu0 0.0
    %1299 = vmatpush1.msra.mxu0 0.0
    %1300 = vmatprep.subr.mxu0 0.0
    %1301 = vmatpush1.msra.mxu0 0.0
    %1302 = vmatprep.mubr.f32.mxu0 0.0
    %1303 = vmatmul.mubr.f32.gmra.mrb[0].mxu0 %v1233
    %v1304 = vpop.f32.mrb[0].mxu0
    %v1305 = vadd.f32 0.0, %v1304
    %v1306 = vpop.f32.mrb[0].mxu0
    %1307 = vmatprep.mubr.f32.mxu0 0.0
    %1308 = vmatmul.mubr.f32.gmra.mrb[0].mxu0 %v1236
    %v1309 = vpop.f32.mrb[0].mxu0
    %v1310 = vadd.f32 0.0, %v1309
    %v1311 = vpop.f32.mrb[0].mxu0
    %1312 = vdwg.mxu0
    %1313 = vset.pattern.permute.xlu0 6
    %1314 = vperm.xlu0 %1313, %v1015
    %v1315 = vpop.permute.xlu0 %1314
    %1317 = vset.pattern.permute.xlu0 6
    %1318 = vperm.xlu0 %1317, %v1020
    %v1319 = vpop.permute.xlu0 %1318
    %v1321 = vlaneseq
    %v1322 = vshrl.u32 %v1321, 7
    %v1323 = vsub.s32 2, %v1322
    %v1324 = vrot.slane %v1039, %v1323
    %v1325 = vadd.f32 %v1315, %v1324
    %v1326 = vadd.f32 %v1319, %v1324
    %vm1327 = vcmp.gt.f32.partialorder %v1325, 0.0
    %vm1328 = vcmp.gt.f32.partialorder %v1326, 0.0
    %v1329 = vmul.f32 %v1325, 0.2
    %v1330 = vmul.f32 %v1326, 0.2
    %v1331 = vsel %vm1327, %v1325, %v1329
    %v1332 = vsel %vm1328, %v1326, %v1330
    %v1333 = vadd.f32 %v1331, %v68
    %v1334 = vadd.f32 %v1332, %v69
    %v1335 = vsel %vm301, %v1333, -inf
    %1336 = vmax.xlane.f32.xlu0 %v1335
    %v1337 = vpop.xlane.xlu0 %1336
    %v1338 = vsel %vm301, %v1334, -inf
    %1339 = vmax.xlane.f32.xlu0 %v1338
    %v1340 = vpop.xlane.xlu0 %1339
    %v1341 = vsub.f32 %v1333, %v1337
    %v1342 = vsub.f32 %v1334, %v1340
    %v1343 = vmul.f32 %v1341, 1.442695
    %v1344 = vpow.pop %v1343
    %v1345 = vmul.f32 %v1342, 1.442695
    %v1346 = vpow.pop %v1345
    %v1347 = vsel %vm301, %v1344, 0.0
    %1348 = vadd.xlane.f32.xlu0 %v1347
    %v1349 = vpop.xlane.xlu0 %1348
    %v1350 = vsel %vm301, %v1346, 0.0
    %1351 = vadd.xlane.f32.xlu0 %v1350
    %v1352 = vpop.xlane.xlu0 %1351
    %v1353 = vrcp.pop %v1349
    %v1354 = vrcp.pop %v1352
    %v1355 = vmul.f32 %v1344, %v1353
    %v1356 = vmul.f32 %v1346, %v1354
    %1357 = vrot.lane.b32.xlu0 %v926, 96
    %v1358 = vpop.permute.xlu0 %1357
    %1359 = vrot.lane.b32.xlu0 %v931, 96
    %v1360 = vpop.permute.xlu0 %1359
    %v1364 = vsel %vm301, %v1355, 0
    %v1367 = vsel %vm301, %v1356, 0
    %1369 = vmatprep.subr.mxu0 0.0
    %1370 = vmatpush1.msra.mxu0 %v1358
    %1371 = vmatprep.subr.mxu0 0.0
    %1372 = vmatpush1.msra.mxu0 %v1360
    %1373 = vmatprep.subr.mxu0 0.0
    %1374 = vmatpush1.msra.mxu0 0.0
    %1375 = vmatprep.subr.mxu0 0.0
    %1376 = vmatpush1.msra.mxu0 0.0
    %1377 = vmatprep.subr.mxu0 0.0
    %1378 = vmatpush1.msra.mxu0 0.0
    %1379 = vmatprep.subr.mxu0 0.0
    %1380 = vmatpush1.msra.mxu0 0.0
    %1381 = vmatprep.subr.mxu0 0.0
    %1382 = vmatpush1.msra.mxu0 0.0
    %1383 = vmatprep.subr.mxu0 0.0
    %1384 = vmatpush1.msra.mxu0 0.0
    %1385 = vmatprep.subr.mxu0 0.0
    %1386 = vmatpush1.msra.mxu0 0.0
    %1387 = vmatprep.subr.mxu0 0.0
    %1388 = vmatpush1.msra.mxu0 0.0
    %1389 = vmatprep.subr.mxu0 0.0
    %1390 = vmatpush1.msra.mxu0 0.0
    %1391 = vmatprep.subr.mxu0 0.0
    %1392 = vmatpush1.msra.mxu0 0.0
    %1393 = vmatprep.subr.mxu0 0.0
    %1394 = vmatpush1.msra.mxu0 0.0
    %1395 = vmatprep.subr.mxu0 0.0
    %1396 = vmatpush1.msra.mxu0 0.0
    %1397 = vmatprep.subr.mxu0 0.0
    %1398 = vmatpush1.msra.mxu0 0.0
    %1399 = vmatprep.subr.mxu0 0.0
    %1400 = vmatpush1.msra.mxu0 0.0
    %1401 = vmatprep.subr.mxu0 0.0
    %1402 = vmatpush1.msra.mxu0 0.0
    %1403 = vmatprep.subr.mxu0 0.0
    %1404 = vmatpush1.msra.mxu0 0.0
    %1405 = vmatprep.subr.mxu0 0.0
    %1406 = vmatpush1.msra.mxu0 0.0
    %1407 = vmatprep.subr.mxu0 0.0
    %1408 = vmatpush1.msra.mxu0 0.0
    %1409 = vmatprep.subr.mxu0 0.0
    %1410 = vmatpush1.msra.mxu0 0.0
    %1411 = vmatprep.subr.mxu0 0.0
    %1412 = vmatpush1.msra.mxu0 0.0
    %1413 = vmatprep.subr.mxu0 0.0
    %1414 = vmatpush1.msra.mxu0 0.0
    %1415 = vmatprep.subr.mxu0 0.0
    %1416 = vmatpush1.msra.mxu0 0.0
    %1417 = vmatprep.subr.mxu0 0.0
    %1418 = vmatpush1.msra.mxu0 0.0
    %1419 = vmatprep.subr.mxu0 0.0
    %1420 = vmatpush1.msra.mxu0 0.0
    %1421 = vmatprep.subr.mxu0 0.0
    %1422 = vmatpush1.msra.mxu0 0.0
    %1423 = vmatprep.subr.mxu0 0.0
    %1424 = vmatpush1.msra.mxu0 0.0
    %1425 = vmatprep.subr.mxu0 0.0
    %1426 = vmatpush1.msra.mxu0 0.0
    %1427 = vmatprep.subr.mxu0 0.0
    %1428 = vmatpush1.msra.mxu0 0.0
    %1429 = vmatprep.subr.mxu0 0.0
    %1430 = vmatpush1.msra.mxu0 0.0
    %1431 = vmatprep.subr.mxu0 0.0
    %1432 = vmatpush1.msra.mxu0 0.0
    %1433 = vmatprep.mubr.f32.mxu0 0.0
    %1434 = vmatmul.mubr.f32.gmra.mrb[0].mxu0 %v1364
    %v1435 = vpop.f32.mrb[0].mxu0
    %v1436 = vadd.f32 0.0, %v1435
    %v1437 = vpop.f32.mrb[0].mxu0
    %1438 = vmatprep.mubr.f32.mxu0 0.0
    %1439 = vmatmul.mubr.f32.gmra.mrb[0].mxu0 %v1367
    %v1440 = vpop.f32.mrb[0].mxu0
    %v1441 = vadd.f32 0.0, %v1440
    %v1442 = vpop.f32.mrb[0].mxu0
    %1443 = vdwg.mxu0
    %1444 = vset.pattern.permute.xlu0 7
    %1445 = vperm.xlu0 %1444, %v1015
    %v1446 = vpop.permute.xlu0 %1445
    %1448 = vset.pattern.permute.xlu0 7
    %1449 = vperm.xlu0 %1448, %v1020
    %v1450 = vpop.permute.xlu0 %1449
    %v1452 = vlaneseq
    %v1453 = vshrl.u32 %v1452, 7
    %v1454 = vsub.s32 3, %v1453
    %v1455 = vrot.slane %v1039, %v1454
    %v1456 = vadd.f32 %v1446, %v1455
    %v1457 = vadd.f32 %v1450, %v1455
    %vm1458 = vcmp.gt.f32.partialorder %v1456, 0.0
    %vm1459 = vcmp.gt.f32.partialorder %v1457, 0.0
    %v1460 = vmul.f32 %v1456, 0.2
    %v1461 = vmul.f32 %v1457, 0.2
    %v1462 = vsel %vm1458, %v1456, %v1460
    %v1463 = vsel %vm1459, %v1457, %v1461
    %v1464 = vadd.f32 %v1462, %v68
    %v1465 = vadd.f32 %v1463, %v69
    %v1466 = vsel %vm301, %v1464, -inf
    %1467 = vmax.xlane.f32.xlu0 %v1466
    %v1468 = vpop.xlane.xlu0 %1467
    %v1469 = vsel %vm301, %v1465, -inf
    %1470 = vmax.xlane.f32.xlu0 %v1469
    %v1471 = vpop.xlane.xlu0 %1470
    %v1472 = vsub.f32 %v1464, %v1468
    %v1473 = vsub.f32 %v1465, %v1471
    %v1474 = vmul.f32 %v1472, 1.442695
    %v1475 = vpow.pop %v1474
    %v1476 = vmul.f32 %v1473, 1.442695
    %v1477 = vpow.pop %v1476
    %v1478 = vsel %vm301, %v1475, 0.0
    %1479 = vadd.xlane.f32.xlu0 %v1478
    %v1480 = vpop.xlane.xlu0 %1479
    %v1481 = vsel %vm301, %v1477, 0.0
    %1482 = vadd.xlane.f32.xlu0 %v1481
    %v1483 = vpop.xlane.xlu0 %1482
    %v1484 = vrcp.pop %v1480
    %v1485 = vrcp.pop %v1483
    %v1486 = vmul.f32 %v1475, %v1484
    %v1487 = vmul.f32 %v1477, %v1485
    %1488 = vrot.lane.b32.xlu0 %v926, 80
    %v1489 = vpop.permute.xlu0 %1488
    %1490 = vrot.lane.b32.xlu0 %v931, 80
    %v1491 = vpop.permute.xlu0 %1490
    %v1495 = vsel %vm301, %v1486, 0
    %v1498 = vsel %vm301, %v1487, 0
    %1500 = vmatprep.subr.mxu0 0.0
    %1501 = vmatpush1.msra.mxu0 %v1489
    %1502 = vmatprep.subr.mxu0 0.0
    %1503 = vmatpush1.msra.mxu0 %v1491
    %1504 = vmatprep.subr.mxu0 0.0
    %1505 = vmatpush1.msra.mxu0 0.0
    %1506 = vmatprep.subr.mxu0 0.0
    %1507 = vmatpush1.msra.mxu0 0.0
    %1508 = vmatprep.subr.mxu0 0.0
    %1509 = vmatpush1.msra.mxu0 0.0
    %1510 = vmatprep.subr.mxu0 0.0
    %1511 = vmatpush1.msra.mxu0 0.0
    %1512 = vmatprep.subr.mxu0 0.0
    %1513 = vmatpush1.msra.mxu0 0.0
    %1514 = vmatprep.subr.mxu0 0.0
    %1515 = vmatpush1.msra.mxu0 0.0
    %1516 = vmatprep.subr.mxu0 0.0
    %1517 = vmatpush1.msra.mxu0 0.0
    %1518 = vmatprep.subr.mxu0 0.0
    %1519 = vmatpush1.msra.mxu0 0.0
    %1520 = vmatprep.subr.mxu0 0.0
    %1521 = vmatpush1.msra.mxu0 0.0
    %1522 = vmatprep.subr.mxu0 0.0
    %1523 = vmatpush1.msra.mxu0 0.0
    %1524 = vmatprep.subr.mxu0 0.0
    %1525 = vmatpush1.msra.mxu0 0.0
    %1526 = vmatprep.subr.mxu0 0.0
    %1527 = vmatpush1.msra.mxu0 0.0
    %1528 = vmatprep.subr.mxu0 0.0
    %1529 = vmatpush1.msra.mxu0 0.0
    %1530 = vmatprep.subr.mxu0 0.0
    %1531 = vmatpush1.msra.mxu0 0.0
    %1532 = vmatprep.subr.mxu0 0.0
    %1533 = vmatpush1.msra.mxu0 0.0
    %1534 = vmatprep.subr.mxu0 0.0
    %1535 = vmatpush1.msra.mxu0 0.0
    %1536 = vmatprep.subr.mxu0 0.0
    %1537 = vmatpush1.msra.mxu0 0.0
    %1538 = vmatprep.subr.mxu0 0.0
    %1539 = vmatpush1.msra.mxu0 0.0
    %1540 = vmatprep.subr.mxu0 0.0
    %1541 = vmatpush1.msra.mxu0 0.0
    %1542 = vmatprep.subr.mxu0 0.0
    %1543 = vmatpush1.msra.mxu0 0.0
    %1544 = vmatprep.subr.mxu0 0.0
    %1545 = vmatpush1.msra.mxu0 0.0
    %1546 = vmatprep.subr.mxu0 0.0
    %1547 = vmatpush1.msra.mxu0 0.0
    %1548 = vmatprep.subr.mxu0 0.0
    %1549 = vmatpush1.msra.mxu0 0.0
    %1550 = vmatprep.subr.mxu0 0.0
    %1551 = vmatpush1.msra.mxu0 0.0
    %1552 = vmatprep.subr.mxu0 0.0
    %1553 = vmatpush1.msra.mxu0 0.0
    %1554 = vmatprep.subr.mxu0 0.0
    %1555 = vmatpush1.msra.mxu0 0.0
    %1556 = vmatprep.subr.mxu0 0.0
    %1557 = vmatpush1.msra.mxu0 0.0
    %1558 = vmatprep.subr.mxu0 0.0
    %1559 = vmatpush1.msra.mxu0 0.0
    %1560 = vmatprep.subr.mxu0 0.0
    %1561 = vmatpush1.msra.mxu0 0.0
    %1562 = vmatprep.subr.mxu0 0.0
    %1563 = vmatpush1.msra.mxu0 0.0
    %1564 = vmatprep.mubr.f32.mxu0 0.0
    %1565 = vmatmul.mubr.f32.gmra.mrb[0].mxu0 %v1495
    %v1566 = vpop.f32.mrb[0].mxu0
    %v1567 = vadd.f32 0.0, %v1566
    %v1568 = vpop.f32.mrb[0].mxu0
    %1569 = vmatprep.mubr.f32.mxu0 0.0
    %1570 = vmatmul.mubr.f32.gmra.mrb[0].mxu0 %v1498
    %v1571 = vpop.f32.mrb[0].mxu0
    %v1572 = vadd.f32 0.0, %v1571
    %v1573 = vpop.f32.mrb[0].mxu0
    %1574 = vdwg.mxu0
    %1577 = vrot.lane.b32.xlu0 %v1305, 16
    %v1578 = vpop.permute.xlu0 %1577
    %1579 = vrot.lane.b32.xlu0 %v1310, 16
    %v1580 = vpop.permute.xlu0 %1579
    %1585 = vrot.lane.b32.xlu0 %v1436, 32
    %v1586 = vpop.permute.xlu0 %1585
    %1587 = vrot.lane.b32.xlu0 %v1441, 32
    %v1588 = vpop.permute.xlu0 %1587
    %1593 = vrot.lane.b32.xlu0 %v1567, 48
    %v1594 = vpop.permute.xlu0 %1593
    %1595 = vrot.lane.b32.xlu0 %v1572, 48
    %v1596 = vpop.permute.xlu0 %1595
    %v1599 = vsel %vm301, %v1174, %v1578
    %v1600 = vsel %vm301, %v1179, %v1580
    %v1601 = vsel %vm824, %v1599, %v1586
    %v1602 = vsel %vm824, %v1600, %v1588
    %v1603 = vsel %vm827, %v1601, %v1594
    %v1604 = vsel %vm827, %v1602, %v1596
    %v1605 = vld [vmem:[%s7] sm:$0x1]
    %v1607 = vlaneseq
    %v1608 = vshrl.u32 %v1607, 7
    %v1609 = vsub.s32 0, %v1608
    %v1610 = vrot.slane %v1605, %v1609
    %v1612 = vadd.f32 %v1603, %v1610
    %v1613 = vadd.f32 %v1604, %v1610
    %vm1614 = vcmp.gt.f32.partialorder %v1612, 0.0
    %vm1615 = vcmp.gt.f32.partialorder %v1613, 0.0
    %v1616 = vmul.f32 %v1612, 0.01
    %v1617 = vmul.f32 %v1613, 0.01
    %v1618 = vsel %vm1614, %v1612, %v1616
    %v1619 = vsel %vm1615, %v1613, %v1617
    %v1620 = vld [vmem:[%s8] sm:$0xff]
    %v1621 = vld [vmem:[%s8 + $0x8] sm:$0xff]
    %v1622 = vld [vmem:[%s8 + $0x10] sm:$0xff]
    %v1623 = vld [vmem:[%s8 + $0x18] sm:$0xff]
    %v1624 = vld [vmem:[%s8 + $0x20] sm:$0xff]
    %v1625 = vld [vmem:[%s8 + $0x28] sm:$0xff]
    %v1626 = vld [vmem:[%s8 + $0x30] sm:$0xff]
    %v1627 = vld [vmem:[%s8 + $0x38] sm:$0xff]
    %v1629 = vsel %vm163, %v1618, 0
    %v1632 = vsel %vm163, %v1619, 0
    %1634 = vmatprep.subr.mxu0 0.0
    %1635 = vmatpush1.msra.mxu0 %v1620
    %1636 = vmatprep.subr.mxu0 0.0
    %1637 = vmatpush1.msra.mxu0 %v1621
    %1638 = vmatprep.subr.mxu0 0.0
    %1639 = vmatpush1.msra.mxu0 %v1622
    %1640 = vmatprep.subr.mxu0 0.0
    %1641 = vmatpush1.msra.mxu0 %v1623
    %1642 = vmatprep.subr.mxu0 0.0
    %1643 = vmatpush1.msra.mxu0 %v1624
    %1644 = vmatprep.subr.mxu0 0.0
    %1645 = vmatpush1.msra.mxu0 %v1625
    %1646 = vmatprep.subr.mxu0 0.0
    %1647 = vmatpush1.msra.mxu0 %v1626
    %1648 = vmatprep.subr.mxu0 0.0
    %1649 = vmatpush1.msra.mxu0 %v1627
    %1650 = vmatprep.subr.mxu0 0.0
    %1651 = vmatpush1.msra.mxu0 0.0
    %1652 = vmatprep.subr.mxu0 0.0
    %1653 = vmatpush1.msra.mxu0 0.0
    %1654 = vmatprep.subr.mxu0 0.0
    %1655 = vmatpush1.msra.mxu0 0.0
    %1656 = vmatprep.subr.mxu0 0.0
    %1657 = vmatpush1.msra.mxu0 0.0
    %1658 = vmatprep.subr.mxu0 0.0
    %1659 = vmatpush1.msra.mxu0 0.0
    %1660 = vmatprep.subr.mxu0 0.0
    %1661 = vmatpush1.msra.mxu0 0.0
    %1662 = vmatprep.subr.mxu0 0.0
    %1663 = vmatpush1.msra.mxu0 0.0
    %1664 = vmatprep.subr.mxu0 0.0
    %1665 = vmatpush1.msra.mxu0 0.0
    %1666 = vmatprep.subr.mxu0 0.0
    %1667 = vmatpush1.msra.mxu0 0.0
    %1668 = vmatprep.subr.mxu0 0.0
    %1669 = vmatpush1.msra.mxu0 0.0
    %1670 = vmatprep.subr.mxu0 0.0
    %1671 = vmatpush1.msra.mxu0 0.0
    %1672 = vmatprep.subr.mxu0 0.0
    %1673 = vmatpush1.msra.mxu0 0.0
    %1674 = vmatprep.subr.mxu0 0.0
    %1675 = vmatpush1.msra.mxu0 0.0
    %1676 = vmatprep.subr.mxu0 0.0
    %1677 = vmatpush1.msra.mxu0 0.0
    %1678 = vmatprep.subr.mxu0 0.0
    %1679 = vmatpush1.msra.mxu0 0.0
    %1680 = vmatprep.subr.mxu0 0.0
    %1681 = vmatpush1.msra.mxu0 0.0
    %1682 = vmatprep.subr.mxu0 0.0
    %1683 = vmatpush1.msra.mxu0 0.0
    %1684 = vmatprep.subr.mxu0 0.0
    %1685 = vmatpush1.msra.mxu0 0.0
    %1686 = vmatprep.subr.mxu0 0.0
    %1687 = vmatpush1.msra.mxu0 0.0
    %1688 = vmatprep.subr.mxu0 0.0
    %1689 = vmatpush1.msra.mxu0 0.0
    %1690 = vmatprep.subr.mxu0 0.0
    %1691 = vmatpush1.msra.mxu0 0.0
    %1692 = vmatprep.subr.mxu0 0.0
    %1693 = vmatpush1.msra.mxu0 0.0
    %1694 = vmatprep.subr.mxu0 0.0
    %1695 = vmatpush1.msra.mxu0 0.0
    %1696 = vmatprep.subr.mxu0 0.0
    %1697 = vmatpush1.msra.mxu0 0.0
    %1698 = vmatprep.mubr.f32.mxu0 0.0
    %1699 = vmatmul.mubr.f32.gmra.mrb[0].mxu0 %v1629
    %v1700 = vpop.f32.mrb[0].mxu0
    %v1701 = vadd.f32 0.0, %v1700
    %v1702 = vpop.f32.mrb[0].mxu0
    %1703 = vmatprep.mubr.f32.mxu0 0.0
    %1704 = vmatmul.mubr.f32.gmra.mrb[0].mxu0 %v1632
    %v1705 = vpop.f32.mrb[0].mxu0
    %v1706 = vadd.f32 0.0, %v1705
    %v1707 = vpop.f32.mrb[0].mxu0
    %1708 = vdwg.mxu0
    %v1709 = vld [vmem:[%s9] sm:$0xff]
    %v1710 = vld [vmem:[%s9 + $0x8] sm:$0xff]
    %v1711 = vld [vmem:[%s9 + $0x10] sm:$0xff]
    %v1712 = vld [vmem:[%s9 + $0x18] sm:$0xff]
    %v1713 = vld [vmem:[%s9 + $0x20] sm:$0xff]
    %v1714 = vld [vmem:[%s9 + $0x28] sm:$0xff]
    %v1715 = vld [vmem:[%s9 + $0x30] sm:$0xff]
    %v1716 = vld [vmem:[%s9 + $0x38] sm:$0xff]
    %v1718 = vsel %vm163, %v1701, 0
    %v1721 = vsel %vm163, %v1706, 0
    %1723 = vmatprep.subr.mxu0 0.0
    %1724 = vmatpush1.msra.mxu0 %v1709
    %1725 = vmatprep.subr.mxu0 0.0
    %1726 = vmatpush1.msra.mxu0 %v1710
    %1727 = vmatprep.subr.mxu0 0.0
    %1728 = vmatpush1.msra.mxu0 %v1711
    %1729 = vmatprep.subr.mxu0 0.0
    %1730 = vmatpush1.msra.mxu0 %v1712
    %1731 = vmatprep.subr.mxu0 0.0
    %1732 = vmatpush1.msra.mxu0 %v1713
    %1733 = vmatprep.subr.mxu0 0.0
    %1734 = vmatpush1.msra.mxu0 %v1714
    %1735 = vmatprep.subr.mxu0 0.0
    %1736 = vmatpush1.msra.mxu0 %v1715
    %1737 = vmatprep.subr.mxu0 0.0
    %1738 = vmatpush1.msra.mxu0 %v1716
    %1739 = vmatprep.subr.mxu0 0.0
    %1740 = vmatpush1.msra.mxu0 0.0
    %1741 = vmatprep.subr.mxu0 0.0
    %1742 = vmatpush1.msra.mxu0 0.0
    %1743 = vmatprep.subr.mxu0 0.0
    %1744 = vmatpush1.msra.mxu0 0.0
    %1745 = vmatprep.subr.mxu0 0.0
    %1746 = vmatpush1.msra.mxu0 0.0
    %1747 = vmatprep.subr.mxu0 0.0
    %1748 = vmatpush1.msra.mxu0 0.0
    %1749 = vmatprep.subr.mxu0 0.0
    %1750 = vmatpush1.msra.mxu0 0.0
    %1751 = vmatprep.subr.mxu0 0.0
    %1752 = vmatpush1.msra.mxu0 0.0
    %1753 = vmatprep.subr.mxu0 0.0
    %1754 = vmatpush1.msra.mxu0 0.0
    %1755 = vmatprep.subr.mxu0 0.0
    %1756 = vmatpush1.msra.mxu0 0.0
    %1757 = vmatprep.subr.mxu0 0.0
    %1758 = vmatpush1.msra.mxu0 0.0
    %1759 = vmatprep.subr.mxu0 0.0
    %1760 = vmatpush1.msra.mxu0 0.0
    %1761 = vmatprep.subr.mxu0 0.0
    %1762 = vmatpush1.msra.mxu0 0.0
    %1763 = vmatprep.subr.mxu0 0.0
    %1764 = vmatpush1.msra.mxu0 0.0
    %1765 = vmatprep.subr.mxu0 0.0
    %1766 = vmatpush1.msra.mxu0 0.0
    %1767 = vmatprep.subr.mxu0 0.0
    %1768 = vmatpush1.msra.mxu0 0.0
    %1769 = vmatprep.subr.mxu0 0.0
    %1770 = vmatpush1.msra.mxu0 0.0
    %1771 = vmatprep.subr.mxu0 0.0
    %1772 = vmatpush1.msra.mxu0 0.0
    %1773 = vmatprep.subr.mxu0 0.0
    %1774 = vmatpush1.msra.mxu0 0.0
    %1775 = vmatprep.subr.mxu0 0.0
    %1776 = vmatpush1.msra.mxu0 0.0
    %1777 = vmatprep.subr.mxu0 0.0
    %1778 = vmatpush1.msra.mxu0 0.0
    %1779 = vmatprep.subr.mxu0 0.0
    %1780 = vmatpush1.msra.mxu0 0.0
    %1781 = vmatprep.subr.mxu0 0.0
    %1782 = vmatpush1.msra.mxu0 0.0
    %1783 = vmatprep.subr.mxu0 0.0
    %1784 = vmatpush1.msra.mxu0 0.0
    %1785 = vmatprep.subr.mxu0 0.0
    %1786 = vmatpush1.msra.mxu0 0.0
    %1787 = vmatprep.mubr.f32.mxu0 0.0
    %1788 = vmatmul.mubr.f32.gmra.mrb[0].mxu0 %v1718
    %v1789 = vpop.f32.mrb[0].mxu0
    %v1790 = vadd.f32 0.0, %v1789
    %v1791 = vpop.f32.mrb[0].mxu0
    %1792 = vmatprep.mubr.f32.mxu0 0.0
    %1793 = vmatmul.mubr.f32.gmra.mrb[0].mxu0 %v1721
    %v1794 = vpop.f32.mrb[0].mxu0
    %v1795 = vadd.f32 0.0, %v1794
    %v1796 = vpop.f32.mrb[0].mxu0
    %1797 = vdwg.mxu0
    %1798 = vxpose.xlu0.b32.start [1/16] %v1790, 128
    %1799 = vxpose.xlu0.b32.cont [2/16] %v1795, 128
    %1800 = vxpose.xlu0.b32.cont [3/16] 0.0, 128
    %1801 = vxpose.xlu0.b32.cont [4/16] 0.0, 128
    %1802 = vxpose.xlu0.b32.cont [5/16] 0.0, 128
    %1803 = vxpose.xlu0.b32.cont [6/16] 0.0, 128
    %1804 = vxpose.xlu0.b32.cont [7/16] 0.0, 128
    %1805 = vxpose.xlu0.b32.cont [8/16] 0.0, 128
    %1806 = vxpose.xlu0.b32.cont [9/16] 0.0, 128
    %1807 = vxpose.xlu0.b32.cont [10/16] 0.0, 128
    %1808 = vxpose.xlu0.b32.cont [11/16] 0.0, 128
    %1809 = vxpose.xlu0.b32.cont [12/16] 0.0, 128
    %1810 = vxpose.xlu0.b32.cont [13/16] 0.0, 128
    %1811 = vxpose.xlu0.b32.cont [14/16] 0.0, 128
    %1812 = vxpose.xlu0.b32.cont [15/16] 0.0, 128
    %1813 = vxpose.xlu0.b32.end [16/16] 0.0, 128
    %v1814 = vpop.trf.xlu0
    %v1815 = vpop.trf.xlu0
    %v1816 = vpop.trf.xlu0
    %v1817 = vpop.trf.xlu0
    %v1818 = vpop.trf.xlu0
    %v1819 = vpop.trf.xlu0
    %v1820 = vpop.trf.xlu0
    %v1821 = vpop.trf.xlu0
    %v1822 = vpop.trf.xlu0
    %v1823 = vpop.trf.xlu0
    %v1824 = vpop.trf.xlu0
    %v1825 = vpop.trf.xlu0
    %v1826 = vpop.trf.xlu0
    %v1827 = vpop.trf.xlu0
    %v1828 = vpop.trf.xlu0
    %v1829 = vpop.trf.xlu0
    %1831 = vset.pattern.permute.xlu0 4
    %1832 = vperm.xlu0 %1831, %v1790
    %v1833 = vpop.permute.xlu0 %1832
    %1836 = vset.pattern.permute.xlu0 4
    %1837 = vperm.xlu0 %1836, %v1795
    %v1838 = vpop.permute.xlu0 %1837
    %v1840 = vlaneseq
    %v1841 = vshrl.u32 %v1840, 7
    %v1842 = vsub.s32 0, %v1841
    %v1843 = vrot.slane %v1814, %v1842
    %v1844 = vadd.f32 %v1833, %v1843
    %v1845 = vadd.f32 %v1838, %v1843
    %vm1846 = vcmp.gt.f32.partialorder %v1844, 0.0
    %vm1847 = vcmp.gt.f32.partialorder %v1845, 0.0
    %v1848 = vmul.f32 %v1844, 0.2
    %v1849 = vmul.f32 %v1845, 0.2
    %v1850 = vsel %vm1846, %v1844, %v1848
    %v1851 = vsel %vm1847, %v1845, %v1849
    %v1852 = vadd.f32 %v1850, %v68
    %v1853 = vadd.f32 %v1851, %v69
    %v1854 = vsel %vm301, %v1852, -inf
    %1855 = vmax.xlane.f32.xlu0 %v1854
    %v1856 = vpop.xlane.xlu0 %1855
    %v1857 = vsel %vm301, %v1853, -inf
    %1858 = vmax.xlane.f32.xlu0 %v1857
    %v1859 = vpop.xlane.xlu0 %1858
    %v1860 = vsub.f32 %v1852, %v1856
    %v1861 = vsub.f32 %v1853, %v1859
    %v1862 = vmul.f32 %v1860, 1.442695
    %v1863 = vpow.pop %v1862
    %v1864 = vmul.f32 %v1861, 1.442695
    %v1865 = vpow.pop %v1864
    %v1866 = vsel %vm301, %v1863, 0.0
    %1867 = vadd.xlane.f32.xlu0 %v1866
    %v1868 = vpop.xlane.xlu0 %1867
    %v1869 = vsel %vm301, %v1865, 0.0
    %1870 = vadd.xlane.f32.xlu0 %v1869
    %v1871 = vpop.xlane.xlu0 %1870
    %v1872 = vrcp.pop %v1868
    %v1873 = vrcp.pop %v1871
    %v1874 = vmul.f32 %v1863, %v1872
    %v1875 = vmul.f32 %v1865, %v1873
    %v1877 = vsel %vm301, %v1874, 0
    %v1880 = vsel %vm301, %v1875, 0
    %1882 = vmatprep.subr.mxu0 0.0
    %1883 = vmatpush1.msra.mxu0 %v1701
    %1884 = vmatprep.subr.mxu0 0.0
    %1885 = vmatpush1.msra.mxu0 %v1706
    %1886 = vmatprep.subr.mxu0 0.0
    %1887 = vmatpush1.msra.mxu0 0.0
    %1888 = vmatprep.subr.mxu0 0.0
    %1889 = vmatpush1.msra.mxu0 0.0
    %1890 = vmatprep.subr.mxu0 0.0
    %1891 = vmatpush1.msra.mxu0 0.0
    %1892 = vmatprep.subr.mxu0 0.0
    %1893 = vmatpush1.msra.mxu0 0.0
    %1894 = vmatprep.subr.mxu0 0.0
    %1895 = vmatpush1.msra.mxu0 0.0
    %1896 = vmatprep.subr.mxu0 0.0
    %1897 = vmatpush1.msra.mxu0 0.0
    %1898 = vmatprep.subr.mxu0 0.0
    %1899 = vmatpush1.msra.mxu0 0.0
    %1900 = vmatprep.subr.mxu0 0.0
    %1901 = vmatpush1.msra.mxu0 0.0
    %1902 = vmatprep.subr.mxu0 0.0
    %1903 = vmatpush1.msra.mxu0 0.0
    %1904 = vmatprep.subr.mxu0 0.0
    %1905 = vmatpush1.msra.mxu0 0.0
    %1906 = vmatprep.subr.mxu0 0.0
    %1907 = vmatpush1.msra.mxu0 0.0
    %1908 = vmatprep.subr.mxu0 0.0
    %1909 = vmatpush1.msra.mxu0 0.0
    %1910 = vmatprep.subr.mxu0 0.0
    %1911 = vmatpush1.msra.mxu0 0.0
    %1912 = vmatprep.subr.mxu0 0.0
    %1913 = vmatpush1.msra.mxu0 0.0
    %1914 = vmatprep.subr.mxu0 0.0
    %1915 = vmatpush1.msra.mxu0 0.0
    %1916 = vmatprep.subr.mxu0 0.0
    %1917 = vmatpush1.msra.mxu0 0.0
    %1918 = vmatprep.subr.mxu0 0.0
    %1919 = vmatpush1.msra.mxu0 0.0
    %1920 = vmatprep.subr.mxu0 0.0
    %1921 = vmatpush1.msra.mxu0 0.0
    %1922 = vmatprep.subr.mxu0 0.0
    %1923 = vmatpush1.msra.mxu0 0.0
    %1924 = vmatprep.subr.mxu0 0.0
    %1925 = vmatpush1.msra.mxu0 0.0
    %1926 = vmatprep.subr.mxu0 0.0
    %1927 = vmatpush1.msra.mxu0 0.0
    %1928 = vmatprep.subr.mxu0 0.0
    %1929 = vmatpush1.msra.mxu0 0.0
    %1930 = vmatprep.subr.mxu0 0.0
    %1931 = vmatpush1.msra.mxu0 0.0
    %1932 = vmatprep.subr.mxu0 0.0
    %1933 = vmatpush1.msra.mxu0 0.0
    %1934 = vmatprep.subr.mxu0 0.0
    %1935 = vmatpush1.msra.mxu0 0.0
    %1936 = vmatprep.subr.mxu0 0.0
    %1937 = vmatpush1.msra.mxu0 0.0
    %1938 = vmatprep.subr.mxu0 0.0
    %1939 = vmatpush1.msra.mxu0 0.0
    %1940 = vmatprep.subr.mxu0 0.0
    %1941 = vmatpush1.msra.mxu0 0.0
    %1942 = vmatprep.subr.mxu0 0.0
    %1943 = vmatpush1.msra.mxu0 0.0
    %1944 = vmatprep.subr.mxu0 0.0
    %1945 = vmatpush1.msra.mxu0 0.0
    %1946 = vmatprep.mubr.f32.mxu0 0.0
    %1947 = vmatmul.mubr.f32.gmra.mrb[0].mxu0 %v1877
    %v1948 = vpop.f32.mrb[0].mxu0
    %v1949 = vadd.f32 0.0, %v1948
    %v1950 = vpop.f32.mrb[0].mxu0
    %1951 = vmatprep.mubr.f32.mxu0 0.0
    %1952 = vmatmul.mubr.f32.gmra.mrb[0].mxu0 %v1880
    %v1953 = vpop.f32.mrb[0].mxu0
    %v1954 = vadd.f32 0.0, %v1953
    %v1955 = vpop.f32.mrb[0].mxu0
    %1956 = vdwg.mxu0
    %1957 = vset.pattern.permute.xlu0 5
    %1958 = vperm.xlu0 %1957, %v1790
    %v1959 = vpop.permute.xlu0 %1958
    %1961 = vset.pattern.permute.xlu0 5
    %1962 = vperm.xlu0 %1961, %v1795
    %v1963 = vpop.permute.xlu0 %1962
    %v1965 = vlaneseq
    %v1966 = vshrl.u32 %v1965, 7
    %v1967 = vsub.s32 1, %v1966
    %v1968 = vrot.slane %v1814, %v1967
    %v1969 = vadd.f32 %v1959, %v1968
    %v1970 = vadd.f32 %v1963, %v1968
    %vm1971 = vcmp.gt.f32.partialorder %v1969, 0.0
    %vm1972 = vcmp.gt.f32.partialorder %v1970, 0.0
    %v1973 = vmul.f32 %v1969, 0.2
    %v1974 = vmul.f32 %v1970, 0.2
    %v1975 = vsel %vm1971, %v1969, %v1973
    %v1976 = vsel %vm1972, %v1970, %v1974
    %v1977 = vadd.f32 %v1975, %v68
    %v1978 = vadd.f32 %v1976, %v69
    %v1979 = vsel %vm301, %v1977, -inf
    %1980 = vmax.xlane.f32.xlu0 %v1979
    %v1981 = vpop.xlane.xlu0 %1980
    %v1982 = vsel %vm301, %v1978, -inf
    %1983 = vmax.xlane.f32.xlu0 %v1982
    %v1984 = vpop.xlane.xlu0 %1983
    %v1985 = vsub.f32 %v1977, %v1981
    %v1986 = vsub.f32 %v1978, %v1984
    %v1987 = vmul.f32 %v1985, 1.442695
    %v1988 = vpow.pop %v1987
    %v1989 = vmul.f32 %v1986, 1.442695
    %v1990 = vpow.pop %v1989
    %v1991 = vsel %vm301, %v1988, 0.0
    %1992 = vadd.xlane.f32.xlu0 %v1991
    %v1993 = vpop.xlane.xlu0 %1992
    %v1994 = vsel %vm301, %v1990, 0.0
    %1995 = vadd.xlane.f32.xlu0 %v1994
    %v1996 = vpop.xlane.xlu0 %1995
    %v1997 = vrcp.pop %v1993
    %v1998 = vrcp.pop %v1996
    %v1999 = vmul.f32 %v1988, %v1997
    %v2000 = vmul.f32 %v1990, %v1998
    %2001 = vrot.lane.b32.xlu0 %v1701, 112
    %v2002 = vpop.permute.xlu0 %2001
    %2003 = vrot.lane.b32.xlu0 %v1706, 112
    %v2004 = vpop.permute.xlu0 %2003
    %v2008 = vsel %vm301, %v1999, 0
    %v2011 = vsel %vm301, %v2000, 0
    %2013 = vmatprep.subr.mxu0 0.0
    %2014 = vmatpush1.msra.mxu0 %v2002
    %2015 = vmatprep.subr.mxu0 0.0
    %2016 = vmatpush1.msra.mxu0 %v2004
    %2017 = vmatprep.subr.mxu0 0.0
    %2018 = vmatpush1.msra.mxu0 0.0
    %2019 = vmatprep.subr.mxu0 0.0
    %2020 = vmatpush1.msra.mxu0 0.0
    %2021 = vmatprep.subr.mxu0 0.0
    %2022 = vmatpush1.msra.mxu0 0.0
    %2023 = vmatprep.subr.mxu0 0.0
    %2024 = vmatpush1.msra.mxu0 0.0
    %2025 = vmatprep.subr.mxu0 0.0
    %2026 = vmatpush1.msra.mxu0 0.0
    %2027 = vmatprep.subr.mxu0 0.0
    %2028 = vmatpush1.msra.mxu0 0.0
    %2029 = vmatprep.subr.mxu0 0.0
    %2030 = vmatpush1.msra.mxu0 0.0
    %2031 = vmatprep.subr.mxu0 0.0
    %2032 = vmatpush1.msra.mxu0 0.0
    %2033 = vmatprep.subr.mxu0 0.0
    %2034 = vmatpush1.msra.mxu0 0.0
    %2035 = vmatprep.subr.mxu0 0.0
    %2036 = vmatpush1.msra.mxu0 0.0
    %2037 = vmatprep.subr.mxu0 0.0
    %2038 = vmatpush1.msra.mxu0 0.0
    %2039 = vmatprep.subr.mxu0 0.0
    %2040 = vmatpush1.msra.mxu0 0.0
    %2041 = vmatprep.subr.mxu0 0.0
    %2042 = vmatpush1.msra.mxu0 0.0
    %2043 = vmatprep.subr.mxu0 0.0
    %2044 = vmatpush1.msra.mxu0 0.0
    %2045 = vmatprep.subr.mxu0 0.0
    %2046 = vmatpush1.msra.mxu0 0.0
    %2047 = vmatprep.subr.mxu0 0.0
    %2048 = vmatpush1.msra.mxu0 0.0
    %2049 = vmatprep.subr.mxu0 0.0
    %2050 = vmatpush1.msra.mxu0 0.0
    %2051 = vmatprep.subr.mxu0 0.0
    %2052 = vmatpush1.msra.mxu0 0.0
    %2053 = vmatprep.subr.mxu0 0.0
    %2054 = vmatpush1.msra.mxu0 0.0
    %2055 = vmatprep.subr.mxu0 0.0
    %2056 = vmatpush1.msra.mxu0 0.0
    %2057 = vmatprep.subr.mxu0 0.0
    %2058 = vmatpush1.msra.mxu0 0.0
    %2059 = vmatprep.subr.mxu0 0.0
    %2060 = vmatpush1.msra.mxu0 0.0
    %2061 = vmatprep.subr.mxu0 0.0
    %2062 = vmatpush1.msra.mxu0 0.0
    %2063 = vmatprep.subr.mxu0 0.0
    %2064 = vmatpush1.msra.mxu0 0.0
    %2065 = vmatprep.subr.mxu0 0.0
    %2066 = vmatpush1.msra.mxu0 0.0
    %2067 = vmatprep.subr.mxu0 0.0
    %2068 = vmatpush1.msra.mxu0 0.0
    %2069 = vmatprep.subr.mxu0 0.0
    %2070 = vmatpush1.msra.mxu0 0.0
    %2071 = vmatprep.subr.mxu0 0.0
    %2072 = vmatpush1.msra.mxu0 0.0
    %2073 = vmatprep.subr.mxu0 0.0
    %2074 = vmatpush1.msra.mxu0 0.0
    %2075 = vmatprep.subr.mxu0 0.0
    %2076 = vmatpush1.msra.mxu0 0.0
    %2077 = vmatprep.mubr.f32.mxu0 0.0
    %2078 = vmatmul.mubr.f32.gmra.mrb[0].mxu0 %v2008
    %v2079 = vpop.f32.mrb[0].mxu0
    %v2080 = vadd.f32 0.0, %v2079
    %v2081 = vpop.f32.mrb[0].mxu0
    %2082 = vmatprep.mubr.f32.mxu0 0.0
    %2083 = vmatmul.mubr.f32.gmra.mrb[0].mxu0 %v2011
    %v2084 = vpop.f32.mrb[0].mxu0
    %v2085 = vadd.f32 0.0, %v2084
    %v2086 = vpop.f32.mrb[0].mxu0
    %2087 = vdwg.mxu0
    %2088 = vset.pattern.permute.xlu0 6
    %2089 = vperm.xlu0 %2088, %v1790
    %v2090 = vpop.permute.xlu0 %2089
    %2092 = vset.pattern.permute.xlu0 6
    %2093 = vperm.xlu0 %2092, %v1795
    %v2094 = vpop.permute.xlu0 %2093
    %v2096 = vlaneseq
    %v2097 = vshrl.u32 %v2096, 7
    %v2098 = vsub.s32 2, %v2097
    %v2099 = vrot.slane %v1814, %v2098
    %v2100 = vadd.f32 %v2090, %v2099
    %v2101 = vadd.f32 %v2094, %v2099
    %vm2102 = vcmp.gt.f32.partialorder %v2100, 0.0
    %vm2103 = vcmp.gt.f32.partialorder %v2101, 0.0
    %v2104 = vmul.f32 %v2100, 0.2
    %v2105 = vmul.f32 %v2101, 0.2
    %v2106 = vsel %vm2102, %v2100, %v2104
    %v2107 = vsel %vm2103, %v2101, %v2105
    %v2108 = vadd.f32 %v2106, %v68
    %v2109 = vadd.f32 %v2107, %v69
    %v2110 = vsel %vm301, %v2108, -inf
    %2111 = vmax.xlane.f32.xlu0 %v2110
    %v2112 = vpop.xlane.xlu0 %2111
    %v2113 = vsel %vm301, %v2109, -inf
    %2114 = vmax.xlane.f32.xlu0 %v2113
    %v2115 = vpop.xlane.xlu0 %2114
    %v2116 = vsub.f32 %v2108, %v2112
    %v2117 = vsub.f32 %v2109, %v2115
    %v2118 = vmul.f32 %v2116, 1.442695
    %v2119 = vpow.pop %v2118
    %v2120 = vmul.f32 %v2117, 1.442695
    %v2121 = vpow.pop %v2120
    %v2122 = vsel %vm301, %v2119, 0.0
    %2123 = vadd.xlane.f32.xlu0 %v2122
    %v2124 = vpop.xlane.xlu0 %2123
    %v2125 = vsel %vm301, %v2121, 0.0
    %2126 = vadd.xlane.f32.xlu0 %v2125
    %v2127 = vpop.xlane.xlu0 %2126
    %v2128 = vrcp.pop %v2124
    %v2129 = vrcp.pop %v2127
    %v2130 = vmul.f32 %v2119, %v2128
    %v2131 = vmul.f32 %v2121, %v2129
    %2132 = vrot.lane.b32.xlu0 %v1701, 96
    %v2133 = vpop.permute.xlu0 %2132
    %2134 = vrot.lane.b32.xlu0 %v1706, 96
    %v2135 = vpop.permute.xlu0 %2134
    %v2139 = vsel %vm301, %v2130, 0
    %v2142 = vsel %vm301, %v2131, 0
    %2144 = vmatprep.subr.mxu0 0.0
    %2145 = vmatpush1.msra.mxu0 %v2133
    %2146 = vmatprep.subr.mxu0 0.0
    %2147 = vmatpush1.msra.mxu0 %v2135
    %2148 = vmatprep.subr.mxu0 0.0
    %2149 = vmatpush1.msra.mxu0 0.0
    %2150 = vmatprep.subr.mxu0 0.0
    %2151 = vmatpush1.msra.mxu0 0.0
    %2152 = vmatprep.subr.mxu0 0.0
    %2153 = vmatpush1.msra.mxu0 0.0
    %2154 = vmatprep.subr.mxu0 0.0
    %2155 = vmatpush1.msra.mxu0 0.0
    %2156 = vmatprep.subr.mxu0 0.0
    %2157 = vmatpush1.msra.mxu0 0.0
    %2158 = vmatprep.subr.mxu0 0.0
    %2159 = vmatpush1.msra.mxu0 0.0
    %2160 = vmatprep.subr.mxu0 0.0
    %2161 = vmatpush1.msra.mxu0 0.0
    %2162 = vmatprep.subr.mxu0 0.0
    %2163 = vmatpush1.msra.mxu0 0.0
    %2164 = vmatprep.subr.mxu0 0.0
    %2165 = vmatpush1.msra.mxu0 0.0
    %2166 = vmatprep.subr.mxu0 0.0
    %2167 = vmatpush1.msra.mxu0 0.0
    %2168 = vmatprep.subr.mxu0 0.0
    %2169 = vmatpush1.msra.mxu0 0.0
    %2170 = vmatprep.subr.mxu0 0.0
    %2171 = vmatpush1.msra.mxu0 0.0
    %2172 = vmatprep.subr.mxu0 0.0
    %2173 = vmatpush1.msra.mxu0 0.0
    %2174 = vmatprep.subr.mxu0 0.0
    %2175 = vmatpush1.msra.mxu0 0.0
    %2176 = vmatprep.subr.mxu0 0.0
    %2177 = vmatpush1.msra.mxu0 0.0
    %2178 = vmatprep.subr.mxu0 0.0
    %2179 = vmatpush1.msra.mxu0 0.0
    %2180 = vmatprep.subr.mxu0 0.0
    %2181 = vmatpush1.msra.mxu0 0.0
    %2182 = vmatprep.subr.mxu0 0.0
    %2183 = vmatpush1.msra.mxu0 0.0
    %2184 = vmatprep.subr.mxu0 0.0
    %2185 = vmatpush1.msra.mxu0 0.0
    %2186 = vmatprep.subr.mxu0 0.0
    %2187 = vmatpush1.msra.mxu0 0.0
    %2188 = vmatprep.subr.mxu0 0.0
    %2189 = vmatpush1.msra.mxu0 0.0
    %2190 = vmatprep.subr.mxu0 0.0
    %2191 = vmatpush1.msra.mxu0 0.0
    %2192 = vmatprep.subr.mxu0 0.0
    %2193 = vmatpush1.msra.mxu0 0.0
    %2194 = vmatprep.subr.mxu0 0.0
    %2195 = vmatpush1.msra.mxu0 0.0
    %2196 = vmatprep.subr.mxu0 0.0
    %2197 = vmatpush1.msra.mxu0 0.0
    %2198 = vmatprep.subr.mxu0 0.0
    %2199 = vmatpush1.msra.mxu0 0.0
    %2200 = vmatprep.subr.mxu0 0.0
    %2201 = vmatpush1.msra.mxu0 0.0
    %2202 = vmatprep.subr.mxu0 0.0
    %2203 = vmatpush1.msra.mxu0 0.0
    %2204 = vmatprep.subr.mxu0 0.0
    %2205 = vmatpush1.msra.mxu0 0.0
    %2206 = vmatprep.subr.mxu0 0.0
    %2207 = vmatpush1.msra.mxu0 0.0
    %2208 = vmatprep.mubr.f32.mxu0 0.0
    %2209 = vmatmul.mubr.f32.gmra.mrb[0].mxu0 %v2139
    %v2210 = vpop.f32.mrb[0].mxu0
    %v2211 = vadd.f32 0.0, %v2210
    %v2212 = vpop.f32.mrb[0].mxu0
    %2213 = vmatprep.mubr.f32.mxu0 0.0
    %2214 = vmatmul.mubr.f32.gmra.mrb[0].mxu0 %v2142
    %v2215 = vpop.f32.mrb[0].mxu0
    %v2216 = vadd.f32 0.0, %v2215
    %v2217 = vpop.f32.mrb[0].mxu0
    %2218 = vdwg.mxu0
    %2219 = vset.pattern.permute.xlu0 7
    %2220 = vperm.xlu0 %2219, %v1790
    %v2221 = vpop.permute.xlu0 %2220
    %2223 = vset.pattern.permute.xlu0 7
    %2224 = vperm.xlu0 %2223, %v1795
    %v2225 = vpop.permute.xlu0 %2224
    %v2227 = vlaneseq
    %v2228 = vshrl.u32 %v2227, 7
    %v2229 = vsub.s32 3, %v2228
    %v2230 = vrot.slane %v1814, %v2229
    %v2231 = vadd.f32 %v2221, %v2230
    %v2232 = vadd.f32 %v2225, %v2230
    %vm2233 = vcmp.gt.f32.partialorder %v2231, 0.0
    %vm2234 = vcmp.gt.f32.partialorder %v2232, 0.0
    %v2235 = vmul.f32 %v2231, 0.2
    %v2236 = vmul.f32 %v2232, 0.2
    %v2237 = vsel %vm2233, %v2231, %v2235
    %v2238 = vsel %vm2234, %v2232, %v2236
    %v2239 = vadd.f32 %v2237, %v68
    %v2240 = vadd.f32 %v2238, %v69
    %v2241 = vsel %vm301, %v2239, -inf
    %2242 = vmax.xlane.f32.xlu0 %v2241
    %v2243 = vpop.xlane.xlu0 %2242
    %v2244 = vsel %vm301, %v2240, -inf
    %2245 = vmax.xlane.f32.xlu0 %v2244
    %v2246 = vpop.xlane.xlu0 %2245
    %v2247 = vsub.f32 %v2239, %v2243
    %v2248 = vsub.f32 %v2240, %v2246
    %v2249 = vmul.f32 %v2247, 1.442695
    %v2250 = vpow.pop %v2249
    %v2251 = vmul.f32 %v2248, 1.442695
    %v2252 = vpow.pop %v2251
    %v2253 = vsel %vm301, %v2250, 0.0
    %2254 = vadd.xlane.f32.xlu0 %v2253
    %v2255 = vpop.xlane.xlu0 %2254
    %v2256 = vsel %vm301, %v2252, 0.0
    %2257 = vadd.xlane.f32.xlu0 %v2256
    %v2258 = vpop.xlane.xlu0 %2257
    %v2259 = vrcp.pop %v2255
    %v2260 = vrcp.pop %v2258
    %v2261 = vmul.f32 %v2250, %v2259
    %v2262 = vmul.f32 %v2252, %v2260
    %2263 = vrot.lane.b32.xlu0 %v1701, 80
    %v2264 = vpop.permute.xlu0 %2263
    %2265 = vrot.lane.b32.xlu0 %v1706, 80
    %v2266 = vpop.permute.xlu0 %2265
    %v2270 = vsel %vm301, %v2261, 0
    %v2273 = vsel %vm301, %v2262, 0
    %2275 = vmatprep.subr.mxu0 0.0
    %2276 = vmatpush1.msra.mxu0 %v2264
    %2277 = vmatprep.subr.mxu0 0.0
    %2278 = vmatpush1.msra.mxu0 %v2266
    %2279 = vmatprep.subr.mxu0 0.0
    %2280 = vmatpush1.msra.mxu0 0.0
    %2281 = vmatprep.subr.mxu0 0.0
    %2282 = vmatpush1.msra.mxu0 0.0
    %2283 = vmatprep.subr.mxu0 0.0
    %2284 = vmatpush1.msra.mxu0 0.0
    %2285 = vmatprep.subr.mxu0 0.0
    %2286 = vmatpush1.msra.mxu0 0.0
    %2287 = vmatprep.subr.mxu0 0.0
    %2288 = vmatpush1.msra.mxu0 0.0
    %2289 = vmatprep.subr.mxu0 0.0
    %2290 = vmatpush1.msra.mxu0 0.0
    %2291 = vmatprep.subr.mxu0 0.0
    %2292 = vmatpush1.msra.mxu0 0.0
    %2293 = vmatprep.subr.mxu0 0.0
    %2294 = vmatpush1.msra.mxu0 0.0
    %2295 = vmatprep.subr.mxu0 0.0
    %2296 = vmatpush1.msra.mxu0 0.0
    %2297 = vmatprep.subr.mxu0 0.0
    %2298 = vmatpush1.msra.mxu0 0.0
    %2299 = vmatprep.subr.mxu0 0.0
    %2300 = vmatpush1.msra.mxu0 0.0
    %2301 = vmatprep.subr.mxu0 0.0
    %2302 = vmatpush1.msra.mxu0 0.0
    %2303 = vmatprep.subr.mxu0 0.0
    %2304 = vmatpush1.msra.mxu0 0.0
    %2305 = vmatprep.subr.mxu0 0.0
    %2306 = vmatpush1.msra.mxu0 0.0
    %2307 = vmatprep.subr.mxu0 0.0
    %2308 = vmatpush1.msra.mxu0 0.0
    %2309 = vmatprep.subr.mxu0 0.0
    %2310 = vmatpush1.msra.mxu0 0.0
    %2311 = vmatprep.subr.mxu0 0.0
    %2312 = vmatpush1.msra.mxu0 0.0
    %2313 = vmatprep.subr.mxu0 0.0
    %2314 = vmatpush1.msra.mxu0 0.0
    %2315 = vmatprep.subr.mxu0 0.0
    %2316 = vmatpush1.msra.mxu0 0.0
    %2317 = vmatprep.subr.mxu0 0.0
    %2318 = vmatpush1.msra.mxu0 0.0
    %2319 = vmatprep.subr.mxu0 0.0
    %2320 = vmatpush1.msra.mxu0 0.0
    %2321 = vmatprep.subr.mxu0 0.0
    %2322 = vmatpush1.msra.mxu0 0.0
    %2323 = vmatprep.subr.mxu0 0.0
    %2324 = vmatpush1.msra.mxu0 0.0
    %2325 = vmatprep.subr.mxu0 0.0
    %2326 = vmatpush1.msra.mxu0 0.0
    %2327 = vmatprep.subr.mxu0 0.0
    %2328 = vmatpush1.msra.mxu0 0.0
    %2329 = vmatprep.subr.mxu0 0.0
    %2330 = vmatpush1.msra.mxu0 0.0
    %2331 = vmatprep.subr.mxu0 0.0
    %2332 = vmatpush1.msra.mxu0 0.0
    %2333 = vmatprep.subr.mxu0 0.0
    %2334 = vmatpush1.msra.mxu0 0.0
    %2335 = vmatprep.subr.mxu0 0.0
    %2336 = vmatpush1.msra.mxu0 0.0
    %2337 = vmatprep.subr.mxu0 0.0
    %2338 = vmatpush1.msra.mxu0 0.0
    %2339 = vmatprep.mubr.f32.mxu0 0.0
    %2340 = vmatmul.mubr.f32.gmra.mrb[0].mxu0 %v2270
    %v2341 = vpop.f32.mrb[0].mxu0
    %v2342 = vadd.f32 0.0, %v2341
    %v2343 = vpop.f32.mrb[0].mxu0
    %2344 = vmatprep.mubr.f32.mxu0 0.0
    %2345 = vmatmul.mubr.f32.gmra.mrb[0].mxu0 %v2273
    %v2346 = vpop.f32.mrb[0].mxu0
    %v2347 = vadd.f32 0.0, %v2346
    %v2348 = vpop.f32.mrb[0].mxu0
    %2349 = vdwg.mxu0
    %2352 = vrot.lane.b32.xlu0 %v2080, 16
    %v2353 = vpop.permute.xlu0 %2352
    %2354 = vrot.lane.b32.xlu0 %v2085, 16
    %v2355 = vpop.permute.xlu0 %2354
    %2360 = vrot.lane.b32.xlu0 %v2211, 32
    %v2361 = vpop.permute.xlu0 %2360
    %2362 = vrot.lane.b32.xlu0 %v2216, 32
    %v2363 = vpop.permute.xlu0 %2362
    %2368 = vrot.lane.b32.xlu0 %v2342, 48
    %v2369 = vpop.permute.xlu0 %2368
    %2370 = vrot.lane.b32.xlu0 %v2347, 48
    %v2371 = vpop.permute.xlu0 %2370
    %v2374 = vsel %vm301, %v1949, %v2353
    %v2375 = vsel %vm301, %v1954, %v2355
    %v2376 = vsel %vm824, %v2374, %v2361
    %v2377 = vsel %vm824, %v2375, %v2363
    %v2378 = vsel %vm827, %v2376, %v2369
    %v2379 = vsel %vm827, %v2377, %v2371
    %v2380 = vld [vmem:[%s10] sm:$0x1]
    %v2382 = vlaneseq
    %v2383 = vshrl.u32 %v2382, 7
    %v2384 = vsub.s32 0, %v2383
    %v2385 = vrot.slane %v2380, %v2384
    %v2387 = vadd.f32 %v2378, %v2385
    %v2388 = vadd.f32 %v2379, %v2385
    %vm2389 = vcmp.gt.f32.partialorder %v2387, 0.0
    %vm2390 = vcmp.gt.f32.partialorder %v2388, 0.0
    %v2391 = vmul.f32 %v2387, 0.01
    %v2392 = vmul.f32 %v2388, 0.01
    %v2393 = vsel %vm2389, %v2387, %v2391
    %v2394 = vsel %vm2390, %v2388, %v2392
    %v2395 = vld [vmem:[%s11] sm:$0xff]
    %v2396 = vld [vmem:[%s11 + $0x8] sm:$0xff]
    %v2397 = vld [vmem:[%s11 + $0x10] sm:$0xff]
    %v2398 = vld [vmem:[%s11 + $0x18] sm:$0xff]
    %v2399 = vld [vmem:[%s11 + $0x20] sm:$0xff]
    %v2400 = vld [vmem:[%s11 + $0x28] sm:$0xff]
    %v2401 = vld [vmem:[%s11 + $0x30] sm:$0xff]
    %v2402 = vld [vmem:[%s11 + $0x38] sm:$0xff]
    %v2403 = vld [vmem:[%s13] sm:$0x1]
    %v2405 = vlaneseq
    %v2406 = vshrl.u32 %v2405, 7
    %v2407 = vsub.s32 0, %v2406
    %v2408 = vrot.slane %v2403, %v2407
    %v2411 = vsel %vm163, %v2393, 0
    %v2414 = vsel %vm163, %v2394, 0
    %2416 = vmatprep.subr.mxu0 0.0
    %2417 = vmatpush1.msra.mxu0 %v2395
    %2418 = vmatprep.subr.mxu0 0.0
    %2419 = vmatpush1.msra.mxu0 %v2396
    %2420 = vmatprep.subr.mxu0 0.0
    %2421 = vmatpush1.msra.mxu0 %v2397
    %2422 = vmatprep.subr.mxu0 0.0
    %2423 = vmatpush1.msra.mxu0 %v2398
    %2424 = vmatprep.subr.mxu0 0.0
    %2425 = vmatpush1.msra.mxu0 %v2399
    %2426 = vmatprep.subr.mxu0 0.0
    %2427 = vmatpush1.msra.mxu0 %v2400
    %2428 = vmatprep.subr.mxu0 0.0
    %2429 = vmatpush1.msra.mxu0 %v2401
    %2430 = vmatprep.subr.mxu0 0.0
    %2431 = vmatpush1.msra.mxu0 %v2402
    %2432 = vmatprep.subr.mxu0 0.0
    %2433 = vmatpush1.msra.mxu0 0.0
    %2434 = vmatprep.subr.mxu0 0.0
    %2435 = vmatpush1.msra.mxu0 0.0
    %2436 = vmatprep.subr.mxu0 0.0
    %2437 = vmatpush1.msra.mxu0 0.0
    %2438 = vmatprep.subr.mxu0 0.0
    %2439 = vmatpush1.msra.mxu0 0.0
    %2440 = vmatprep.subr.mxu0 0.0
    %2441 = vmatpush1.msra.mxu0 0.0
    %2442 = vmatprep.subr.mxu0 0.0
    %2443 = vmatpush1.msra.mxu0 0.0
    %2444 = vmatprep.subr.mxu0 0.0
    %2445 = vmatpush1.msra.mxu0 0.0
    %2446 = vmatprep.subr.mxu0 0.0
    %2447 = vmatpush1.msra.mxu0 0.0
    %2448 = vmatprep.subr.mxu0 0.0
    %2449 = vmatpush1.msra.mxu0 0.0
    %2450 = vmatprep.subr.mxu0 0.0
    %2451 = vmatpush1.msra.mxu0 0.0
    %2452 = vmatprep.subr.mxu0 0.0
    %2453 = vmatpush1.msra.mxu0 0.0
    %2454 = vmatprep.subr.mxu0 0.0
    %2455 = vmatpush1.msra.mxu0 0.0
    %2456 = vmatprep.subr.mxu0 0.0
    %2457 = vmatpush1.msra.mxu0 0.0
    %2458 = vmatprep.subr.mxu0 0.0
    %2459 = vmatpush1.msra.mxu0 0.0
    %2460 = vmatprep.subr.mxu0 0.0
    %2461 = vmatpush1.msra.mxu0 0.0
    %2462 = vmatprep.subr.mxu0 0.0
    %2463 = vmatpush1.msra.mxu0 0.0
    %2464 = vmatprep.subr.mxu0 0.0
    %2465 = vmatpush1.msra.mxu0 0.0
    %2466 = vmatprep.subr.mxu0 0.0
    %2467 = vmatpush1.msra.mxu0 0.0
    %2468 = vmatprep.subr.mxu0 0.0
    %2469 = vmatpush1.msra.mxu0 0.0
    %2470 = vmatprep.subr.mxu0 0.0
    %2471 = vmatpush1.msra.mxu0 0.0
    %2472 = vmatprep.subr.mxu0 0.0
    %2473 = vmatpush1.msra.mxu0 0.0
    %2474 = vmatprep.subr.mxu0 0.0
    %2475 = vmatpush1.msra.mxu0 0.0
    %2476 = vmatprep.subr.mxu0 0.0
    %2477 = vmatpush1.msra.mxu0 0.0
    %2478 = vmatprep.subr.mxu0 0.0
    %2479 = vmatpush1.msra.mxu0 0.0
    %2480 = vmatprep.mubr.f32.mxu0 0.0
    %2481 = vmatmul.mubr.f32.gmra.mrb[0].mxu0 %v2411
    %v2482 = vpop.f32.mrb[0].mxu0
    %v2483 = vadd.f32 %v2408, %v2482
    %v2484 = vpop.f32.mrb[0].mxu0
    %2485 = vmatprep.mubr.f32.mxu0 0.0
    %2486 = vmatmul.mubr.f32.gmra.mrb[0].mxu0 %v2414
    %v2487 = vpop.f32.mrb[0].mxu0
    %v2488 = vadd.f32 %v2408, %v2487
    %v2489 = vpop.f32.mrb[0].mxu0
    %2490 = vdwg.mxu0
    %v2491 = vld [vmem:[%s12] sm:$0xff]
    %v2492 = vld [vmem:[%s12 + $0x8] sm:$0xff]
    %v2493 = vld [vmem:[%s12 + $0x10] sm:$0xff]
    %v2494 = vld [vmem:[%s12 + $0x18] sm:$0xff]
    %v2495 = vld [vmem:[%s12 + $0x20] sm:$0xff]
    %v2496 = vld [vmem:[%s12 + $0x28] sm:$0xff]
    %v2497 = vld [vmem:[%s12 + $0x30] sm:$0xff]
    %v2498 = vld [vmem:[%s12 + $0x38] sm:$0xff]
    %2499 = vmatprep.subr.mxu0 0.0
    %2500 = vmatpush1.msra.mxu0 %v2491
    %2501 = vmatprep.subr.mxu0 0.0
    %2502 = vmatpush1.msra.mxu0 %v2492
    %2503 = vmatprep.subr.mxu0 0.0
    %2504 = vmatpush1.msra.mxu0 %v2493
    %2505 = vmatprep.subr.mxu0 0.0
    %2506 = vmatpush1.msra.mxu0 %v2494
    %2507 = vmatprep.subr.mxu0 0.0
    %2508 = vmatpush1.msra.mxu0 %v2495
    %2509 = vmatprep.subr.mxu0 0.0
    %2510 = vmatpush1.msra.mxu0 %v2496
    %2511 = vmatprep.subr.mxu0 0.0
    %2512 = vmatpush1.msra.mxu0 %v2497
    %2513 = vmatprep.subr.mxu0 0.0
    %2514 = vmatpush1.msra.mxu0 %v2498
    %2515 = vmatprep.subr.mxu0 0.0
    %2516 = vmatpush1.msra.mxu0 0.0
    %2517 = vmatprep.subr.mxu0 0.0
    %2518 = vmatpush1.msra.mxu0 0.0
    %2519 = vmatprep.subr.mxu0 0.0
    %2520 = vmatpush1.msra.mxu0 0.0
    %2521 = vmatprep.subr.mxu0 0.0
    %2522 = vmatpush1.msra.mxu0 0.0
    %2523 = vmatprep.subr.mxu0 0.0
    %2524 = vmatpush1.msra.mxu0 0.0
    %2525 = vmatprep.subr.mxu0 0.0
    %2526 = vmatpush1.msra.mxu0 0.0
    %2527 = vmatprep.subr.mxu0 0.0
    %2528 = vmatpush1.msra.mxu0 0.0
    %2529 = vmatprep.subr.mxu0 0.0
    %2530 = vmatpush1.msra.mxu0 0.0
    %2531 = vmatprep.subr.mxu0 0.0
    %2532 = vmatpush1.msra.mxu0 0.0
    %2533 = vmatprep.subr.mxu0 0.0
    %2534 = vmatpush1.msra.mxu0 0.0
    %2535 = vmatprep.subr.mxu0 0.0
    %2536 = vmatpush1.msra.mxu0 0.0
    %2537 = vmatprep.subr.mxu0 0.0
    %2538 = vmatpush1.msra.mxu0 0.0
    %2539 = vmatprep.subr.mxu0 0.0
    %2540 = vmatpush1.msra.mxu0 0.0
    %2541 = vmatprep.subr.mxu0 0.0
    %2542 = vmatpush1.msra.mxu0 0.0
    %2543 = vmatprep.subr.mxu0 0.0
    %2544 = vmatpush1.msra.mxu0 0.0
    %2545 = vmatprep.subr.mxu0 0.0
    %2546 = vmatpush1.msra.mxu0 0.0
    %2547 = vmatprep.subr.mxu0 0.0
    %2548 = vmatpush1.msra.mxu0 0.0
    %2549 = vmatprep.subr.mxu0 0.0
    %2550 = vmatpush1.msra.mxu0 0.0
    %2551 = vmatprep.subr.mxu0 0.0
    %2552 = vmatpush1.msra.mxu0 0.0
    %2553 = vmatprep.subr.mxu0 0.0
    %2554 = vmatpush1.msra.mxu0 0.0
    %2555 = vmatprep.subr.mxu0 0.0
    %2556 = vmatpush1.msra.mxu0 0.0
    %2557 = vmatprep.subr.mxu0 0.0
    %2558 = vmatpush1.msra.mxu0 0.0
    %2559 = vmatprep.subr.mxu0 0.0
    %2560 = vmatpush1.msra.mxu0 0.0
    %2561 = vmatprep.subr.mxu0 0.0
    %2562 = vmatpush1.msra.mxu0 0.0
    %2563 = vmatprep.mubr.f32.mxu0 0.0
    %2564 = vmatmul.mubr.f32.gmra.mrb[0].mxu0 %v2411
    %v2565 = vpop.f32.mrb[0].mxu0
    %v2566 = vadd.f32 0.0, %v2565
    %v2567 = vpop.f32.mrb[0].mxu0
    %2568 = vmatprep.mubr.f32.mxu0 0.0
    %2569 = vmatmul.mubr.f32.gmra.mrb[0].mxu0 %v2414
    %v2570 = vpop.f32.mrb[0].mxu0
    %v2571 = vadd.f32 0.0, %v2570
    %v2572 = vpop.f32.mrb[0].mxu0
    %2573 = vdwg.mxu0
    %2574 = vxpose.xlu0.b32.start [1/16] %v2566, 128
    %2575 = vxpose.xlu0.b32.cont [2/16] %v2571, 128
    %2576 = vxpose.xlu0.b32.cont [3/16] 0.0, 128
    %2577 = vxpose.xlu0.b32.cont [4/16] 0.0, 128
    %2578 = vxpose.xlu0.b32.cont [5/16] 0.0, 128
    %2579 = vxpose.xlu0.b32.cont [6/16] 0.0, 128
    %2580 = vxpose.xlu0.b32.cont [7/16] 0.0, 128
    %2581 = vxpose.xlu0.b32.cont [8/16] 0.0, 128
    %2582 = vxpose.xlu0.b32.cont [9/16] 0.0, 128
    %2583 = vxpose.xlu0.b32.cont [10/16] 0.0, 128
    %2584 = vxpose.xlu0.b32.cont [11/16] 0.0, 128
    %2585 = vxpose.xlu0.b32.cont [12/16] 0.0, 128
    %2586 = vxpose.xlu0.b32.cont [13/16] 0.0, 128
    %2587 = vxpose.xlu0.b32.cont [14/16] 0.0, 128
    %2588 = vxpose.xlu0.b32.cont [15/16] 0.0, 128
    %2589 = vxpose.xlu0.b32.end [16/16] 0.0, 128
    %v2590 = vpop.trf.xlu0
    %v2591 = vpop.trf.xlu0
    %v2592 = vpop.trf.xlu0
    %v2593 = vpop.trf.xlu0
    %v2594 = vpop.trf.xlu0
    %v2595 = vpop.trf.xlu0
    %v2596 = vpop.trf.xlu0
    %v2597 = vpop.trf.xlu0
    %v2598 = vpop.trf.xlu0
    %v2599 = vpop.trf.xlu0
    %v2600 = vpop.trf.xlu0
    %v2601 = vpop.trf.xlu0
    %v2602 = vpop.trf.xlu0
    %v2603 = vpop.trf.xlu0
    %v2604 = vpop.trf.xlu0
    %v2605 = vpop.trf.xlu0
    %2607 = vset.pattern.permute.xlu0 0
    %2608 = vperm.xlu0 %2607, %v2483
    %v2609 = vpop.permute.xlu0 %2608
    %2612 = vset.pattern.permute.xlu0 0
    %2613 = vperm.xlu0 %2612, %v2488
    %v2614 = vpop.permute.xlu0 %2613
    %v2616 = vlaneseq
    %v2617 = vshrl.u32 %v2616, 7
    %v2618 = vsub.s32 0, %v2617
    %v2619 = vrot.slane %v2590, %v2618
    %v2620 = vadd.f32 %v2609, %v2619
    %v2621 = vadd.f32 %v2614, %v2619
    %v2622 = vmax.f32 %v2620, 0.0
    %v2623 = vmax.f32 %v2621, 0.0
    %s2624 = sld [smem:[#allocation3]]
    %v2625 = vstv %s2624
    %v2626 = vmul.f32 %v2622, %v2625
    %v2627 = vmul.f32 %v2623, %v2625
    %v2628 = vadd.f32 %v2626, 0.0
    %v2629 = vadd.f32 %v2627, 0.0
    %2630 = vset.pattern.permute.xlu0 1
    %2631 = vperm.xlu0 %2630, %v2483
    %v2632 = vpop.permute.xlu0 %2631
    %2634 = vset.pattern.permute.xlu0 1
    %2635 = vperm.xlu0 %2634, %v2488
    %v2636 = vpop.permute.xlu0 %2635
    %v2638 = vlaneseq
    %v2639 = vshrl.u32 %v2638, 7
    %v2640 = vsub.s32 1, %v2639
    %v2641 = vrot.slane %v2590, %v2640
    %v2642 = vadd.f32 %v2632, %v2641
    %v2643 = vadd.f32 %v2636, %v2641
    %v2644 = vmax.f32 %v2642, 0.0
    %v2645 = vmax.f32 %v2643, 0.0
    %s2646 = sld [smem:[#allocation3 + $0x1]]
    %v2647 = vstv %s2646
    %v2648 = vmul.f32 %v2644, %v2647
    %v2649 = vmul.f32 %v2645, %v2647
    %v2650 = vadd.f32 %v2628, %v2648
    %v2651 = vadd.f32 %v2629, %v2649
    %2652 = vset.pattern.permute.xlu0 2
    %2653 = vperm.xlu0 %2652, %v2483
    %v2654 = vpop.permute.xlu0 %2653
    %2656 = vset.pattern.permute.xlu0 2
    %2657 = vperm.xlu0 %2656, %v2488
    %v2658 = vpop.permute.xlu0 %2657
    %v2660 = vlaneseq
    %v2661 = vshrl.u32 %v2660, 7
    %v2662 = vsub.s32 2, %v2661
    %v2663 = vrot.slane %v2590, %v2662
    %v2664 = vadd.f32 %v2654, %v2663
    %v2665 = vadd.f32 %v2658, %v2663
    %v2666 = vmax.f32 %v2664, 0.0
    %v2667 = vmax.f32 %v2665, 0.0
    %s2668 = sld [smem:[#allocation3 + $0x2]]
    %v2669 = vstv %s2668
    %v2670 = vmul.f32 %v2666, %v2669
    %v2671 = vmul.f32 %v2667, %v2669
    %v2672 = vadd.f32 %v2650, %v2670
    %v2673 = vadd.f32 %v2651, %v2671
    %2674 = vset.pattern.permute.xlu0 3
    %2675 = vperm.xlu0 %2674, %v2483
    %v2676 = vpop.permute.xlu0 %2675
    %2678 = vset.pattern.permute.xlu0 3
    %2679 = vperm.xlu0 %2678, %v2488
    %v2680 = vpop.permute.xlu0 %2679
    %v2682 = vlaneseq
    %v2683 = vshrl.u32 %v2682, 7
    %v2684 = vsub.s32 3, %v2683
    %v2685 = vrot.slane %v2590, %v2684
    %v2686 = vadd.f32 %v2676, %v2685
    %v2687 = vadd.f32 %v2680, %v2685
    %v2688 = vmax.f32 %v2686, 0.0
    %v2689 = vmax.f32 %v2687, 0.0
    %s2690 = sld [smem:[#allocation3 + $0x3]]
    %v2691 = vstv %s2690
    %v2692 = vmul.f32 %v2688, %v2691
    %v2693 = vmul.f32 %v2689, %v2691
    %v2694 = vadd.f32 %v2672, %v2692
    %v2695 = vadd.f32 %v2673, %v2693
    %2696 = vset.pattern.permute.xlu0 4
    %2697 = vperm.xlu0 %2696, %v2483
    %v2698 = vpop.permute.xlu0 %2697
    %2700 = vset.pattern.permute.xlu0 4
    %2701 = vperm.xlu0 %2700, %v2488
    %v2702 = vpop.permute.xlu0 %2701
    %v2704 = vlaneseq
    %v2705 = vshrl.u32 %v2704, 7
    %v2706 = vsub.s32 4, %v2705
    %v2707 = vrot.slane %v2590, %v2706
    %v2708 = vadd.f32 %v2698, %v2707
    %v2709 = vadd.f32 %v2702, %v2707
    %v2710 = vmax.f32 %v2708, 0.0
    %v2711 = vmax.f32 %v2709, 0.0
    %s2712 = sld [smem:[#allocation3 + $0x4]]
    %v2713 = vstv %s2712
    %v2714 = vmul.f32 %v2710, %v2713
    %v2715 = vmul.f32 %v2711, %v2713
    %v2716 = vadd.f32 %v2694, %v2714
    %v2717 = vadd.f32 %v2695, %v2715
    %2718 = vset.pattern.permute.xlu0 5
    %2719 = vperm.xlu0 %2718, %v2483
    %v2720 = vpop.permute.xlu0 %2719
    %2722 = vset.pattern.permute.xlu0 5
    %2723 = vperm.xlu0 %2722, %v2488
    %v2724 = vpop.permute.xlu0 %2723
    %v2726 = vlaneseq
    %v2727 = vshrl.u32 %v2726, 7
    %v2728 = vsub.s32 5, %v2727
    %v2729 = vrot.slane %v2590, %v2728
    %v2730 = vadd.f32 %v2720, %v2729
    %v2731 = vadd.f32 %v2724, %v2729
    %v2732 = vmax.f32 %v2730, 0.0
    %v2733 = vmax.f32 %v2731, 0.0
    %s2734 = sld [smem:[#allocation3 + $0x5]]
    %v2735 = vstv %s2734
    %v2736 = vmul.f32 %v2732, %v2735
    %v2737 = vmul.f32 %v2733, %v2735
    %v2738 = vadd.f32 %v2716, %v2736
    %v2739 = vadd.f32 %v2717, %v2737
    %2740 = vset.pattern.permute.xlu0 6
    %2741 = vperm.xlu0 %2740, %v2483
    %v2742 = vpop.permute.xlu0 %2741
    %2744 = vset.pattern.permute.xlu0 6
    %2745 = vperm.xlu0 %2744, %v2488
    %v2746 = vpop.permute.xlu0 %2745
    %v2748 = vlaneseq
    %v2749 = vshrl.u32 %v2748, 7
    %v2750 = vsub.s32 6, %v2749
    %v2751 = vrot.slane %v2590, %v2750
    %v2752 = vadd.f32 %v2742, %v2751
    %v2753 = vadd.f32 %v2746, %v2751
    %v2754 = vmax.f32 %v2752, 0.0
    %v2755 = vmax.f32 %v2753, 0.0
    %s2756 = sld [smem:[#allocation3 + $0x6]]
    %v2757 = vstv %s2756
    %v2758 = vmul.f32 %v2754, %v2757
    %v2759 = vmul.f32 %v2755, %v2757
    %v2760 = vadd.f32 %v2738, %v2758
    %v2761 = vadd.f32 %v2739, %v2759
    %2762 = vset.pattern.permute.xlu0 7
    %2763 = vperm.xlu0 %2762, %v2483
    %v2764 = vpop.permute.xlu0 %2763
    %2766 = vset.pattern.permute.xlu0 7
    %2767 = vperm.xlu0 %2766, %v2488
    %v2768 = vpop.permute.xlu0 %2767
    %v2770 = vlaneseq
    %v2771 = vshrl.u32 %v2770, 7
    %v2772 = vsub.s32 7, %v2771
    %v2773 = vrot.slane %v2590, %v2772
    %v2774 = vadd.f32 %v2764, %v2773
    %v2775 = vadd.f32 %v2768, %v2773
    %v2776 = vmax.f32 %v2774, 0.0
    %v2777 = vmax.f32 %v2775, 0.0
    %s2778 = sld [smem:[#allocation3 + $0x7]]
    %v2779 = vstv %s2778
    %v2780 = vmul.f32 %v2776, %v2779
    %v2781 = vmul.f32 %v2777, %v2779
    %v2782 = vadd.f32 %v2760, %v2780
    %v2783 = vadd.f32 %v2761, %v2781
    %2784 = vset.pattern.permute.xlu0 8
    %2785 = vperm.xlu0 %2784, %v2483
    %v2786 = vpop.permute.xlu0 %2785
    %2788 = vset.pattern.permute.xlu0 8
    %2789 = vperm.xlu0 %2788, %v2488
    %v2790 = vpop.permute.xlu0 %2789
    %v2792 = vlaneseq
    %v2793 = vshrl.u32 %v2792, 7
    %v2794 = vsub.s32 0, %v2793
    %v2795 = vrot.slane %v2591, %v2794
    %v2796 = vadd.f32 %v2786, %v2795
    %v2797 = vadd.f32 %v2790, %v2795
    %v2798 = vmax.f32 %v2796, 0.0
    %v2799 = vmax.f32 %v2797, 0.0
    %s2800 = sld [smem:[#allocation3 + $0x8]]
    %v2801 = vstv %s2800
    %v2802 = vmul.f32 %v2798, %v2801
    %v2803 = vmul.f32 %v2799, %v2801
    %v2804 = vadd.f32 %v2782, %v2802
    %v2805 = vadd.f32 %v2783, %v2803
    %2806 = vset.pattern.permute.xlu0 9
    %2807 = vperm.xlu0 %2806, %v2483
    %v2808 = vpop.permute.xlu0 %2807
    %2810 = vset.pattern.permute.xlu0 9
    %2811 = vperm.xlu0 %2810, %v2488
    %v2812 = vpop.permute.xlu0 %2811
    %v2814 = vlaneseq
    %v2815 = vshrl.u32 %v2814, 7
    %v2816 = vsub.s32 1, %v2815
    %v2817 = vrot.slane %v2591, %v2816
    %v2818 = vadd.f32 %v2808, %v2817
    %v2819 = vadd.f32 %v2812, %v2817
    %v2820 = vmax.f32 %v2818, 0.0
    %v2821 = vmax.f32 %v2819, 0.0
    %s2822 = sld [smem:[#allocation3 + $0x9]]
    %v2823 = vstv %s2822
    %v2824 = vmul.f32 %v2820, %v2823
    %v2825 = vmul.f32 %v2821, %v2823
    %v2826 = vadd.f32 %v2804, %v2824
    %v2827 = vadd.f32 %v2805, %v2825
    %2828 = vset.pattern.permute.xlu0 10
    %2829 = vperm.xlu0 %2828, %v2483
    %v2830 = vpop.permute.xlu0 %2829
    %2832 = vset.pattern.permute.xlu0 10
    %2833 = vperm.xlu0 %2832, %v2488
    %v2834 = vpop.permute.xlu0 %2833
    %v2836 = vlaneseq
    %v2837 = vshrl.u32 %v2836, 7
    %v2838 = vsub.s32 2, %v2837
    %v2839 = vrot.slane %v2591, %v2838
    %v2840 = vadd.f32 %v2830, %v2839
    %v2841 = vadd.f32 %v2834, %v2839
    %v2842 = vmax.f32 %v2840, 0.0
    %v2843 = vmax.f32 %v2841, 0.0
    %s2844 = sld [smem:[#allocation3 + $0xa]]
    %v2845 = vstv %s2844
    %v2846 = vmul.f32 %v2842, %v2845
    %v2847 = vmul.f32 %v2843, %v2845
    %v2848 = vadd.f32 %v2826, %v2846
    %v2849 = vadd.f32 %v2827, %v2847
    %2850 = vset.pattern.permute.xlu0 11
    %2851 = vperm.xlu0 %2850, %v2483
    %v2852 = vpop.permute.xlu0 %2851
    %2854 = vset.pattern.permute.xlu0 11
    %2855 = vperm.xlu0 %2854, %v2488
    %v2856 = vpop.permute.xlu0 %2855
    %v2858 = vlaneseq
    %v2859 = vshrl.u32 %v2858, 7
    %v2860 = vsub.s32 3, %v2859
    %v2861 = vrot.slane %v2591, %v2860
    %v2862 = vadd.f32 %v2852, %v2861
    %v2863 = vadd.f32 %v2856, %v2861
    %v2864 = vmax.f32 %v2862, 0.0
    %v2865 = vmax.f32 %v2863, 0.0
    %s2866 = sld [smem:[#allocation3 + $0xb]]
    %v2867 = vstv %s2866
    %v2868 = vmul.f32 %v2864, %v2867
    %v2869 = vmul.f32 %v2865, %v2867
    %v2870 = vadd.f32 %v2848, %v2868
    %v2871 = vadd.f32 %v2849, %v2869
    %2872 = vset.pattern.permute.xlu0 12
    %2873 = vperm.xlu0 %2872, %v2483
    %v2874 = vpop.permute.xlu0 %2873
    %2876 = vset.pattern.permute.xlu0 12
    %2877 = vperm.xlu0 %2876, %v2488
    %v2878 = vpop.permute.xlu0 %2877
    %v2880 = vlaneseq
    %v2881 = vshrl.u32 %v2880, 7
    %v2882 = vsub.s32 4, %v2881
    %v2883 = vrot.slane %v2591, %v2882
    %v2884 = vadd.f32 %v2874, %v2883
    %v2885 = vadd.f32 %v2878, %v2883
    %v2886 = vmax.f32 %v2884, 0.0
    %v2887 = vmax.f32 %v2885, 0.0
    %s2888 = sld [smem:[#allocation3 + $0xc]]
    %v2889 = vstv %s2888
    %v2890 = vmul.f32 %v2886, %v2889
    %v2891 = vmul.f32 %v2887, %v2889
    %v2892 = vadd.f32 %v2870, %v2890
    %v2893 = vadd.f32 %v2871, %v2891
    %2894 = vset.pattern.permute.xlu0 13
    %2895 = vperm.xlu0 %2894, %v2483
    %v2896 = vpop.permute.xlu0 %2895
    %2898 = vset.pattern.permute.xlu0 13
    %2899 = vperm.xlu0 %2898, %v2488
    %v2900 = vpop.permute.xlu0 %2899
    %v2902 = vlaneseq
    %v2903 = vshrl.u32 %v2902, 7
    %v2904 = vsub.s32 5, %v2903
    %v2905 = vrot.slane %v2591, %v2904
    %v2906 = vadd.f32 %v2896, %v2905
    %v2907 = vadd.f32 %v2900, %v2905
    %v2908 = vmax.f32 %v2906, 0.0
    %v2909 = vmax.f32 %v2907, 0.0
    %s2910 = sld [smem:[#allocation3 + $0xd]]
    %v2911 = vstv %s2910
    %v2912 = vmul.f32 %v2908, %v2911
    %v2913 = vmul.f32 %v2909, %v2911
    %v2914 = vadd.f32 %v2892, %v2912
    %v2915 = vadd.f32 %v2893, %v2913
    %2916 = vset.pattern.permute.xlu0 14
    %2917 = vperm.xlu0 %2916, %v2483
    %v2918 = vpop.permute.xlu0 %2917
    %2920 = vset.pattern.permute.xlu0 14
    %2921 = vperm.xlu0 %2920, %v2488
    %v2922 = vpop.permute.xlu0 %2921
    %v2924 = vlaneseq
    %v2925 = vshrl.u32 %v2924, 7
    %v2926 = vsub.s32 6, %v2925
    %v2927 = vrot.slane %v2591, %v2926
    %v2928 = vadd.f32 %v2918, %v2927
    %v2929 = vadd.f32 %v2922, %v2927
    %v2930 = vmax.f32 %v2928, 0.0
    %v2931 = vmax.f32 %v2929, 0.0
    %s2932 = sld [smem:[#allocation3 + $0xe]]
    %v2933 = vstv %s2932
    %v2934 = vmul.f32 %v2930, %v2933
    %v2935 = vmul.f32 %v2931, %v2933
    %v2936 = vadd.f32 %v2914, %v2934
    %v2937 = vadd.f32 %v2915, %v2935
    %2938 = vset.pattern.permute.xlu0 15
    %2939 = vperm.xlu0 %2938, %v2483
    %v2940 = vpop.permute.xlu0 %2939
    %2942 = vset.pattern.permute.xlu0 15
    %2943 = vperm.xlu0 %2942, %v2488
    %v2944 = vpop.permute.xlu0 %2943
    %v2946 = vlaneseq
    %v2947 = vshrl.u32 %v2946, 7
    %v2948 = vsub.s32 7, %v2947
    %v2949 = vrot.slane %v2591, %v2948
    %v2950 = vadd.f32 %v2940, %v2949
    %v2951 = vadd.f32 %v2944, %v2949
    %v2952 = vmax.f32 %v2950, 0.0
    %v2953 = vmax.f32 %v2951, 0.0
    %s2954 = sld [smem:[#allocation3 + $0xf]]
    %v2955 = vstv %s2954
    %v2956 = vmul.f32 %v2952, %v2955
    %v2957 = vmul.f32 %v2953, %v2955
    %v2958 = vadd.f32 %v2936, %v2956
    %v2959 = vadd.f32 %v2937, %v2957
    %s2960 = sld [smem:[#allocation2]]
    %v2961 = vstv %s2960
    %v2962 = vadd.f32 %v2958, %v2961
    %v2963 = vadd.f32 %v2959, %v2961
    %2964 = vst.msk [vmem:[#allocation6] sm:$0xff] %vm301, %v2962
    %2965 = vst.msk [vmem:[#allocation6 + $0x8] sm:$0xff] %vm301, %v2963
    // Predicated region
    $region70: #{tpu_custom_call.1} parent=1 // pred_check
      _
    $region71: #{tpu_custom_call.1} parent=1 // pred_check_branch
      %2967 = sbr.rel (0) target = $region73
    $region72: #{tpu_custom_call.1} parent=1 // pred_region
      %s2969 = ssub.s32 256, 256
      %2970 = vsyncadd [#allocation4], %s2969
      %s2971 = sshll.u32 [#allocation6], 4
      %s2972 = int_to_ptr.vmem [resolvable:$true] %s2971
      %2977 = dma.vmem_to_hbm [thread:$0]  %s2972, 256, %s16, [#allocation4], 128, 128, 8
    $region73: #{tpu_custom_call.1} parent=1 // pred_fallthru
      _
    // Predicated region
    $region74: #{tpu_custom_call.1} parent=1 // pred_check
      _
    $region75: #{tpu_custom_call.1} parent=1 // pred_check_branch
      %2979 = sbr.rel (0) target = $region77
    $region76: #{tpu_custom_call.1} parent=1 // pred_region
      %2980 = dma.done [#allocation4], 256
    $region77: #{tpu_custom_call.1} parent=1 // pred_fallthru
      _
    %2981 = vsyncpa [#allocation4], 1
    %2982 = vsyncpa [#allocation5], 1

</llo_original>
